<compile_context>
chip_gen: v5e
topology: v5e:2x2
jax: 0.10.0
libtpu: 0.0.40
codegen_flags: <defaults>
</compile_context>

<pallas_src>
import functools

import jax
import jax.numpy as jnp
from jax.experimental import pallas as pl
from jax.experimental.pallas import tpu as pltpu

_VMEM_LIMIT = 32 * 1024 * 1024  # explicit scoped-VMEM limit (v5e default is only 16 MiB)


# ----------------------------------------------------------------------------
# Pallas kernel 1: pairwise squared distance  dist[b,s,n] = |q[b,s] - x[b,n]|^2
# (hot path of square_distance / knn_point).  Tiled over (B, S, N) so the
# (S, N) output block never exceeds VMEM at realistic point counts, and the
# writeback pipelines.  The C == 3 contraction is expanded directly on the VPU.
# ----------------------------------------------------------------------------
def _sqdist_kernel(q_ref, xt_ref, o_ref):
    q = q_ref[0]     # (ts, C)
    xt = xt_ref[0]   # (C, tn)
    acc = jnp.zeros((q.shape[0], xt.shape[1]), jnp.float32)
    for c in range(q.shape[1]):              # C == 3, fully unrolled, pure VPU
        diff = q[:, c:c + 1] - xt[c:c + 1, :]
        acc = acc + diff * diff
    o_ref[0] = acc


def pairwise_sqdist(q, x, *, tile_s=512, tile_n=512):
    """q: (B, S, C), x: (B, N, C) -> (B, S, N) squared distances."""
    B, S, C = q.shape
    _, N, _ = x.shape
    ts, tn = min(tile_s, S), min(tile_n, N)
    assert S % ts == 0 and N % tn == 0
    xt = jnp.transpose(x, (0, 2, 1))         # (B, C, N): tiny, puts N on lanes
    return pl.pallas_call(
        _sqdist_kernel,
        out_shape=jax.ShapeDtypeStruct((B, S, N), jnp.float32),
        grid=(B, S // ts, N // tn),
        in_specs=[pl.BlockSpec((1, ts, C), lambda b, si, nj: (b, si, 0)),
                  pl.BlockSpec((1, C, tn), lambda b, si, nj: (b, 0, nj))],
        out_specs=pl.BlockSpec((1, ts, tn), lambda b, si, nj: (b, si, nj)),
        compiler_params=pltpu.CompilerParams(
            dimension_semantics=("parallel", "parallel", "parallel"),
            vmem_limit_bytes=_VMEM_LIMIT),
    )(q, xt)


# ----------------------------------------------------------------------------
# Pallas kernel 2: chain of 1x1 Conv2d(+folded BN)+ReLU layers over grouped
# neighborhoods, fused with the PointNet max-pool over the K neighbor axis.
# Input arrives flattened as (B, S*K, Cin); each grid step loads one
# (tile_n*K, Cin) slab, runs the whole MLP as large-M matmuls, max-reduces over
# K in-register, and does a single store.
# ----------------------------------------------------------------------------
def _make_grouped_mlp_kernel(num_layers, nsample, compute_dtype):
    def kernel(x_ref, *rest):
        o_ref = rest[-1]
        wb = rest[:-1]
        h = x_ref[0]                                    # (tile_n * K, Cin) bf16
        for i in range(num_layers):
            W = wb[2 * i][...]                          # (Cin_i, Cout_i) bf16
            b = wb[2 * i + 1][...]                      # (1, Cout_i)  f32
            h = jnp.dot(h, W, preferred_element_type=jnp.float32) + b
            h = jnp.maximum(h, 0.0)                     # ReLU in f32 (v5e-safe)
            if i + 1 < num_layers:
                h = h.astype(compute_dtype)
        tn = o_ref.shape[1]
        cout = h.shape[-1]
        # K (nsample) is a multiple of 8 in this model -> layout-preserving reshape.
        h = h.reshape(tn, nsample, cout)
        o_ref[0] = jnp.max(h, axis=1).astype(o_ref.dtype)

    return kernel


def grouped_mlp_maxpool(x, layers, *, tile_n=512, compute_dtype=jnp.bfloat16):
    """x: (B, S, K, Cin); layers: [(W(cin,cout), b(cout,)), ...] -> (B, S, Cout)."""
    B, S, K, Cin = x.shape
    tn = min(tile_n, S)
    assert S % tn == 0
    Cout = layers[-1][0].shape[1]
    # Flatten (S, K) -> S*K in HBM (contiguous => free) and stream as bf16.
    x_flat = x.reshape(B, S * K, Cin).astype(compute_dtype)
    wb_args, wb_specs = [], []
    for W, b in layers:
        wb_args += [W.astype(compute_dtype), b.reshape(1, -1).astype(jnp.float32)]
        wb_specs += [pl.BlockSpec(W.shape, lambda bi, ni: (0, 0)),
                     pl.BlockSpec((1, b.shape[0]), lambda bi, ni: (0, 0))]
    return pl.pallas_call(
        _make_grouped_mlp_kernel(len(layers), K, compute_dtype),
        out_shape=jax.ShapeDtypeStruct((B, S, Cout), jnp.float32),
        grid=(B, S // tn),                    # both axes parallel (megacore-friendly)
        in_specs=[pl.BlockSpec((1, tn * K, Cin), lambda bi, ni: (bi, ni, 0))] + wb_specs,
        out_specs=pl.BlockSpec((1, tn, Cout), lambda bi, ni: (bi, ni, 0)),
        compiler_params=pltpu.CompilerParams(
            dimension_semantics=("parallel", "parallel"),
            vmem_limit_bytes=_VMEM_LIMIT),
    )(x_flat, *wb_args)


# ----------------------------------------------------------------------------
# Plain-JAX glue: sequential / data-dependent ops (FPS, kNN top-k, gathers).
# ----------------------------------------------------------------------------
def furthest_point_sample(xyz, npoint):
    """xyz: (B, N, 3) -> (B, npoint) int32.  Matches pointnet2 FPS (seed index 0)."""
    # TODO(synk): serial data-dependent argmax loop kept in plain JAX; a
    #             VMEM-resident Pallas FPS would help at large N.
    def one(x):
        n = x.shape[0]

        def body(i, state):
            idxs, dists, last = state
            d = jnp.sum((x - x[last]) ** 2, axis=-1)
            dists = jnp.minimum(dists, d)
            nxt = jnp.argmax(dists).astype(jnp.int32)
            return idxs.at[i].set(nxt), dists, nxt

        idxs0 = jnp.zeros((npoint,), jnp.int32)
        dists0 = jnp.full((n,), 1e10, jnp.float32)
        idxs, _, _ = jax.lax.fori_loop(1, npoint, body,
                                       (idxs0, dists0, jnp.int32(0)))
        return idxs

    return jax.vmap(one)(xyz)


_gather = jax.vmap(lambda p, i: p[i])  # (N, C), (S, ...) -> (S, ..., C)


def pointnet_sa_module(params, xyz, label, points, npoint, nsample,
                       compute_dtype=jnp.bfloat16):
    """PointNetSaModule.forward (xyz_raw=None, knn grouping, pooling='max', mlp2=None)."""
    sample_idx = furthest_point_sample(xyz, npoint)
    new_xyz = _gather(xyz, sample_idx)                       # (B, npoint, 3)
    new_label = _gather(label, sample_idx)                   # (B, npoint, 3)
    sqr = pairwise_sqdist(new_xyz, xyz)                      # Pallas: (B, npoint, N)
    # TODO(synk): fuse a running top-nsample selection into the distance kernel to
    #             avoid materializing the (B, npoint, N) matrix at large N.
    _, knn_idx = jax.lax.top_k(-sqr, nsample)                # nsample nearest neighbors
    grouped_xyz = _gather(xyz, knn_idx)                      # (B, npoint, K, 3)
    xyz_diff = grouped_xyz - new_xyz[:, :, None, :]
    grouped_feat = _gather(points, knn_idx)                  # (B, npoint, K, C)
    new_points = jnp.concatenate([xyz_diff, grouped_feat], axis=-1)
    out = grouped_mlp_maxpool(new_points, params, compute_dtype=compute_dtype)
    return new_xyz, new_label, out, sample_idx


# ----------------------------------------------------------------------------
# Deterministic parameter init (Conv2d weight+bias with folded eval-mode BN).
# ----------------------------------------------------------------------------
def init_conv_bn(key, cin, cout, eps=1e-5):
    kw, kb, kg, kbt = jax.random.split(key, 4)
    w = jax.random.normal(kw, (cin, cout), jnp.float32) / jnp.sqrt(float(cin))
    b = 0.05 * jax.random.normal(kb, (cout,), jnp.float32)
    gamma = 1.0 + 0.1 * jax.random.normal(kg, (cout,), jnp.float32)
    beta = 0.05 * jax.random.normal(kbt, (cout,), jnp.float32)
    running_mean = jnp.zeros((cout,), jnp.float32)
    running_var = jnp.ones((cout,), jnp.float32)
    scale = gamma / jnp.sqrt(running_var + eps)
    return (w * scale[None, :], (b - running_mean) * scale + beta)


def init_sa_params(key, in_channels, mlp):
    keys = jax.random.split(key, len(mlp))
    layers, cin = [], in_channels + 3          # module prepends xyz_diff (3 dims)
    for k, cout in zip(keys, mlp):
        layers.append(init_conv_bn(k, cin, cout))
        cin = cout
    return layers


if __name__ == "__main__":
    key = jax.random.PRNGKey(0)
    B, N, C = 2, 256, 16
    npoint, nsample = 64, 16
    mlp = [32, 32, 64]

    k = jax.random.split(key, 4)
    xyz = jax.random.normal(k[0], (B, N, 3), jnp.float32)
    label = jax.random.normal(k[1], (B, N, 3), jnp.float32)
    points = jax.random.normal(k[2], (B, N, C), jnp.float32)
    params = init_sa_params(k[3], C, mlp)

    fwd = jax.jit(functools.partial(pointnet_sa_module, npoint=npoint, nsample=nsample))
    new_xyz, new_label, new_points, sample_idx = fwd(params, xyz, label, points)
    new_points = jax.block_until_ready(new_points)

    assert new_xyz.shape == (B, npoint, 3), new_xyz.shape
    assert new_label.shape == (B, npoint, 3), new_label.shape
    assert new_points.shape == (B, npoint, mlp[-1]), new_points.shape
    assert sample_idx.shape == (B, npoint), sample_idx.shape
    assert jnp.all(jnp.isfinite(new_points))
    print("KERNEL_OK")
</pallas_src>

<mosaic_0001>
module attributes {stable_mosaic.version = 11 : i64} {
  func.func @_sqdist_kernel(%arg0: i32, %arg1: i32, %arg2: i32, %arg3: memref<1x64x3xf32, #tpu.memory_space<vmem>>, %arg4: memref<1x3x256xf32, #tpu.memory_space<vmem>>, %arg5: memref<1x64x256xf32, #tpu.memory_space<vmem>>) attributes {dimension_semantics = [#tpu.dimension_semantics<parallel>, #tpu.dimension_semantics<parallel>, #tpu.dimension_semantics<parallel>], iteration_bounds = array<i64: 2, 1, 1>, scalar_prefetch = 0 : i64, scratch_operands = 0 : i64, tpu.core_type = #tpu.core_type<tc>, window_params = [{transform_indices = @transform_0, window_bounds = array<i64: 1, 64, 3>}, {transform_indices = @transform_1, window_bounds = array<i64: 1, 3, 256>}, {transform_indices = @transform_2, window_bounds = array<i64: 1, 64, 256>}]} {
    %c0 = arith.constant 0 : index
    %c0_0 = arith.constant 0 : index
    %c0_1 = arith.constant 0 : index
    %0 = vector.load %arg3[%c0, %c0_0, %c0_1] : memref<1x64x3xf32, #tpu.memory_space<vmem>>, vector<1x64x3xf32>
    %1 = vector.shape_cast %0 : vector<1x64x3xf32> to vector<64x3xf32>
    %c0_2 = arith.constant 0 : index
    %c0_3 = arith.constant 0 : index
    %c0_4 = arith.constant 0 : index
    %2 = vector.load %arg4[%c0_2, %c0_3, %c0_4] : memref<1x3x256xf32, #tpu.memory_space<vmem>>, vector<1x3x256xf32>
    %3 = vector.shape_cast %2 : vector<1x3x256xf32> to vector<3x256xf32>
    %cst = arith.constant 0.000000e+00 : f32
    %4 = vector.broadcast %cst : f32 to vector<64x256xf32>
    %5 = vector.extract_strided_slice %1 {offsets = [0, 0], sizes = [64, 1], strides = [1, 1]} : vector<64x3xf32> to vector<64x1xf32>
    %6 = vector.extract_strided_slice %3 {offsets = [0, 0], sizes = [1, 256], strides = [1, 1]} : vector<3x256xf32> to vector<1x256xf32>
    %7 = vector.broadcast %5 : vector<64x1xf32> to vector<64x256xf32>
    %8 = vector.broadcast %6 : vector<1x256xf32> to vector<64x256xf32>
    %9 = arith.subf %7, %8 : vector<64x256xf32>
    %10 = arith.mulf %9, %9 : vector<64x256xf32>
    %11 = arith.addf %4, %10 : vector<64x256xf32>
    %12 = vector.extract_strided_slice %1 {offsets = [0, 1], sizes = [64, 1], strides = [1, 1]} : vector<64x3xf32> to vector<64x1xf32>
    %13 = vector.extract_strided_slice %3 {offsets = [1, 0], sizes = [1, 256], strides = [1, 1]} : vector<3x256xf32> to vector<1x256xf32>
    %14 = vector.broadcast %12 : vector<64x1xf32> to vector<64x256xf32>
    %15 = vector.broadcast %13 : vector<1x256xf32> to vector<64x256xf32>
    %16 = arith.subf %14, %15 : vector<64x256xf32>
    %17 = arith.mulf %16, %16 : vector<64x256xf32>
    %18 = arith.addf %11, %17 : vector<64x256xf32>
    %19 = vector.extract_strided_slice %1 {offsets = [0, 2], sizes = [64, 1], strides = [1, 1]} : vector<64x3xf32> to vector<64x1xf32>
    %20 = vector.extract_strided_slice %3 {offsets = [2, 0], sizes = [1, 256], strides = [1, 1]} : vector<3x256xf32> to vector<1x256xf32>
    %21 = vector.broadcast %19 : vector<64x1xf32> to vector<64x256xf32>
    %22 = vector.broadcast %20 : vector<1x256xf32> to vector<64x256xf32>
    %23 = arith.subf %21, %22 : vector<64x256xf32>
    %24 = arith.mulf %23, %23 : vector<64x256xf32>
    %25 = arith.addf %18, %24 : vector<64x256xf32>
    %c0_5 = arith.constant 0 : index
    %c0_6 = arith.constant 0 : index
    %c0_7 = arith.constant 0 : index
    %26 = vector.load %arg5[%c0_5, %c0_6, %c0_7] : memref<1x64x256xf32, #tpu.memory_space<vmem>>, vector<1x64x256xf32>
    %27 = vector.shape_cast %26 : vector<1x64x256xf32> to vector<64x256xf32>
    %28 = vector.shape_cast %25 : vector<64x256xf32> to vector<1x64x256xf32>
    tpu.vector_store %arg5[%c0_5, %c0_6, %c0_7], %28 {strides = array<i32>} : memref<1x64x256xf32, #tpu.memory_space<vmem>>, vector<1x64x256xf32>,
    return
  }
  func.func @transform_0(%arg0: i32, %arg1: i32, %arg2: i32) -> (i32, i32, i32) {
    %c0_i32 = arith.constant 0 : i32
    %c0_i32_0 = arith.constant 0 : i32
    return %arg0, %arg1, %c0_i32 : i32, i32, i32
  }
  func.func @transform_1(%arg0: i32, %arg1: i32, %arg2: i32) -> (i32, i32, i32) {
    %c0_i32 = arith.constant 0 : i32
    %c0_i32_0 = arith.constant 0 : i32
    return %arg0, %c0_i32, %arg2 : i32, i32, i32
  }
  func.func @transform_2(%arg0: i32, %arg1: i32, %arg2: i32) -> (i32, i32, i32) {
    %c0_i32 = arith.constant 0 : i32
    return %arg0, %arg1, %arg2 : i32, i32, i32
  }
}

module attributes {stable_mosaic.version = 11 : i64} {
  func.func @kernel(%arg0: i32, %arg1: i32, %arg2: memref<1x1024x19xbf16, #tpu.memory_space<vmem>>, %arg3: memref<19x32xbf16, #tpu.memory_space<vmem>>, %arg4: memref<1x32xf32, #tpu.memory_space<vmem>>, %arg5: memref<32x32xbf16, #tpu.memory_space<vmem>>, %arg6: memref<1x32xf32, #tpu.memory_space<vmem>>, %arg7: memref<32x64xbf16, #tpu.memory_space<vmem>>, %arg8: memref<1x64xf32, #tpu.memory_space<vmem>>, %arg9: memref<1x64x64xf32, #tpu.memory_space<vmem>>) attributes {dimension_semantics = [#tpu.dimension_semantics<parallel>, #tpu.dimension_semantics<parallel>], iteration_bounds = array<i64: 2, 1>, scalar_prefetch = 0 : i64, scratch_operands = 0 : i64, tpu.core_type = #tpu.core_type<tc>, window_params = [{transform_indices = @transform_0, window_bounds = array<i64: 1, 1024, 19>}, {pipeline_mode = #tpu.pipeline_mode<synchronous>, transform_indices = @transform_1, window_bounds = array<i64: 19, 32>}, {pipeline_mode = #tpu.pipeline_mode<synchronous>, transform_indices = @transform_2, window_bounds = array<i64: 1, 32>}, {pipeline_mode = #tpu.pipeline_mode<synchronous>, transform_indices = @transform_3, window_bounds = array<i64: 32, 32>}, {pipeline_mode = #tpu.pipeline_mode<synchronous>, transform_indices = @transform_4, window_bounds = array<i64: 1, 32>}, {pipeline_mode = #tpu.pipeline_mode<synchronous>, transform_indices = @transform_5, window_bounds = array<i64: 32, 64>}, {pipeline_mode = #tpu.pipeline_mode<synchronous>, transform_indices = @transform_6, window_bounds = array<i64: 1, 64>}, {transform_indices = @transform_7, window_bounds = array<i64: 1, 64, 64>}]} {
    %c0 = arith.constant 0 : index
    %c0_0 = arith.constant 0 : index
    %c0_1 = arith.constant 0 : index
    %0 = vector.load %arg2[%c0, %c0_0, %c0_1] : memref<1x1024x19xbf16, #tpu.memory_space<vmem>>, vector<1x1024x19xbf16>
    %1 = vector.shape_cast %0 : vector<1x1024x19xbf16> to vector<1024x19xbf16>
    %c0_2 = arith.constant 0 : index
    %c0_3 = arith.constant 0 : index
    %2 = vector.load %arg3[%c0_2, %c0_3] : memref<19x32xbf16, #tpu.memory_space<vmem>>, vector<19x32xbf16>
    %c0_4 = arith.constant 0 : index
    %c0_5 = arith.constant 0 : index
    %3 = vector.load %arg4[%c0_4, %c0_5] : memref<1x32xf32, #tpu.memory_space<vmem>>, vector<1x32xf32>
    %cst = arith.constant dense<0.000000e+00> : vector<1024x32xf32>
    %4 = tpu.matmul %1, %2, %cst {dimension_numbers = #tpu.dot_dimension_numbers<[1], [0], [0], [1], [0, 0, 1, 1], [], []>} : vector<1024x19xbf16>, vector<19x32xbf16>, vector<1024x32xf32> -> vector<1024x32xf32>
    %5 = vector.broadcast %3 : vector<1x32xf32> to vector<1024x32xf32>
    %6 = arith.addf %4, %5 : vector<1024x32xf32>
    %cst_6 = arith.constant 0.000000e+00 : f32
    %7 = vector.broadcast %cst_6 : f32 to vector<1024x32xf32>
    %8 = arith.maximumf %6, %7 : vector<1024x32xf32>
    %9 = arith.truncf %8 : vector<1024x32xf32> to vector<1024x32xbf16>
    %c0_7 = arith.constant 0 : index
    %c0_8 = arith.constant 0 : index
    %10 = vector.load %arg5[%c0_7, %c0_8] : memref<32x32xbf16, #tpu.memory_space<vmem>>, vector<32x32xbf16>
    %c0_9 = arith.constant 0 : index
    %c0_10 = arith.constant 0 : index
    %11 = vector.load %arg6[%c0_9, %c0_10] : memref<1x32xf32, #tpu.memory_space<vmem>>, vector<1x32xf32>
    %cst_11 = arith.constant dense<0.000000e+00> : vector<1024x32xf32>
    %12 = tpu.matmul %9, %10, %cst_11 {dimension_numbers = #tpu.dot_dimension_numbers<[1], [0], [0], [1], [0, 0, 1, 1], [], []>} : vector<1024x32xbf16>, vector<32x32xbf16>, vector<1024x32xf32> -> vector<1024x32xf32>
    %13 = vector.broadcast %11 : vector<1x32xf32> to vector<1024x32xf32>
    %14 = arith.addf %12, %13 : vector<1024x32xf32>
    %cst_12 = arith.constant 0.000000e+00 : f32
    %15 = vector.broadcast %cst_12 : f32 to vector<1024x32xf32>
    %16 = arith.maximumf %14, %15 : vector<1024x32xf32>
    %17 = arith.truncf %16 : vector<1024x32xf32> to vector<1024x32xbf16>
    %c0_13 = arith.constant 0 : index
    %c0_14 = arith.constant 0 : index
    %18 = vector.load %arg7[%c0_13, %c0_14] : memref<32x64xbf16, #tpu.memory_space<vmem>>, vector<32x64xbf16>
    %c0_15 = arith.constant 0 : index
    %c0_16 = arith.constant 0 : index
    %19 = vector.load %arg8[%c0_15, %c0_16] : memref<1x64xf32, #tpu.memory_space<vmem>>, vector<1x64xf32>
    %cst_17 = arith.constant dense<0.000000e+00> : vector<1024x64xf32>
    %20 = tpu.matmul %17, %18, %cst_17 {dimension_numbers = #tpu.dot_dimension_numbers<[1], [0], [0], [1], [0, 0, 1, 1], [], []>} : vector<1024x32xbf16>, vector<32x64xbf16>, vector<1024x64xf32> -> vector<1024x64xf32>
    %21 = vector.broadcast %19 : vector<1x64xf32> to vector<1024x64xf32>
    %22 = arith.addf %20, %21 : vector<1024x64xf32>
    %cst_18 = arith.constant 0.000000e+00 : f32
    %23 = vector.broadcast %cst_18 : f32 to vector<1024x64xf32>
    %24 = arith.maximumf %22, %23 : vector<1024x64xf32>
    %25 = vector.shape_cast %24 : vector<1024x64xf32> to vector<64x16x64xf32>
    %cst_19 = arith.constant dense<0xFF800000> : vector<64x64xf32>
    %26 = vector.multi_reduction <maximumf>, %25, %cst_19 [1] : vector<64x16x64xf32> to vector<64x64xf32>
    %c0_20 = arith.constant 0 : index
    %c0_21 = arith.constant 0 : index
    %c0_22 = arith.constant 0 : index
    %27 = vector.load %arg9[%c0_20, %c0_21, %c0_22] : memref<1x64x64xf32, #tpu.memory_space<vmem>>, vector<1x64x64xf32>
    %28 = vector.shape_cast %27 : vector<1x64x64xf32> to vector<64x64xf32>
    %29 = vector.shape_cast %26 : vector<64x64xf32> to vector<1x64x64xf32>
    tpu.vector_store %arg9[%c0_20, %c0_21, %c0_22], %29 {strides = array<i32>} : memref<1x64x64xf32, #tpu.memory_space<vmem>>, vector<1x64x64xf32>,
    return
  }
  func.func @transform_0(%arg0: i32, %arg1: i32) -> (i32, i32, i32) {
    %c0_i32 = arith.constant 0 : i32
    %c0_i32_0 = arith.constant 0 : i32
    return %arg0, %arg1, %c0_i32 : i32, i32, i32
  }
  func.func @transform_1(%arg0: i32, %arg1: i32) -> (i32, i32) {
    %c0_i32 = arith.constant 0 : i32
    %c0_i32_0 = arith.constant 0 : i32
    %c0_i32_1 = arith.constant 0 : i32
    return %c0_i32, %c0_i32_0 : i32, i32
  }
  func.func @transform_2(%arg0: i32, %arg1: i32) -> (i32, i32) {
    %c0_i32 = arith.constant 0 : i32
    %c0_i32_0 = arith.constant 0 : i32
    %c0_i32_1 = arith.constant 0 : i32
    return %c0_i32, %c0_i32_0 : i32, i32
  }
  func.func @transform_3(%arg0: i32, %arg1: i32) -> (i32, i32) {
    %c0_i32 = arith.constant 0 : i32
    %c0_i32_0 = arith.constant 0 : i32
    %c0_i32_1 = arith.constant 0 : i32
    return %c0_i32, %c0_i32_0 : i32, i32
  }
  func.func @transform_4(%arg0: i32, %arg1: i32) -> (i32, i32) {
    %c0_i32 = arith.constant 0 : i32
    %c0_i32_0 = arith.constant 0 : i32
    %c0_i32_1 = arith.constant 0 : i32
    return %c0_i32, %c0_i32_0 : i32, i32
  }
  func.func @transform_5(%arg0: i32, %arg1: i32) -> (i32, i32) {
    %c0_i32 = arith.constant 0 : i32
    %c0_i32_0 = arith.constant 0 : i32
    %c0_i32_1 = arith.constant 0 : i32
    return %c0_i32, %c0_i32_0 : i32, i32
  }
  func.func @transform_6(%arg0: i32, %arg1: i32) -> (i32, i32) {
    %c0_i32 = arith.constant 0 : i32
    %c0_i32_0 = arith.constant 0 : i32
    %c0_i32_1 = arith.constant 0 : i32
    return %c0_i32, %c0_i32_0 : i32, i32
  }
  func.func @transform_7(%arg0: i32, %arg1: i32) -> (i32, i32, i32) {
    %c0_i32 = arith.constant 0 : i32
    %c0_i32_0 = arith.constant 0 : i32
    return %arg0, %arg1, %c0_i32 : i32, i32, i32
  }
}

</mosaic_0001>

<llo_original>
// kernel: custom-call.10
$region0: #{custom-call.10}
  %s0 = inlined_call_operand.vmem [shape: f32[2,256], index: 0, kind: output, shape index: {}]

// kernel: neg.1
$region0: #{neg.1}
  #allocation0 [shape = 's32[1]{0}', space=sflag, size = 0x4, scoped, tag = 'scoped memory for neg.1']
  %s0 = inlined_call_operand.vmem [shape: f32[2,64,256], index: 0, kind: input, shape index: {}]
  %s1 = inlined_call_operand.vmem [shape: f32[2,64,256], index: 1, kind: output, shape index: {}]
  %v2 = vld [vmem:[%s0] sm:$0xff]
  %3 = xla_tuple %v2
  %4 = xla_tuple %3
  %v5 = vxor.u32 %v2, 2147483648
  %6 = xla_tuple %v5
  %7 = vst [vmem:[%s1] sm:$0xff] %v5
  %s8 = scalar_lea.vmem %s0, 128
  %v9 = vld [vmem:[%s8] sm:$0xff]
  %10 = xla_tuple %v9
  %11 = xla_tuple %10
  %v12 = vxor.u32 %v9, 2147483648
  %13 = xla_tuple %v12
  %s14 = scalar_lea.vmem %s1, 128
  %15 = vst [vmem:[%s14] sm:$0xff] %v12
  %s16 = scalar_lea.vmem %s0, 16
  %v17 = vld [vmem:[%s16] sm:$0xff]
  %18 = xla_tuple %v17
  %19 = xla_tuple %18
  %v20 = vxor.u32 %v17, 2147483648
  %21 = xla_tuple %v20
  %s22 = scalar_lea.vmem %s1, 16
  %23 = vst [vmem:[%s22] sm:$0xff] %v20
  %s24 = scalar_lea.vmem %s0, 144
  %v25 = vld [vmem:[%s24] sm:$0xff]
  %26 = xla_tuple %v25
  %27 = xla_tuple %26
  %v28 = vxor.u32 %v25, 2147483648
  %29 = xla_tuple %v28
  %s30 = scalar_lea.vmem %s1, 144
  %31 = vst [vmem:[%s30] sm:$0xff] %v28
  %s32 = scalar_lea.vmem %s0, 32
  %v33 = vld [vmem:[%s32] sm:$0xff]
  %34 = xla_tuple %v33
  %35 = xla_tuple %34
  %v36 = vxor.u32 %v33, 2147483648
  %37 = xla_tuple %v36
  %s38 = scalar_lea.vmem %s1, 32
  %39 = vst [vmem:[%s38] sm:$0xff] %v36
  %s40 = scalar_lea.vmem %s0, 160
  %v41 = vld [vmem:[%s40] sm:$0xff]
  %42 = xla_tuple %v41
  %43 = xla_tuple %42
  %v44 = vxor.u32 %v41, 2147483648
  %45 = xla_tuple %v44
  %s46 = scalar_lea.vmem %s1, 160
  %47 = vst [vmem:[%s46] sm:$0xff] %v44
  %s48 = scalar_lea.vmem %s0, 48
  %v49 = vld [vmem:[%s48] sm:$0xff]
  %50 = xla_tuple %v49
  %51 = xla_tuple %50
  %v52 = vxor.u32 %v49, 2147483648
  %53 = xla_tuple %v52
  %s54 = scalar_lea.vmem %s1, 48
  %55 = vst [vmem:[%s54] sm:$0xff] %v52
  %s56 = scalar_lea.vmem %s0, 176
  %v57 = vld [vmem:[%s56] sm:$0xff]
  %58 = xla_tuple %v57
  %59 = xla_tuple %58
  %v60 = vxor.u32 %v57, 2147483648
  %61 = xla_tuple %v60
  %s62 = scalar_lea.vmem %s1, 176
  %63 = vst [vmem:[%s62] sm:$0xff] %v60
  %s64 = scalar_lea.vmem %s0, 64
  %v65 = vld [vmem:[%s64] sm:$0xff]
  %66 = xla_tuple %v65
  %67 = xla_tuple %66
  %v68 = vxor.u32 %v65, 2147483648
  %69 = xla_tuple %v68
  %s70 = scalar_lea.vmem %s1, 64
  %71 = vst [vmem:[%s70] sm:$0xff] %v68
  %s72 = scalar_lea.vmem %s0, 192
  %v73 = vld [vmem:[%s72] sm:$0xff]
  %74 = xla_tuple %v73
  %75 = xla_tuple %74
  %v76 = vxor.u32 %v73, 2147483648
  %77 = xla_tuple %v76
  %s78 = scalar_lea.vmem %s1, 192
  %79 = vst [vmem:[%s78] sm:$0xff] %v76
  %s80 = scalar_lea.vmem %s0, 80
  %v81 = vld [vmem:[%s80] sm:$0xff]
  %82 = xla_tuple %v81
  %83 = xla_tuple %82
  %v84 = vxor.u32 %v81, 2147483648
  %85 = xla_tuple %v84
  %s86 = scalar_lea.vmem %s1, 80
  %87 = vst [vmem:[%s86] sm:$0xff] %v84
  %s88 = scalar_lea.vmem %s0, 208
  %v89 = vld [vmem:[%s88] sm:$0xff]
  %90 = xla_tuple %v89
  %91 = xla_tuple %90
  %v92 = vxor.u32 %v89, 2147483648
  %93 = xla_tuple %v92
  %s94 = scalar_lea.vmem %s1, 208
  %95 = vst [vmem:[%s94] sm:$0xff] %v92
  %s96 = scalar_lea.vmem %s0, 96
  %v97 = vld [vmem:[%s96] sm:$0xff]
  %98 = xla_tuple %v97
  %99 = xla_tuple %98
  %v100 = vxor.u32 %v97, 2147483648
  %101 = xla_tuple %v100
  %s102 = scalar_lea.vmem %s1, 96
  %103 = vst [vmem:[%s102] sm:$0xff] %v100
  %s104 = scalar_lea.vmem %s0, 224
  %v105 = vld [vmem:[%s104] sm:$0xff]
  %106 = xla_tuple %v105
  %107 = xla_tuple %106
  %v108 = vxor.u32 %v105, 2147483648
  %109 = xla_tuple %v108
  %s110 = scalar_lea.vmem %s1, 224
  %111 = vst [vmem:[%s110] sm:$0xff] %v108
  %s112 = scalar_lea.vmem %s0, 112
  %v113 = vld [vmem:[%s112] sm:$0xff]
  %114 = xla_tuple %v113
  %115 = xla_tuple %114
  %v116 = vxor.u32 %v113, 2147483648
  %117 = xla_tuple %v116
  %s118 = scalar_lea.vmem %s1, 112
  %119 = vst [vmem:[%s118] sm:$0xff] %v116
  %s120 = scalar_lea.vmem %s0, 240
  %v121 = vld [vmem:[%s120] sm:$0xff]
  %122 = xla_tuple %v121
  %123 = xla_tuple %122
  %v124 = vxor.u32 %v121, 2147483648
  %125 = xla_tuple %v124
  %s126 = scalar_lea.vmem %s1, 240
  %127 = vst [vmem:[%s126] sm:$0xff] %v124
  %s128 = scalar_lea.vmem %s0, 8
  %v129 = vld [vmem:[%s128] sm:$0xff]
  %130 = xla_tuple %v129
  %131 = xla_tuple %130
  %v132 = vxor.u32 %v129, 2147483648
  %133 = xla_tuple %v132
  %s134 = scalar_lea.vmem %s1, 8
  %135 = vst [vmem:[%s134] sm:$0xff] %v132
  %s136 = scalar_lea.vmem %s0, 136
  %v137 = vld [vmem:[%s136] sm:$0xff]
  %138 = xla_tuple %v137
  %139 = xla_tuple %138
  %v140 = vxor.u32 %v137, 2147483648
  %141 = xla_tuple %v140
  %s142 = scalar_lea.vmem %s1, 136
  %143 = vst [vmem:[%s142] sm:$0xff] %v140
  %s144 = scalar_lea.vmem %s0, 24
  %v145 = vld [vmem:[%s144] sm:$0xff]
  %146 = xla_tuple %v145
  %147 = xla_tuple %146
  %v148 = vxor.u32 %v145, 2147483648
  %149 = xla_tuple %v148
  %s150 = scalar_lea.vmem %s1, 24
  %151 = vst [vmem:[%s150] sm:$0xff] %v148
  %s152 = scalar_lea.vmem %s0, 152
  %v153 = vld [vmem:[%s152] sm:$0xff]
  %154 = xla_tuple %v153
  %155 = xla_tuple %154
  %v156 = vxor.u32 %v153, 2147483648
  %157 = xla_tuple %v156
  %s158 = scalar_lea.vmem %s1, 152
  %159 = vst [vmem:[%s158] sm:$0xff] %v156
  %s160 = scalar_lea.vmem %s0, 40
  %v161 = vld [vmem:[%s160] sm:$0xff]
  %162 = xla_tuple %v161
  %163 = xla_tuple %162
  %v164 = vxor.u32 %v161, 2147483648
  %165 = xla_tuple %v164
  %s166 = scalar_lea.vmem %s1, 40
  %167 = vst [vmem:[%s166] sm:$0xff] %v164
  %s168 = scalar_lea.vmem %s0, 168
  %v169 = vld [vmem:[%s168] sm:$0xff]
  %170 = xla_tuple %v169
  %171 = xla_tuple %170
  %v172 = vxor.u32 %v169, 2147483648
  %173 = xla_tuple %v172
  %s174 = scalar_lea.vmem %s1, 168
  %175 = vst [vmem:[%s174] sm:$0xff] %v172
  %s176 = scalar_lea.vmem %s0, 56
  %v177 = vld [vmem:[%s176] sm:$0xff]
  %178 = xla_tuple %v177
  %179 = xla_tuple %178
  %v180 = vxor.u32 %v177, 2147483648
  %181 = xla_tuple %v180
  %s182 = scalar_lea.vmem %s1, 56
  %183 = vst [vmem:[%s182] sm:$0xff] %v180
  %s184 = scalar_lea.vmem %s0, 184
  %v185 = vld [vmem:[%s184] sm:$0xff]
  %186 = xla_tuple %v185
  %187 = xla_tuple %186
  %v188 = vxor.u32 %v185, 2147483648
  %189 = xla_tuple %v188
  %s190 = scalar_lea.vmem %s1, 184
  %191 = vst [vmem:[%s190] sm:$0xff] %v188
  %s192 = scalar_lea.vmem %s0, 72
  %v193 = vld [vmem:[%s192] sm:$0xff]
  %194 = xla_tuple %v193
  %195 = xla_tuple %194
  %v196 = vxor.u32 %v193, 2147483648
  %197 = xla_tuple %v196
  %s198 = scalar_lea.vmem %s1, 72
  %199 = vst [vmem:[%s198] sm:$0xff] %v196
  %s200 = scalar_lea.vmem %s0, 200
  %v201 = vld [vmem:[%s200] sm:$0xff]
  %202 = xla_tuple %v201
  %203 = xla_tuple %202
  %v204 = vxor.u32 %v201, 2147483648
  %205 = xla_tuple %v204
  %s206 = scalar_lea.vmem %s1, 200
  %207 = vst [vmem:[%s206] sm:$0xff] %v204
  %s208 = scalar_lea.vmem %s0, 88
  %v209 = vld [vmem:[%s208] sm:$0xff]
  %210 = xla_tuple %v209
  %211 = xla_tuple %210
  %v212 = vxor.u32 %v209, 2147483648
  %213 = xla_tuple %v212
  %s214 = scalar_lea.vmem %s1, 88
  %215 = vst [vmem:[%s214] sm:$0xff] %v212
  %s216 = scalar_lea.vmem %s0, 216
  %v217 = vld [vmem:[%s216] sm:$0xff]
  %218 = xla_tuple %v217
  %219 = xla_tuple %218
  %v220 = vxor.u32 %v217, 2147483648
  %221 = xla_tuple %v220
  %s222 = scalar_lea.vmem %s1, 216
  %223 = vst [vmem:[%s222] sm:$0xff] %v220
  %s224 = scalar_lea.vmem %s0, 104
  %v225 = vld [vmem:[%s224] sm:$0xff]
  %226 = xla_tuple %v225
  %227 = xla_tuple %226
  %v228 = vxor.u32 %v225, 2147483648
  %229 = xla_tuple %v228
  %s230 = scalar_lea.vmem %s1, 104
  %231 = vst [vmem:[%s230] sm:$0xff] %v228
  %s232 = scalar_lea.vmem %s0, 232
  %v233 = vld [vmem:[%s232] sm:$0xff]
  %234 = xla_tuple %v233
  %235 = xla_tuple %234
  %v236 = vxor.u32 %v233, 2147483648
  %237 = xla_tuple %v236
  %s238 = scalar_lea.vmem %s1, 232
  %239 = vst [vmem:[%s238] sm:$0xff] %v236
  %s240 = scalar_lea.vmem %s0, 120
  %v241 = vld [vmem:[%s240] sm:$0xff]
  %242 = xla_tuple %v241
  %243 = xla_tuple %242
  %v244 = vxor.u32 %v241, 2147483648
  %245 = xla_tuple %v244
  %s246 = scalar_lea.vmem %s1, 120
  %247 = vst [vmem:[%s246] sm:$0xff] %v244
  %s248 = scalar_lea.vmem %s0, 248
  %v249 = vld [vmem:[%s248] sm:$0xff]
  %250 = xla_tuple %v249
  %251 = xla_tuple %250
  %v252 = vxor.u32 %v249, 2147483648
  %253 = xla_tuple %v252
  %s254 = scalar_lea.vmem %s1, 248
  %255 = vst [vmem:[%s254] sm:$0xff] %v252

// kernel: pointnet_sa_module.2
$region0: #{pointnet_sa_module.2}
  #allocation0 [shape = 'u32[]', space=smem, size = 0x4, offset = 0x4, fixed_abs, tag = 'smem constant byte address 0x4 - core index']
  #allocation1 [shape = 'u32[72,128]{1,0:T(1,128)}', space=vmem, size = 0x9000, scoped, tag = 'internal scratch']
  %s0 = inlined_call_operand.vmem [shape: f32[2,64,3], index: 0, kind: input, shape index: {}]
  %s1 = inlined_call_operand.vmem [shape: f32[2,3,256], index: 1, kind: input, shape index: {}]
  %s2 = inlined_call_operand.vmem [shape: f32[2,64,256], index: 2, kind: output, shape index: {}]
  %s3 = sld [smem:[#allocation0]]
  $region41: #{pointnet_sa_module.2} parent=0
    _
  %s5 = ssub.s32 1, %s3
  %s6 = scalar_select 0, %s5, %s3
  loop: start=0, step=1, limit=4
  $region2: #{pointnet_sa_module.2} parent=0 // loop_pre_header
    _
  $region3: #{pointnet_sa_module.2} parent=0 // loop_header
    %s8 = sphi 0, %s12
    %p9 = scmp.ge.s32.totalorder %s8, 4
    %s15 = sphi 0, %s34
    %s16 = sphi 0, %s30
    %s17 = sphi 0, %s26
    %s18 = sphi 0, %s15
    %s19 = sphi 0, %s16
    %s20 = sphi 0, %s17
    %s21 = sphi 0, %s18
    %s22 = sphi 0, %s19
    %s23 = sphi 0, %s20
    %s39 = sphi 0, %s41
    %s42 = sphi 0, %s39
    %s43 = sphi 0, %s42
    %s59 = sphi 0, %s43
    %s67 = sphi 0, %s69
    %s70 = sphi 0, %s67
    %s71 = sphi 0, %s70
    %s87 = sphi 0, %s71
    %s97 = sphi 0, %s99
    %s100 = sphi 0, %s97
    %s101 = sphi 0, %s100
    %s117 = sphi 0, %s101
  $region4: #{pointnet_sa_module.2} parent=0 // loop_header_branch
    %11 = sbr.rel (%p9) target = $region8
  $region5: #{pointnet_sa_module.2} parent=0 // loop_body
    %s13 = ssub.s32 %s8, 1
    %s14 = ssub.s32 %s8, 2
    %s24 = sadd.s32 1, %s17
    %p25 = scmp.ge.s32.totalorder %s24, 1
    %s26 = scalar_select %p25, 0, %s24
    %s27 = sadd.s32 1, %s16
    %s28 = scalar_select %p25, %s27, %s16
    %p29 = scmp.ge.s32.totalorder %s28, 1
    %s30 = scalar_select %p29, 0, %s28
    %s31 = sadd.s32 1, %s15
    %s32 = scalar_select %p29, %s31, %s15
    %p33 = scmp.ge.s32.totalorder %s32, 2
    %s34 = scalar_select %p33, 0, %s32
    %s35 = ssub.s32 %s15, %s34
    %s36 = ssub.s32 %s16, %s30
    %s37 = sor.u32 %s35, %s36
    %p38 = scmp.eq.s32.totalorder %s37, 0
    %s40 = sadd.s32 %s39, 1
    %s41 = scalar_select %p38, %s39, %s40
    %p44 = pneg %p38
    %p45 = scmp.eq.s32.totalorder %s8, 1
    %p46 = por %p44, %p45
    %p47 = scmp.ne.s32.totalorder %s39, %s42
    %p48 = scmp.eq.s32.totalorder %s8, 0
    %p49 = por %p47, %p48
    %p50 = scmp.ne.s32.totalorder %s39, %s42
    %p51 = scmp.eq.s32.totalorder %s13, 1
    %p52 = por %p50, %p51
    %p53 = scmp.ne.s32.totalorder %s42, %s43
    %p54 = scmp.eq.s32.totalorder %s13, 0
    %p55 = por %p53, %p54
    %p56 = scmp.ne.s32.totalorder %s42, %s43
    %p57 = scmp.eq.s32.totalorder %s14, 1
    %p58 = por %p56, %p57
    %p60 = scmp.ne.s32.totalorder %s43, %s59
    %p61 = scmp.eq.s32.totalorder %s14, 0
    %p62 = por %p60, %p61
    %s63 = ssub.s32 %s15, %s34
    %s64 = ssub.s32 %s17, %s26
    %s65 = sor.u32 %s63, %s64
    %p66 = scmp.eq.s32.totalorder %s65, 0
    %s68 = sadd.s32 %s67, 1
    %s69 = scalar_select %p66, %s67, %s68
    %p72 = pneg %p66
    %p73 = scmp.eq.s32.totalorder %s8, 1
    %p74 = por %p72, %p73
    %p75 = scmp.ne.s32.totalorder %s67, %s70
    %p76 = scmp.eq.s32.totalorder %s8, 0
    %p77 = por %p75, %p76
    %p78 = scmp.ne.s32.totalorder %s67, %s70
    %p79 = scmp.eq.s32.totalorder %s13, 1
    %p80 = por %p78, %p79
    %p81 = scmp.ne.s32.totalorder %s70, %s71
    %p82 = scmp.eq.s32.totalorder %s13, 0
    %p83 = por %p81, %p82
    %p84 = scmp.ne.s32.totalorder %s70, %s71
    %p85 = scmp.eq.s32.totalorder %s14, 1
    %p86 = por %p84, %p85
    %p88 = scmp.ne.s32.totalorder %s71, %s87
    %p89 = scmp.eq.s32.totalorder %s14, 0
    %p90 = por %p88, %p89
    %s91 = ssub.s32 %s15, %s34
    %s92 = ssub.s32 %s16, %s30
    %s93 = sor.u32 %s91, %s92
    %s94 = ssub.s32 %s17, %s26
    %s95 = sor.u32 %s93, %s94
    %p96 = scmp.eq.s32.totalorder %s95, 0
    %s98 = sadd.s32 %s97, 1
    %s99 = scalar_select %p96, %s97, %s98
    %p102 = pneg %p96
    %p103 = scmp.eq.s32.totalorder %s8, 1
    %p104 = por %p102, %p103
    %p105 = scmp.ne.s32.totalorder %s97, %s100
    %p106 = scmp.eq.s32.totalorder %s8, 0
    %p107 = por %p105, %p106
    %p108 = scmp.ne.s32.totalorder %s97, %s100
    %p109 = scmp.eq.s32.totalorder %s13, 1
    %p110 = por %p108, %p109
    %p111 = scmp.ne.s32.totalorder %s100, %s101
    %p112 = scmp.eq.s32.totalorder %s13, 0
    %p113 = por %p111, %p112
    %p114 = scmp.ne.s32.totalorder %s100, %s101
    %p115 = scmp.eq.s32.totalorder %s14, 1
    %p116 = por %p114, %p115
    %p118 = scmp.ne.s32.totalorder %s101, %s117
    %p119 = scmp.eq.s32.totalorder %s14, 0
    %p120 = por %p118, %p119
    %p121 = scmp.le.s32.totalorder 1, %s8
    %p122 = scmp.lt.s32.totalorder %s8, 3
    %p123 = pnand %p121, %p122
    %p124 = pneg %p123
    // Predicated region
    $region9: #{pointnet_sa_module.2} parent=5 // pred_check
      _
    $region10: #{pointnet_sa_module.2} parent=5 // pred_check_branch
      %126 = sbr.rel (%p123) target = $region12
    $region11: #{pointnet_sa_module.2} parent=5 // pred_region
      %s127 = ssub.s32 %s8, 1
    $region12: #{pointnet_sa_module.2} parent=5 // pred_fallthru
      _
    %p128 = scmp.lt.s32.totalorder %s8, 2
    // Predicated region
    $region13: #{pointnet_sa_module.2} parent=5 // pred_check
      %p129 = pneg %p128
    $region14: #{pointnet_sa_module.2} parent=5 // pred_check_branch
      %131 = sbr.rel (%p129) target = $region16
    $region15: #{pointnet_sa_module.2} parent=5 // pred_region
      // Predicated region
      $region17: #{pointnet_sa_module.2} parent=15 // pred_check
        %p132 = pneg %p49
      $region18: #{pointnet_sa_module.2} parent=15 // pred_check_branch
        %134 = sbr.rel (%p132) target = $region20
      $region19: #{pointnet_sa_module.2} parent=15 // pred_region
        %s135 = smul.u32 8, %s16
        %p136 = scmp.lt.s32.totalorder %s15, 1
        %s137 = scalar_select %p136, %s15, 1
        %p138 = scmp.lt.s32.totalorder %s135, 7
        %s139 = scalar_select %p138, %s135, 7
        %s140 = smul.addr %s137, 8
        %s141 = sadd.s32 %s139, %s140
        %s142 = smul.addr %s141, 8
        %s143 = scalar_lea.vmem %s0, %s142
        %s144 = smul.u32 8, %s16
      $region20: #{pointnet_sa_module.2} parent=15 // pred_fallthru
        _
      // Predicated region
      $region21: #{pointnet_sa_module.2} parent=15 // pred_check
        %p145 = pneg %p77
      $region22: #{pointnet_sa_module.2} parent=15 // pred_check_branch
        %147 = sbr.rel (%p145) target = $region24
      $region23: #{pointnet_sa_module.2} parent=15 // pred_region
        %s148 = smul.u32 2, %s17
        %p149 = scmp.lt.s32.totalorder %s15, 1
        %s150 = scalar_select %p149, %s15, 1
        %p151 = scmp.lt.s32.totalorder %s148, 1
        %s152 = scalar_select %p151, %s148, 1
        %s153 = smul.addr %s150, 2
        %s154 = sadd.s32 %s152, %s153
        %s155 = smul.addr %s154, 4
        %s156 = scalar_lea.vmem %s1, %s155
        %s157 = smul.u32 2, %s17
      $region24: #{pointnet_sa_module.2} parent=15 // pred_fallthru
        _
    $region16: #{pointnet_sa_module.2} parent=5 // pred_fallthru
      _
    %p158 = scmp.le.s32.totalorder 1, %s8
    %p159 = scmp.lt.s32.totalorder %s8, 3
    %p160 = pnand %p158, %p159
    %p161 = pneg %p160
    // Predicated region
    $region25: #{pointnet_sa_module.2} parent=5 // pred_check
      _
    $region26: #{pointnet_sa_module.2} parent=5 // pred_check_branch
      %163 = sbr.rel (%p160) target = $region28
    $region27: #{pointnet_sa_module.2} parent=5 // pred_region
      %s164 = ssub.s32 %s8, 1
      %s165 = smul.u32 8, %s19
      %p166 = scmp.lt.s32.totalorder %s18, 1
      %s167 = scalar_select %p166, %s18, 1
      %p168 = scmp.lt.s32.totalorder %s165, 7
      %s169 = scalar_select %p168, %s165, 7
      %s170 = smul.addr %s167, 8
      %s171 = sadd.s32 %s169, %s170
      %s172 = smul.addr %s171, 8
      %s173 = scalar_lea.vmem %s0, %s172
      %p174 = pneg %p55
      %p175 = pneg %p52
      %s176 = smul.u32 2, %s20
      %p177 = scmp.lt.s32.totalorder %s18, 1
      %s178 = scalar_select %p177, %s18, 1
      %p179 = scmp.lt.s32.totalorder %s176, 1
      %s180 = scalar_select %p179, %s176, 1
      %s181 = smul.addr %s178, 2
      %s182 = sadd.s32 %s180, %s181
      %s183 = smul.addr %s182, 4
      %s184 = scalar_lea.vmem %s1, %s183
      %p185 = pneg %p83
      %p186 = pneg %p80
      %p187 = pneg %p113
      %p188 = pneg %p110
      %s189 = smul.u32 8, %s19
      %s190 = smul.u32 2, %s20
      %p191 = scmp.lt.s32.totalorder %s18, 1
      %s192 = scalar_select %p191, %s18, 1
      %p193 = scmp.lt.s32.totalorder %s189, 7
      %s194 = scalar_select %p193, %s189, 7
      %p195 = scmp.lt.s32.totalorder %s190, 1
      %s196 = scalar_select %p195, %s190, 1
      %s197 = smul.addr %s194, 2
      %s198 = sadd.s32 %s196, %s197
      %s199 = smul.addr %s192, 16
      %s200 = sadd.s32 %s198, %s199
      %s201 = smul.addr %s200, 8
      %s202 = scalar_lea.vmem %s2, %s201
      %s203 = smul.u32 8, %s19
      %p204 = scmp.lt.s32.totalorder %s18, 1
      %s205 = scalar_select %p204, %s18, 1
      %p206 = scmp.lt.s32.totalorder %s203, 7
      %s207 = scalar_select %p206, %s203, 7
      %s208 = smul.addr %s205, 8
      %s209 = sadd.s32 %s207, %s208
      %s210 = smul.addr %s209, 8
      %s211 = scalar_lea.vmem %s0, %s210
      %s212 = smul.u32 8, %s19
      %s213 = smul.u32 2, %s20
      %p214 = scmp.lt.s32.totalorder %s18, 1
      %s215 = scalar_select %p214, %s18, 1
      %p216 = scmp.lt.s32.totalorder %s213, 1
      %s217 = scalar_select %p216, %s213, 1
      %s218 = smul.addr %s215, 2
      %s219 = sadd.s32 %s217, %s218
      %s220 = smul.addr %s219, 4
      %s221 = scalar_lea.vmem %s1, %s220
      %s222 = smul.u32 2, %s20
      %s223 = smul.u32 8, %s19
      %s224 = smul.u32 2, %s20
      %p225 = scmp.lt.s32.totalorder %s18, 1
      %s226 = scalar_select %p225, %s18, 1
      %p227 = scmp.lt.s32.totalorder %s223, 7
      %s228 = scalar_select %p227, %s223, 7
      %p229 = scmp.lt.s32.totalorder %s224, 1
      %s230 = scalar_select %p229, %s224, 1
      %s231 = smul.addr %s228, 2
      %s232 = sadd.s32 %s230, %s231
      %s233 = smul.addr %s226, 16
      %s234 = sadd.s32 %s232, %s233
      %s235 = smul.addr %s234, 8
      %s236 = scalar_lea.vmem %s2, %s235
      %s237 = smul.u32 8, %s19
      %s238 = smul.u32 2, %s20
      %v239 = vld [vmem:[%s211] sm:$0xff]
      %v240 = vld [vmem:[%s211 + $0x8] sm:$0xff]
      %v241 = vld [vmem:[%s211 + $0x10] sm:$0xff]
      %v242 = vld [vmem:[%s211 + $0x18] sm:$0xff]
      %v243 = vld [vmem:[%s211 + $0x20] sm:$0xff]
      %v244 = vld [vmem:[%s211 + $0x28] sm:$0xff]
      %v245 = vld [vmem:[%s211 + $0x30] sm:$0xff]
      %v246 = vld [vmem:[%s211 + $0x38] sm:$0xff]
      %v247 = vld [vmem:[%s221] sm:$0x77]
      %249 = vset.pattern.permute.xlu0 0
      %250 = vperm.xlu0 %249, %v239
      %v251 = vpop.permute.xlu0 %250
      %254 = vset.pattern.permute.xlu0 0
      %255 = vperm.xlu0 %254, %v240
      %v256 = vpop.permute.xlu0 %255
      %259 = vset.pattern.permute.xlu0 0
      %260 = vperm.xlu0 %259, %v241
      %v261 = vpop.permute.xlu0 %260
      %264 = vset.pattern.permute.xlu0 0
      %265 = vperm.xlu0 %264, %v242
      %v266 = vpop.permute.xlu0 %265
      %269 = vset.pattern.permute.xlu0 0
      %270 = vperm.xlu0 %269, %v243
      %v271 = vpop.permute.xlu0 %270
      %274 = vset.pattern.permute.xlu0 0
      %275 = vperm.xlu0 %274, %v244
      %v276 = vpop.permute.xlu0 %275
      %279 = vset.pattern.permute.xlu0 0
      %280 = vperm.xlu0 %279, %v245
      %v281 = vpop.permute.xlu0 %280
      %284 = vset.pattern.permute.xlu0 0
      %285 = vperm.xlu0 %284, %v246
      %v286 = vpop.permute.xlu0 %285
      %v289 = vperm.slane %v247, 0
      %v290 = vperm.slane %v247, 4
      %v293 = vperm.slane %v289, 0
      %v294 = vperm.slane %v290, 0
      %v295 = vsub.f32 %v251, %v293
      %v296 = vsub.f32 %v251, %v294
      %v297 = vsub.f32 %v256, %v293
      %v298 = vsub.f32 %v256, %v294
      %v299 = vsub.f32 %v261, %v293
      %v300 = vsub.f32 %v261, %v294
      %v301 = vsub.f32 %v266, %v293
      %v302 = vsub.f32 %v266, %v294
      %v303 = vsub.f32 %v271, %v293
      %v304 = vsub.f32 %v271, %v294
      %v305 = vsub.f32 %v276, %v293
      %v306 = vsub.f32 %v276, %v294
      %v307 = vsub.f32 %v281, %v293
      %v308 = vsub.f32 %v281, %v294
      %v309 = vsub.f32 %v286, %v293
      %v310 = vsub.f32 %v286, %v294
      %v311 = vmul.f32 %v295, %v295
      %v312 = vmul.f32 %v296, %v296
      %v313 = vmul.f32 %v297, %v297
      %v314 = vmul.f32 %v298, %v298
      %v315 = vmul.f32 %v299, %v299
      %v316 = vmul.f32 %v300, %v300
      %v317 = vmul.f32 %v301, %v301
      %v318 = vmul.f32 %v302, %v302
      %v319 = vmul.f32 %v303, %v303
      %v320 = vmul.f32 %v304, %v304
      %v321 = vmul.f32 %v305, %v305
      %v322 = vmul.f32 %v306, %v306
      %v323 = vmul.f32 %v307, %v307
      %v324 = vmul.f32 %v308, %v308
      %v325 = vmul.f32 %v309, %v309
      %v326 = vmul.f32 %v310, %v310
      %v327 = vadd.f32 %v311, 0.0
      %v328 = vadd.f32 %v312, 0.0
      %v329 = vadd.f32 %v313, 0.0
      %v330 = vadd.f32 %v314, 0.0
      %v331 = vadd.f32 %v315, 0.0
      %v332 = vadd.f32 %v316, 0.0
      %v333 = vadd.f32 %v317, 0.0
      %v334 = vadd.f32 %v318, 0.0
      %v335 = vadd.f32 %v319, 0.0
      %v336 = vadd.f32 %v320, 0.0
      %v337 = vadd.f32 %v321, 0.0
      %v338 = vadd.f32 %v322, 0.0
      %v339 = vadd.f32 %v323, 0.0
      %v340 = vadd.f32 %v324, 0.0
      %v341 = vadd.f32 %v325, 0.0
      %v342 = vadd.f32 %v326, 0.0
      %343 = vset.pattern.permute.xlu0 1
      %344 = vperm.xlu0 %343, %v239
      %v345 = vpop.permute.xlu0 %344
      %347 = vset.pattern.permute.xlu0 1
      %348 = vperm.xlu0 %347, %v240
      %v349 = vpop.permute.xlu0 %348
      %351 = vset.pattern.permute.xlu0 1
      %352 = vperm.xlu0 %351, %v241
      %v353 = vpop.permute.xlu0 %352
      %355 = vset.pattern.permute.xlu0 1
      %356 = vperm.xlu0 %355, %v242
      %v357 = vpop.permute.xlu0 %356
      %359 = vset.pattern.permute.xlu0 1
      %360 = vperm.xlu0 %359, %v243
      %v361 = vpop.permute.xlu0 %360
      %363 = vset.pattern.permute.xlu0 1
      %364 = vperm.xlu0 %363, %v244
      %v365 = vpop.permute.xlu0 %364
      %367 = vset.pattern.permute.xlu0 1
      %368 = vperm.xlu0 %367, %v245
      %v369 = vpop.permute.xlu0 %368
      %371 = vset.pattern.permute.xlu0 1
      %372 = vperm.xlu0 %371, %v246
      %v373 = vpop.permute.xlu0 %372
      %v375 = vperm.slane %v247, 1
      %v376 = vperm.slane %v247, 5
      %v379 = vperm.slane %v375, 1
      %v380 = vperm.slane %v376, 1
      %v381 = vsub.f32 %v345, %v379
      %v382 = vsub.f32 %v345, %v380
      %v383 = vsub.f32 %v349, %v379
      %v384 = vsub.f32 %v349, %v380
      %v385 = vsub.f32 %v353, %v379
      %v386 = vsub.f32 %v353, %v380
      %v387 = vsub.f32 %v357, %v379
      %v388 = vsub.f32 %v357, %v380
      %v389 = vsub.f32 %v361, %v379
      %v390 = vsub.f32 %v361, %v380
      %v391 = vsub.f32 %v365, %v379
      %v392 = vsub.f32 %v365, %v380
      %v393 = vsub.f32 %v369, %v379
      %v394 = vsub.f32 %v369, %v380
      %v395 = vsub.f32 %v373, %v379
      %v396 = vsub.f32 %v373, %v380
      %v397 = vmul.f32 %v381, %v381
      %v398 = vmul.f32 %v382, %v382
      %v399 = vmul.f32 %v383, %v383
      %v400 = vmul.f32 %v384, %v384
      %v401 = vmul.f32 %v385, %v385
      %v402 = vmul.f32 %v386, %v386
      %v403 = vmul.f32 %v387, %v387
      %v404 = vmul.f32 %v388, %v388
      %v405 = vmul.f32 %v389, %v389
      %v406 = vmul.f32 %v390, %v390
      %v407 = vmul.f32 %v391, %v391
      %v408 = vmul.f32 %v392, %v392
      %v409 = vmul.f32 %v393, %v393
      %v410 = vmul.f32 %v394, %v394
      %v411 = vmul.f32 %v395, %v395
      %v412 = vmul.f32 %v396, %v396
      %v413 = vadd.f32 %v327, %v397
      %v414 = vadd.f32 %v328, %v398
      %v415 = vadd.f32 %v329, %v399
      %v416 = vadd.f32 %v330, %v400
      %v417 = vadd.f32 %v331, %v401
      %v418 = vadd.f32 %v332, %v402
      %v419 = vadd.f32 %v333, %v403
      %v420 = vadd.f32 %v334, %v404
      %v421 = vadd.f32 %v335, %v405
      %v422 = vadd.f32 %v336, %v406
      %v423 = vadd.f32 %v337, %v407
      %v424 = vadd.f32 %v338, %v408
      %v425 = vadd.f32 %v339, %v409
      %v426 = vadd.f32 %v340, %v410
      %v427 = vadd.f32 %v341, %v411
      %v428 = vadd.f32 %v342, %v412
      %429 = vset.pattern.permute.xlu0 2
      %430 = vperm.xlu0 %429, %v239
      %v431 = vpop.permute.xlu0 %430
      %433 = vset.pattern.permute.xlu0 2
      %434 = vperm.xlu0 %433, %v240
      %v435 = vpop.permute.xlu0 %434
      %437 = vset.pattern.permute.xlu0 2
      %438 = vperm.xlu0 %437, %v241
      %v439 = vpop.permute.xlu0 %438
      %441 = vset.pattern.permute.xlu0 2
      %442 = vperm.xlu0 %441, %v242
      %v443 = vpop.permute.xlu0 %442
      %445 = vset.pattern.permute.xlu0 2
      %446 = vperm.xlu0 %445, %v243
      %v447 = vpop.permute.xlu0 %446
      %449 = vset.pattern.permute.xlu0 2
      %450 = vperm.xlu0 %449, %v244
      %v451 = vpop.permute.xlu0 %450
      %453 = vset.pattern.permute.xlu0 2
      %454 = vperm.xlu0 %453, %v245
      %v455 = vpop.permute.xlu0 %454
      %457 = vset.pattern.permute.xlu0 2
      %458 = vperm.xlu0 %457, %v246
      %v459 = vpop.permute.xlu0 %458
      %v461 = vperm.slane %v247, 2
      %v462 = vperm.slane %v247, 6
      %v465 = vperm.slane %v461, 2
      %v466 = vperm.slane %v462, 2
      %v467 = vsub.f32 %v431, %v465
      %v468 = vsub.f32 %v431, %v466
      %v469 = vsub.f32 %v435, %v465
      %v470 = vsub.f32 %v435, %v466
      %v471 = vsub.f32 %v439, %v465
      %v472 = vsub.f32 %v439, %v466
      %v473 = vsub.f32 %v443, %v465
      %v474 = vsub.f32 %v443, %v466
      %v475 = vsub.f32 %v447, %v465
      %v476 = vsub.f32 %v447, %v466
      %v477 = vsub.f32 %v451, %v465
      %v478 = vsub.f32 %v451, %v466
      %v479 = vsub.f32 %v455, %v465
      %v480 = vsub.f32 %v455, %v466
      %v481 = vsub.f32 %v459, %v465
      %v482 = vsub.f32 %v459, %v466
      %v483 = vmul.f32 %v467, %v467
      %v484 = vmul.f32 %v468, %v468
      %v485 = vmul.f32 %v469, %v469
      %v486 = vmul.f32 %v470, %v470
      %v487 = vmul.f32 %v471, %v471
      %v488 = vmul.f32 %v472, %v472
      %v489 = vmul.f32 %v473, %v473
      %v490 = vmul.f32 %v474, %v474
      %v491 = vmul.f32 %v475, %v475
      %v492 = vmul.f32 %v476, %v476
      %v493 = vmul.f32 %v477, %v477
      %v494 = vmul.f32 %v478, %v478
      %v495 = vmul.f32 %v479, %v479
      %v496 = vmul.f32 %v480, %v480
      %v497 = vmul.f32 %v481, %v481
      %v498 = vmul.f32 %v482, %v482
      %v499 = vadd.f32 %v413, %v483
      %v500 = vadd.f32 %v414, %v484
      %v501 = vadd.f32 %v415, %v485
      %v502 = vadd.f32 %v416, %v486
      %v503 = vadd.f32 %v417, %v487
      %v504 = vadd.f32 %v418, %v488
      %v505 = vadd.f32 %v419, %v489
      %v506 = vadd.f32 %v420, %v490
      %v507 = vadd.f32 %v421, %v491
      %v508 = vadd.f32 %v422, %v492
      %v509 = vadd.f32 %v423, %v493
      %v510 = vadd.f32 %v424, %v494
      %v511 = vadd.f32 %v425, %v495
      %v512 = vadd.f32 %v426, %v496
      %v513 = vadd.f32 %v427, %v497
      %v514 = vadd.f32 %v428, %v498
      %515 = vst [vmem:[%s236] sm:$0xff] %v499
      %516 = vst [vmem:[%s236 + $0x8] sm:$0xff] %v500
      %517 = vst [vmem:[%s236 + $0x10] sm:$0xff] %v501
      %518 = vst [vmem:[%s236 + $0x18] sm:$0xff] %v502
      %519 = vst [vmem:[%s236 + $0x20] sm:$0xff] %v503
      %520 = vst [vmem:[%s236 + $0x28] sm:$0xff] %v504
      %521 = vst [vmem:[%s236 + $0x30] sm:$0xff] %v505
      %522 = vst [vmem:[%s236 + $0x38] sm:$0xff] %v506
      %523 = vst [vmem:[%s236 + $0x40] sm:$0xff] %v507
      %524 = vst [vmem:[%s236 + $0x48] sm:$0xff] %v508
      %525 = vst [vmem:[%s236 + $0x50] sm:$0xff] %v509
      %526 = vst [vmem:[%s236 + $0x58] sm:$0xff] %v510
      %527 = vst [vmem:[%s236 + $0x60] sm:$0xff] %v511
      %528 = vst [vmem:[%s236 + $0x68] sm:$0xff] %v512
      %529 = vst [vmem:[%s236 + $0x70] sm:$0xff] %v513
      %530 = vst [vmem:[%s236 + $0x78] sm:$0xff] %v514
      %s531 = smul.u32 8, %s19
      %s532 = smul.u32 2, %s20
      %p533 = scmp.lt.s32.totalorder %s18, 1
      %s534 = scalar_select %p533, %s18, 1
      %p535 = scmp.lt.s32.totalorder %s531, 7
      %s536 = scalar_select %p535, %s531, 7
      %p537 = scmp.lt.s32.totalorder %s532, 1
      %s538 = scalar_select %p537, %s532, 1
      %s539 = smul.addr %s536, 2
      %s540 = sadd.s32 %s538, %s539
      %s541 = smul.addr %s534, 16
      %s542 = sadd.s32 %s540, %s541
      %s543 = smul.addr %s542, 8
      %s544 = scalar_lea.vmem %s2, %s543
      // Predicated region
      $region29: #{pointnet_sa_module.2} parent=27 // pred_check
        %p545 = pneg %p110
      $region30: #{pointnet_sa_module.2} parent=27 // pred_check_branch
        %547 = sbr.rel (%p545) target = $region32
      $region31: #{pointnet_sa_module.2} parent=27 // pred_region
        %s548 = smul.u32 8, %s19
        %s549 = smul.u32 2, %s20
      $region32: #{pointnet_sa_module.2} parent=27 // pred_fallthru
        _
    $region28: #{pointnet_sa_module.2} parent=5 // pred_fallthru
      _
    %p550 = scmp.le.s32.totalorder 2, %s8
    // Predicated region
    $region33: #{pointnet_sa_module.2} parent=5 // pred_check
      %p551 = pneg %p550
    $region34: #{pointnet_sa_module.2} parent=5 // pred_check_branch
      %553 = sbr.rel (%p551) target = $region36
    $region35: #{pointnet_sa_module.2} parent=5 // pred_region
      %s554 = ssub.s32 %s8, 2
      // Predicated region
      $region37: #{pointnet_sa_module.2} parent=35 // pred_check
        %p555 = pneg %p116
      $region38: #{pointnet_sa_module.2} parent=35 // pred_check_branch
        %557 = sbr.rel (%p555) target = $region40
      $region39: #{pointnet_sa_module.2} parent=35 // pred_region
        %s558 = smul.u32 8, %s22
        %s559 = smul.u32 2, %s23
        %p560 = scmp.lt.s32.totalorder %s21, 1
        %s561 = scalar_select %p560, %s21, 1
        %p562 = scmp.lt.s32.totalorder %s558, 7
        %s563 = scalar_select %p562, %s558, 7
        %p564 = scmp.lt.s32.totalorder %s559, 1
        %s565 = scalar_select %p564, %s559, 1
        %s566 = smul.addr %s563, 2
        %s567 = sadd.s32 %s565, %s566
        %s568 = smul.addr %s561, 16
        %s569 = sadd.s32 %s567, %s568
        %s570 = smul.addr %s569, 8
        %s571 = scalar_lea.vmem %s2, %s570
      $region40: #{pointnet_sa_module.2} parent=35 // pred_fallthru
        _
    $region36: #{pointnet_sa_module.2} parent=5 // pred_fallthru
      _
  $region6: #{pointnet_sa_module.2} parent=0 // loop_footer
    %s12 = sadd.s32 1, %s8
  $region7: #{pointnet_sa_module.2} parent=0 // loop_footer_branch
    %7 = sbr.rel target = $region3
  $region8: #{pointnet_sa_module.2} parent=0 // loop_exit
    _

// kernel: pointnet_sa_module.3
$region0: #{pointnet_sa_module.3}
  #allocation0 [shape = 'u32[]', space=smem, size = 0x4, offset = 0x4, fixed_abs, tag = 'smem constant byte address 0x4 - core index']
  #allocation1 [shape = 'u32[72,128]{1,0:T(1,128)}', space=vmem, size = 0x9000, scoped, tag = 'internal scratch']
  %s0 = inlined_call_operand.vmem [shape: bf16[2,1024,19], index: 0, kind: input, shape index: {}]
  %s1 = inlined_call_operand.vmem [shape: bf16[19,32], index: 1, kind: input, shape index: {}]
  %s2 = inlined_call_operand.vmem [shape: f32[1,32], index: 2, kind: input, shape index: {}]
  %s3 = inlined_call_operand.vmem [shape: bf16[32,32], index: 3, kind: input, shape index: {}]
  %s4 = inlined_call_operand.vmem [shape: f32[1,32], index: 4, kind: input, shape index: {}]
  %s5 = inlined_call_operand.vmem [shape: bf16[32,64], index: 5, kind: input, shape index: {}]
  %s6 = inlined_call_operand.vmem [shape: f32[1,64], index: 6, kind: input, shape index: {}]
  %s7 = inlined_call_operand.hbm [shape: f32[2,64,64], index: 7, kind: output, shape index: {}]
  %s8 = sld [smem:[#allocation0]]
  $region61: #{pointnet_sa_module.3} parent=0
    _
  %s10 = ssub.s32 1, %s8
  %s11 = scalar_select 0, %s10, %s8
  $region1: #{pointnet_sa_module.3} parent=0
    #allocation2 [shape = 'u8[65536]{0}', space=vmem, size = 0x10000, scoped, tag = 'output window, operand 0']
    #allocation3 [shape = 's32[2]{0}', space=sflag, size = 0x8, scoped, tag = 'scoped memory for pointnet_sa_module.3']
    %12 = vsyncpa [#allocation3], 0
    %s13 = scalar_lea.sflag [#allocation3], 1
    %14 = vsyncpa %s13, 0
    loop: start=0, step=1, limit=4
    $region2: #{pointnet_sa_module.3} parent=1 // loop_pre_header
      _
    $region3: #{pointnet_sa_module.3} parent=1 // loop_header
      %s16 = sphi 0, %s20
      %p17 = scmp.ge.s32.totalorder %s16, 4
      %s23 = sphi 0, %s35
      %s24 = sphi 0, %s31
      %s25 = sphi 0, %s23
      %s26 = sphi 0, %s24
      %s27 = sphi 0, %s25
      %s28 = sphi 0, %s26
      %s40 = sphi 0, %s42
      %s43 = sphi 0, %s40
      %s44 = sphi 0, %s43
      %s60 = sphi 0, %s44
      %s64 = sphi 0, %s64
      %s66 = sphi 0, %s64
      %s67 = sphi 0, %s66
      %s81 = sphi 0, %s67
      %s85 = sphi 0, %s85
      %s87 = sphi 0, %s85
      %s88 = sphi 0, %s87
      %s102 = sphi 0, %s88
      %s106 = sphi 0, %s106
      %s108 = sphi 0, %s106
      %s109 = sphi 0, %s108
      %s123 = sphi 0, %s109
      %s127 = sphi 0, %s127
      %s129 = sphi 0, %s127
      %s130 = sphi 0, %s129
      %s144 = sphi 0, %s130
      %s148 = sphi 0, %s148
      %s150 = sphi 0, %s148
      %s151 = sphi 0, %s150
      %s165 = sphi 0, %s151
      %s169 = sphi 0, %s169
      %s171 = sphi 0, %s169
      %s172 = sphi 0, %s171
      %s186 = sphi 0, %s172
      %s194 = sphi 0, %s196
      %s197 = sphi 0, %s194
      %s198 = sphi 0, %s197
      %s214 = sphi 0, %s198
    $region4: #{pointnet_sa_module.3} parent=1 // loop_header_branch
      %19 = sbr.rel (%p17) target = $region8
    $region5: #{pointnet_sa_module.3} parent=1 // loop_body
      %s21 = ssub.s32 %s16, 1
      %s22 = ssub.s32 %s16, 2
      %s29 = sadd.s32 1, %s24
      %p30 = scmp.ge.s32.totalorder %s29, 1
      %s31 = scalar_select %p30, 0, %s29
      %s32 = sadd.s32 1, %s23
      %s33 = scalar_select %p30, %s32, %s23
      %p34 = scmp.ge.s32.totalorder %s33, 2
      %s35 = scalar_select %p34, 0, %s33
      %s36 = ssub.s32 %s23, %s35
      %s37 = ssub.s32 %s24, %s31
      %s38 = sor.u32 %s36, %s37
      %p39 = scmp.eq.s32.totalorder %s38, 0
      %s41 = sadd.s32 %s40, 1
      %s42 = scalar_select %p39, %s40, %s41
      %p45 = pneg %p39
      %p46 = scmp.eq.s32.totalorder %s16, 1
      %p47 = por %p45, %p46
      %p48 = scmp.ne.s32.totalorder %s40, %s43
      %p49 = scmp.eq.s32.totalorder %s16, 0
      %p50 = por %p48, %p49
      %p51 = scmp.ne.s32.totalorder %s40, %s43
      %p52 = scmp.eq.s32.totalorder %s21, 1
      %p53 = por %p51, %p52
      %p54 = scmp.ne.s32.totalorder %s43, %s44
      %p55 = scmp.eq.s32.totalorder %s21, 0
      %p56 = por %p54, %p55
      %p57 = scmp.ne.s32.totalorder %s43, %s44
      %p58 = scmp.eq.s32.totalorder %s22, 1
      %p59 = por %p57, %p58
      %p61 = scmp.ne.s32.totalorder %s44, %s60
      %p62 = scmp.eq.s32.totalorder %s22, 0
      %p63 = por %p61, %p62
      %s65 = sadd.s32 %s64, 1
      %p68 = scmp.eq.s32.totalorder %s16, 1
      %p69 = scmp.ne.s32.totalorder %s64, %s66
      %p70 = scmp.eq.s32.totalorder %s16, 0
      %p71 = por %p69, %p70
      %p72 = scmp.ne.s32.totalorder %s64, %s66
      %p73 = scmp.eq.s32.totalorder %s21, 1
      %p74 = por %p72, %p73
      %p75 = scmp.ne.s32.totalorder %s66, %s67
      %p76 = scmp.eq.s32.totalorder %s21, 0
      %p77 = por %p75, %p76
      %p78 = scmp.ne.s32.totalorder %s66, %s67
      %p79 = scmp.eq.s32.totalorder %s22, 1
      %p80 = por %p78, %p79
      %p82 = scmp.ne.s32.totalorder %s67, %s81
      %p83 = scmp.eq.s32.totalorder %s22, 0
      %p84 = por %p82, %p83
      %s86 = sadd.s32 %s85, 1
      %p89 = scmp.eq.s32.totalorder %s16, 1
      %p90 = scmp.ne.s32.totalorder %s85, %s87
      %p91 = scmp.eq.s32.totalorder %s16, 0
      %p92 = por %p90, %p91
      %p93 = scmp.ne.s32.totalorder %s85, %s87
      %p94 = scmp.eq.s32.totalorder %s21, 1
      %p95 = por %p93, %p94
      %p96 = scmp.ne.s32.totalorder %s87, %s88
      %p97 = scmp.eq.s32.totalorder %s21, 0
      %p98 = por %p96, %p97
      %p99 = scmp.ne.s32.totalorder %s87, %s88
      %p100 = scmp.eq.s32.totalorder %s22, 1
      %p101 = por %p99, %p100
      %p103 = scmp.ne.s32.totalorder %s88, %s102
      %p104 = scmp.eq.s32.totalorder %s22, 0
      %p105 = por %p103, %p104
      %s107 = sadd.s32 %s106, 1
      %p110 = scmp.eq.s32.totalorder %s16, 1
      %p111 = scmp.ne.s32.totalorder %s106, %s108
      %p112 = scmp.eq.s32.totalorder %s16, 0
      %p113 = por %p111, %p112
      %p114 = scmp.ne.s32.totalorder %s106, %s108
      %p115 = scmp.eq.s32.totalorder %s21, 1
      %p116 = por %p114, %p115
      %p117 = scmp.ne.s32.totalorder %s108, %s109
      %p118 = scmp.eq.s32.totalorder %s21, 0
      %p119 = por %p117, %p118
      %p120 = scmp.ne.s32.totalorder %s108, %s109
      %p121 = scmp.eq.s32.totalorder %s22, 1
      %p122 = por %p120, %p121
      %p124 = scmp.ne.s32.totalorder %s109, %s123
      %p125 = scmp.eq.s32.totalorder %s22, 0
      %p126 = por %p124, %p125
      %s128 = sadd.s32 %s127, 1
      %p131 = scmp.eq.s32.totalorder %s16, 1
      %p132 = scmp.ne.s32.totalorder %s127, %s129
      %p133 = scmp.eq.s32.totalorder %s16, 0
      %p134 = por %p132, %p133
      %p135 = scmp.ne.s32.totalorder %s127, %s129
      %p136 = scmp.eq.s32.totalorder %s21, 1
      %p137 = por %p135, %p136
      %p138 = scmp.ne.s32.totalorder %s129, %s130
      %p139 = scmp.eq.s32.totalorder %s21, 0
      %p140 = por %p138, %p139
      %p141 = scmp.ne.s32.totalorder %s129, %s130
      %p142 = scmp.eq.s32.totalorder %s22, 1
      %p143 = por %p141, %p142
      %p145 = scmp.ne.s32.totalorder %s130, %s144
      %p146 = scmp.eq.s32.totalorder %s22, 0
      %p147 = por %p145, %p146
      %s149 = sadd.s32 %s148, 1
      %p152 = scmp.eq.s32.totalorder %s16, 1
      %p153 = scmp.ne.s32.totalorder %s148, %s150
      %p154 = scmp.eq.s32.totalorder %s16, 0
      %p155 = por %p153, %p154
      %p156 = scmp.ne.s32.totalorder %s148, %s150
      %p157 = scmp.eq.s32.totalorder %s21, 1
      %p158 = por %p156, %p157
      %p159 = scmp.ne.s32.totalorder %s150, %s151
      %p160 = scmp.eq.s32.totalorder %s21, 0
      %p161 = por %p159, %p160
      %p162 = scmp.ne.s32.totalorder %s150, %s151
      %p163 = scmp.eq.s32.totalorder %s22, 1
      %p164 = por %p162, %p163
      %p166 = scmp.ne.s32.totalorder %s151, %s165
      %p167 = scmp.eq.s32.totalorder %s22, 0
      %p168 = por %p166, %p167
      %s170 = sadd.s32 %s169, 1
      %p173 = scmp.eq.s32.totalorder %s16, 1
      %p174 = scmp.ne.s32.totalorder %s169, %s171
      %p175 = scmp.eq.s32.totalorder %s16, 0
      %p176 = por %p174, %p175
      %p177 = scmp.ne.s32.totalorder %s169, %s171
      %p178 = scmp.eq.s32.totalorder %s21, 1
      %p179 = por %p177, %p178
      %p180 = scmp.ne.s32.totalorder %s171, %s172
      %p181 = scmp.eq.s32.totalorder %s21, 0
      %p182 = por %p180, %p181
      %p183 = scmp.ne.s32.totalorder %s171, %s172
      %p184 = scmp.eq.s32.totalorder %s22, 1
      %p185 = por %p183, %p184
      %p187 = scmp.ne.s32.totalorder %s172, %s186
      %p188 = scmp.eq.s32.totalorder %s22, 0
      %p189 = por %p187, %p188
      %s190 = ssub.s32 %s23, %s35
      %s191 = ssub.s32 %s24, %s31
      %s192 = sor.u32 %s190, %s191
      %p193 = scmp.eq.s32.totalorder %s192, 0
      %s195 = sadd.s32 %s194, 1
      %s196 = scalar_select %p193, %s194, %s195
      %p199 = pneg %p193
      %p200 = scmp.eq.s32.totalorder %s16, 1
      %p201 = por %p199, %p200
      %p202 = scmp.ne.s32.totalorder %s194, %s197
      %p203 = scmp.eq.s32.totalorder %s16, 0
      %p204 = por %p202, %p203
      %p205 = scmp.ne.s32.totalorder %s194, %s197
      %p206 = scmp.eq.s32.totalorder %s21, 1
      %p207 = por %p205, %p206
      %p208 = scmp.ne.s32.totalorder %s197, %s198
      %p209 = scmp.eq.s32.totalorder %s21, 0
      %p210 = por %p208, %p209
      %p211 = scmp.ne.s32.totalorder %s197, %s198
      %p212 = scmp.eq.s32.totalorder %s22, 1
      %p213 = por %p211, %p212
      %p215 = scmp.ne.s32.totalorder %s198, %s214
      %p216 = scmp.eq.s32.totalorder %s22, 0
      %p217 = por %p215, %p216
      %p218 = scmp.le.s32.totalorder 1, %s16
      %p219 = scmp.lt.s32.totalorder %s16, 3
      %p220 = pnand %p218, %p219
      %p221 = pneg %p220
      // Predicated region
      $region9: #{pointnet_sa_module.3} parent=5 // pred_check
        _
      $region10: #{pointnet_sa_module.3} parent=5 // pred_check_branch
        %223 = sbr.rel (%p220) target = $region12
      $region11: #{pointnet_sa_module.3} parent=5 // pred_region
        %s224 = ssub.s32 %s16, 1
        // Predicated region
        $region13: #{pointnet_sa_module.3} parent=11 // pred_check
          %p225 = pneg %p77
        $region14: #{pointnet_sa_module.3} parent=11 // pred_check_branch
          %227 = sbr.rel (%p225) target = $region16
        $region15: #{pointnet_sa_module.3} parent=11 // pred_region
          _
        $region16: #{pointnet_sa_module.3} parent=11 // pred_fallthru
          _
        // Predicated region
        $region17: #{pointnet_sa_module.3} parent=11 // pred_check
          %p228 = pneg %p98
        $region18: #{pointnet_sa_module.3} parent=11 // pred_check_branch
          %230 = sbr.rel (%p228) target = $region20
        $region19: #{pointnet_sa_module.3} parent=11 // pred_region
          _
        $region20: #{pointnet_sa_module.3} parent=11 // pred_fallthru
          _
        // Predicated region
        $region21: #{pointnet_sa_module.3} parent=11 // pred_check
          %p231 = pneg %p119
        $region22: #{pointnet_sa_module.3} parent=11 // pred_check_branch
          %233 = sbr.rel (%p231) target = $region24
        $region23: #{pointnet_sa_module.3} parent=11 // pred_region
          _
        $region24: #{pointnet_sa_module.3} parent=11 // pred_fallthru
          _
        // Predicated region
        $region25: #{pointnet_sa_module.3} parent=11 // pred_check
          %p234 = pneg %p140
        $region26: #{pointnet_sa_module.3} parent=11 // pred_check_branch
          %236 = sbr.rel (%p234) target = $region28
        $region27: #{pointnet_sa_module.3} parent=11 // pred_region
          _
        $region28: #{pointnet_sa_module.3} parent=11 // pred_fallthru
          _
        // Predicated region
        $region29: #{pointnet_sa_module.3} parent=11 // pred_check
          %p237 = pneg %p161
        $region30: #{pointnet_sa_module.3} parent=11 // pred_check_branch
          %239 = sbr.rel (%p237) target = $region32
        $region31: #{pointnet_sa_module.3} parent=11 // pred_region
          _
        $region32: #{pointnet_sa_module.3} parent=11 // pred_fallthru
          _
        // Predicated region
        $region33: #{pointnet_sa_module.3} parent=11 // pred_check
          %p240 = pneg %p182
        $region34: #{pointnet_sa_module.3} parent=11 // pred_check_branch
          %242 = sbr.rel (%p240) target = $region36
        $region35: #{pointnet_sa_module.3} parent=11 // pred_region
          _
        $region36: #{pointnet_sa_module.3} parent=11 // pred_fallthru
          _
      $region12: #{pointnet_sa_module.3} parent=5 // pred_fallthru
        _
      %p243 = scmp.lt.s32.totalorder %s16, 2
      // Predicated region
      $region37: #{pointnet_sa_module.3} parent=5 // pred_check
        %p244 = pneg %p243
      $region38: #{pointnet_sa_module.3} parent=5 // pred_check_branch
        %246 = sbr.rel (%p244) target = $region40
      $region39: #{pointnet_sa_module.3} parent=5 // pred_region
        // Predicated region
        $region41: #{pointnet_sa_module.3} parent=39 // pred_check
          %p247 = pneg %p50
        $region42: #{pointnet_sa_module.3} parent=39 // pred_check_branch
          %249 = sbr.rel (%p247) target = $region44
        $region43: #{pointnet_sa_module.3} parent=39 // pred_region
          %s250 = smul.u32 128, %s24
          %p251 = scmp.lt.s32.totalorder %s23, 1
          %s252 = scalar_select %p251, %s23, 1
          %p253 = scmp.lt.s32.totalorder %s250, 127
          %s254 = scalar_select %p253, %s250, 127
          %s255 = smul.addr %s252, 128
          %s256 = sadd.s32 %s254, %s255
          %s257 = smul.addr %s256, 4
          %s258 = scalar_lea.vmem %s0, %s257
          %s259 = smul.u32 128, %s24
        $region44: #{pointnet_sa_module.3} parent=39 // pred_fallthru
          _
      $region40: #{pointnet_sa_module.3} parent=5 // pred_fallthru
        _
      %p260 = scmp.le.s32.totalorder 1, %s16
      %p261 = scmp.lt.s32.totalorder %s16, 3
      %p262 = pnand %p260, %p261
      %p263 = pneg %p262
      // Predicated region
      $region45: #{pointnet_sa_module.3} parent=5 // pred_check
        _
      $region46: #{pointnet_sa_module.3} parent=5 // pred_check_branch
        %265 = sbr.rel (%p262) target = $region48
      $region47: #{pointnet_sa_module.3} parent=5 // pred_region
        %s266 = ssub.s32 %s16, 1
        %s267 = smul.u32 128, %s26
        %p268 = scmp.lt.s32.totalorder %s25, 1
        %s269 = scalar_select %p268, %s25, 1
        %p270 = scmp.lt.s32.totalorder %s267, 127
        %s271 = scalar_select %p270, %s267, 127
        %s272 = smul.addr %s269, 128
        %s273 = sadd.s32 %s271, %s272
        %s274 = smul.addr %s273, 4
        %s275 = scalar_lea.vmem %s0, %s274
        %p276 = pneg %p56
        %p277 = pneg %p53
        %p278 = pneg %p77
        %p279 = pneg %p74
        %p280 = pneg %p98
        %p281 = pneg %p95
        %p282 = pneg %p119
        %p283 = pneg %p116
        %p284 = pneg %p140
        %p285 = pneg %p137
        %p286 = pneg %p161
        %p287 = pneg %p158
        %p288 = pneg %p182
        %p289 = pneg %p179
        %p290 = pneg %p210
        %p291 = pneg %p207
        %s292 = sand.u32 %s197, 1
        %s293 = scalar_lea.sflag [#allocation3], %s292
        %s294 = sand.u32 %s197, 1
        %s295 = smul.addr %s294, 64
        %s296 = scalar_lea.vmem [#allocation2], %s295
        %s297 = smul.u32 128, %s26
        %p298 = scmp.lt.s32.totalorder %s25, 1
        %s299 = scalar_select %p298, %s25, 1
        %p300 = scmp.lt.s32.totalorder %s297, 127
        %s301 = scalar_select %p300, %s297, 127
        %s302 = smul.addr %s299, 128
        %s303 = sadd.s32 %s301, %s302
        %s304 = smul.addr %s303, 4
        %s305 = scalar_lea.vmem %s0, %s304
        %s306 = smul.u32 128, %s26
        %s307 = smul.u32 8, %s26
        %v309 = vld [vmem:[%s305] sm:$0xf]
        %v310 = vld [vmem:[%s305 + $0x4] sm:$0xf]
        %v311 = vld [vmem:[%s305 + $0x8] sm:$0xf]
        %v312 = vld [vmem:[%s305 + $0xc] sm:$0xf]
        %v313 = vld [vmem:[%s305 + $0x10] sm:$0xf]
        %v314 = vld [vmem:[%s305 + $0x14] sm:$0xf]
        %v315 = vld [vmem:[%s305 + $0x18] sm:$0xf]
        %v316 = vld [vmem:[%s305 + $0x1c] sm:$0xf]
        %v317 = vld [vmem:[%s305 + $0x20] sm:$0xf]
        %v318 = vld [vmem:[%s305 + $0x24] sm:$0xf]
        %v319 = vld [vmem:[%s305 + $0x28] sm:$0xf]
        %v320 = vld [vmem:[%s305 + $0x2c] sm:$0xf]
        %v321 = vld [vmem:[%s305 + $0x30] sm:$0xf]
        %v322 = vld [vmem:[%s305 + $0x34] sm:$0xf]
        %v323 = vld [vmem:[%s305 + $0x38] sm:$0xf]
        %v324 = vld [vmem:[%s305 + $0x3c] sm:$0xf]
        %v325 = vld [vmem:[%s305 + $0x40] sm:$0xf]
        %v326 = vld [vmem:[%s305 + $0x44] sm:$0xf]
        %v327 = vld [vmem:[%s305 + $0x48] sm:$0xf]
        %v328 = vld [vmem:[%s305 + $0x4c] sm:$0xf]
        %v329 = vld [vmem:[%s305 + $0x50] sm:$0xf]
        %v330 = vld [vmem:[%s305 + $0x54] sm:$0xf]
        %v331 = vld [vmem:[%s305 + $0x58] sm:$0xf]
        %v332 = vld [vmem:[%s305 + $0x5c] sm:$0xf]
        %v333 = vld [vmem:[%s305 + $0x60] sm:$0xf]
        %v334 = vld [vmem:[%s305 + $0x64] sm:$0xf]
        %v335 = vld [vmem:[%s305 + $0x68] sm:$0xf]
        %v336 = vld [vmem:[%s305 + $0x6c] sm:$0xf]
        %v337 = vld [vmem:[%s305 + $0x70] sm:$0xf]
        %v338 = vld [vmem:[%s305 + $0x74] sm:$0xf]
        %v339 = vld [vmem:[%s305 + $0x78] sm:$0xf]
        %v340 = vld [vmem:[%s305 + $0x7c] sm:$0xf]
        %v341 = vld [vmem:[%s305 + $0x80] sm:$0xf]
        %v342 = vld [vmem:[%s305 + $0x84] sm:$0xf]
        %v343 = vld [vmem:[%s305 + $0x88] sm:$0xf]
        %v344 = vld [vmem:[%s305 + $0x8c] sm:$0xf]
        %v345 = vld [vmem:[%s305 + $0x90] sm:$0xf]
        %v346 = vld [vmem:[%s305 + $0x94] sm:$0xf]
        %v347 = vld [vmem:[%s305 + $0x98] sm:$0xf]
        %v348 = vld [vmem:[%s305 + $0x9c] sm:$0xf]
        %v349 = vld [vmem:[%s305 + $0xa0] sm:$0xf]
        %v350 = vld [vmem:[%s305 + $0xa4] sm:$0xf]
        %v351 = vld [vmem:[%s305 + $0xa8] sm:$0xf]
        %v352 = vld [vmem:[%s305 + $0xac] sm:$0xf]
        %v353 = vld [vmem:[%s305 + $0xb0] sm:$0xf]
        %v354 = vld [vmem:[%s305 + $0xb4] sm:$0xf]
        %v355 = vld [vmem:[%s305 + $0xb8] sm:$0xf]
        %v356 = vld [vmem:[%s305 + $0xbc] sm:$0xf]
        %v357 = vld [vmem:[%s305 + $0xc0] sm:$0xf]
        %v358 = vld [vmem:[%s305 + $0xc4] sm:$0xf]
        %v359 = vld [vmem:[%s305 + $0xc8] sm:$0xf]
        %v360 = vld [vmem:[%s305 + $0xcc] sm:$0xf]
        %v361 = vld [vmem:[%s305 + $0xd0] sm:$0xf]
        %v362 = vld [vmem:[%s305 + $0xd4] sm:$0xf]
        %v363 = vld [vmem:[%s305 + $0xd8] sm:$0xf]
        %v364 = vld [vmem:[%s305 + $0xdc] sm:$0xf]
        %v365 = vld [vmem:[%s305 + $0xe0] sm:$0xf]
        %v366 = vld [vmem:[%s305 + $0xe4] sm:$0xf]
        %v367 = vld [vmem:[%s305 + $0xe8] sm:$0xf]
        %v368 = vld [vmem:[%s305 + $0xec] sm:$0xf]
        %v369 = vld [vmem:[%s305 + $0xf0] sm:$0xf]
        %v370 = vld [vmem:[%s305 + $0xf4] sm:$0xf]
        %v371 = vld [vmem:[%s305 + $0xf8] sm:$0xf]
        %v372 = vld [vmem:[%s305 + $0xfc] sm:$0xf]
        %v373 = vld [vmem:[%s305 + $0x100] sm:$0xf]
        %v374 = vld [vmem:[%s305 + $0x104] sm:$0xf]
        %v375 = vld [vmem:[%s305 + $0x108] sm:$0xf]
        %v376 = vld [vmem:[%s305 + $0x10c] sm:$0xf]
        %v377 = vld [vmem:[%s305 + $0x110] sm:$0xf]
        %v378 = vld [vmem:[%s305 + $0x114] sm:$0xf]
        %v379 = vld [vmem:[%s305 + $0x118] sm:$0xf]
        %v380 = vld [vmem:[%s305 + $0x11c] sm:$0xf]
        %v381 = vld [vmem:[%s305 + $0x120] sm:$0xf]
        %v382 = vld [vmem:[%s305 + $0x124] sm:$0xf]
        %v383 = vld [vmem:[%s305 + $0x128] sm:$0xf]
        %v384 = vld [vmem:[%s305 + $0x12c] sm:$0xf]
        %v385 = vld [vmem:[%s305 + $0x130] sm:$0xf]
        %v386 = vld [vmem:[%s305 + $0x134] sm:$0xf]
        %v387 = vld [vmem:[%s305 + $0x138] sm:$0xf]
        %v388 = vld [vmem:[%s305 + $0x13c] sm:$0xf]
        %v389 = vld [vmem:[%s305 + $0x140] sm:$0xf]
        %v390 = vld [vmem:[%s305 + $0x144] sm:$0xf]
        %v391 = vld [vmem:[%s305 + $0x148] sm:$0xf]
        %v392 = vld [vmem:[%s305 + $0x14c] sm:$0xf]
        %v393 = vld [vmem:[%s305 + $0x150] sm:$0xf]
        %v394 = vld [vmem:[%s305 + $0x154] sm:$0xf]
        %v395 = vld [vmem:[%s305 + $0x158] sm:$0xf]
        %v396 = vld [vmem:[%s305 + $0x15c] sm:$0xf]
        %v397 = vld [vmem:[%s305 + $0x160] sm:$0xf]
        %v398 = vld [vmem:[%s305 + $0x164] sm:$0xf]
        %v399 = vld [vmem:[%s305 + $0x168] sm:$0xf]
        %v400 = vld [vmem:[%s305 + $0x16c] sm:$0xf]
        %v401 = vld [vmem:[%s305 + $0x170] sm:$0xf]
        %v402 = vld [vmem:[%s305 + $0x174] sm:$0xf]
        %v403 = vld [vmem:[%s305 + $0x178] sm:$0xf]
        %v404 = vld [vmem:[%s305 + $0x17c] sm:$0xf]
        %v405 = vld [vmem:[%s305 + $0x180] sm:$0xf]
        %v406 = vld [vmem:[%s305 + $0x184] sm:$0xf]
        %v407 = vld [vmem:[%s305 + $0x188] sm:$0xf]
        %v408 = vld [vmem:[%s305 + $0x18c] sm:$0xf]
        %v409 = vld [vmem:[%s305 + $0x190] sm:$0xf]
        %v410 = vld [vmem:[%s305 + $0x194] sm:$0xf]
        %v411 = vld [vmem:[%s305 + $0x198] sm:$0xf]
        %v412 = vld [vmem:[%s305 + $0x19c] sm:$0xf]
        %v413 = vld [vmem:[%s305 + $0x1a0] sm:$0xf]
        %v414 = vld [vmem:[%s305 + $0x1a4] sm:$0xf]
        %v415 = vld [vmem:[%s305 + $0x1a8] sm:$0xf]
        %v416 = vld [vmem:[%s305 + $0x1ac] sm:$0xf]
        %v417 = vld [vmem:[%s305 + $0x1b0] sm:$0xf]
        %v418 = vld [vmem:[%s305 + $0x1b4] sm:$0xf]
        %v419 = vld [vmem:[%s305 + $0x1b8] sm:$0xf]
        %v420 = vld [vmem:[%s305 + $0x1bc] sm:$0xf]
        %v421 = vld [vmem:[%s305 + $0x1c0] sm:$0xf]
        %v422 = vld [vmem:[%s305 + $0x1c4] sm:$0xf]
        %v423 = vld [vmem:[%s305 + $0x1c8] sm:$0xf]
        %v424 = vld [vmem:[%s305 + $0x1cc] sm:$0xf]
        %v425 = vld [vmem:[%s305 + $0x1d0] sm:$0xf]
        %v426 = vld [vmem:[%s305 + $0x1d4] sm:$0xf]
        %v427 = vld [vmem:[%s305 + $0x1d8] sm:$0xf]
        %v428 = vld [vmem:[%s305 + $0x1dc] sm:$0xf]
        %v429 = vld [vmem:[%s305 + $0x1e0] sm:$0xf]
        %v430 = vld [vmem:[%s305 + $0x1e4] sm:$0xf]
        %v431 = vld [vmem:[%s305 + $0x1e8] sm:$0xf]
        %v432 = vld [vmem:[%s305 + $0x1ec] sm:$0xf]
        %v433 = vld [vmem:[%s305 + $0x1f0] sm:$0xf]
        %v434 = vld [vmem:[%s305 + $0x1f4] sm:$0xf]
        %v435 = vld [vmem:[%s305 + $0x1f8] sm:$0xf]
        %v436 = vld [vmem:[%s305 + $0x1fc] sm:$0xf]
        %v437 = vld [vmem:[%s1] sm:$0xf]
        %v438 = vld [vmem:[%s1 + $0x4] sm:$0xf]
        %v439 = vld [vmem:[%s1 + $0x8] sm:$0x3]
        %v440 = vld [vmem:[%s2] sm:$0x1]
        %v442 = vperm.slane %v440, 0
        %v572 = vunpack.c.l.b16 %v309
        %v573 = vunpack.c.l.b16 %v310
        %v574 = vunpack.c.l.b16 %v311
        %v575 = vunpack.c.l.b16 %v312
        %v576 = vunpack.c.l.b16 %v313
        %v577 = vunpack.c.l.b16 %v314
        %v578 = vunpack.c.l.b16 %v315
        %v579 = vunpack.c.l.b16 %v316
        %v580 = vunpack.c.l.b16 %v317
        %v581 = vunpack.c.l.b16 %v318
        %v582 = vunpack.c.l.b16 %v319
        %v583 = vunpack.c.l.b16 %v320
        %v584 = vunpack.c.l.b16 %v321
        %v585 = vunpack.c.l.b16 %v322
        %v586 = vunpack.c.l.b16 %v323
        %v587 = vunpack.c.l.b16 %v324
        %v588 = vunpack.c.l.b16 %v325
        %v589 = vunpack.c.l.b16 %v326
        %v590 = vunpack.c.l.b16 %v327
        %v591 = vunpack.c.l.b16 %v328
        %v592 = vunpack.c.l.b16 %v329
        %v593 = vunpack.c.l.b16 %v330
        %v594 = vunpack.c.l.b16 %v331
        %v595 = vunpack.c.l.b16 %v332
        %v596 = vunpack.c.l.b16 %v333
        %v597 = vunpack.c.l.b16 %v334
        %v598 = vunpack.c.l.b16 %v335
        %v599 = vunpack.c.l.b16 %v336
        %v600 = vunpack.c.l.b16 %v337
        %v601 = vunpack.c.l.b16 %v338
        %v602 = vunpack.c.l.b16 %v339
        %v603 = vunpack.c.l.b16 %v340
        %v604 = vunpack.c.l.b16 %v341
        %v605 = vunpack.c.l.b16 %v342
        %v606 = vunpack.c.l.b16 %v343
        %v607 = vunpack.c.l.b16 %v344
        %v608 = vunpack.c.l.b16 %v345
        %v609 = vunpack.c.l.b16 %v346
        %v610 = vunpack.c.l.b16 %v347
        %v611 = vunpack.c.l.b16 %v348
        %v612 = vunpack.c.l.b16 %v349
        %v613 = vunpack.c.l.b16 %v350
        %v614 = vunpack.c.l.b16 %v351
        %v615 = vunpack.c.l.b16 %v352
        %v616 = vunpack.c.l.b16 %v353
        %v617 = vunpack.c.l.b16 %v354
        %v618 = vunpack.c.l.b16 %v355
        %v619 = vunpack.c.l.b16 %v356
        %v620 = vunpack.c.l.b16 %v357
        %v621 = vunpack.c.l.b16 %v358
        %v622 = vunpack.c.l.b16 %v359
        %v623 = vunpack.c.l.b16 %v360
        %v624 = vunpack.c.l.b16 %v361
        %v625 = vunpack.c.l.b16 %v362
        %v626 = vunpack.c.l.b16 %v363
        %v627 = vunpack.c.l.b16 %v364
        %v628 = vunpack.c.l.b16 %v365
        %v629 = vunpack.c.l.b16 %v366
        %v630 = vunpack.c.l.b16 %v367
        %v631 = vunpack.c.l.b16 %v368
        %v632 = vunpack.c.l.b16 %v369
        %v633 = vunpack.c.l.b16 %v370
        %v634 = vunpack.c.l.b16 %v371
        %v635 = vunpack.c.l.b16 %v372
        %v636 = vunpack.c.l.b16 %v373
        %v637 = vunpack.c.l.b16 %v374
        %v638 = vunpack.c.l.b16 %v375
        %v639 = vunpack.c.l.b16 %v376
        %v640 = vunpack.c.l.b16 %v377
        %v641 = vunpack.c.l.b16 %v378
        %v642 = vunpack.c.l.b16 %v379
        %v643 = vunpack.c.l.b16 %v380
        %v644 = vunpack.c.l.b16 %v381
        %v645 = vunpack.c.l.b16 %v382
        %v646 = vunpack.c.l.b16 %v383
        %v647 = vunpack.c.l.b16 %v384
        %v648 = vunpack.c.l.b16 %v385
        %v649 = vunpack.c.l.b16 %v386
        %v650 = vunpack.c.l.b16 %v387
        %v651 = vunpack.c.l.b16 %v388
        %v652 = vunpack.c.l.b16 %v389
        %v653 = vunpack.c.l.b16 %v390
        %v654 = vunpack.c.l.b16 %v391
        %v655 = vunpack.c.l.b16 %v392
        %v656 = vunpack.c.l.b16 %v393
        %v657 = vunpack.c.l.b16 %v394
        %v658 = vunpack.c.l.b16 %v395
        %v659 = vunpack.c.l.b16 %v396
        %v660 = vunpack.c.l.b16 %v397
        %v661 = vunpack.c.l.b16 %v398
        %v662 = vunpack.c.l.b16 %v399
        %v663 = vunpack.c.l.b16 %v400
        %v664 = vunpack.c.l.b16 %v401
        %v665 = vunpack.c.l.b16 %v402
        %v666 = vunpack.c.l.b16 %v403
        %v667 = vunpack.c.l.b16 %v404
        %v668 = vunpack.c.l.b16 %v405
        %v669 = vunpack.c.l.b16 %v406
        %v670 = vunpack.c.l.b16 %v407
        %v671 = vunpack.c.l.b16 %v408
        %v672 = vunpack.c.l.b16 %v409
        %v673 = vunpack.c.l.b16 %v410
        %v674 = vunpack.c.l.b16 %v411
        %v675 = vunpack.c.l.b16 %v412
        %v676 = vunpack.c.l.b16 %v413
        %v677 = vunpack.c.l.b16 %v414
        %v678 = vunpack.c.l.b16 %v415
        %v679 = vunpack.c.l.b16 %v416
        %v680 = vunpack.c.l.b16 %v417
        %v681 = vunpack.c.l.b16 %v418
        %v682 = vunpack.c.l.b16 %v419
        %v683 = vunpack.c.l.b16 %v420
        %v684 = vunpack.c.l.b16 %v421
        %v685 = vunpack.c.l.b16 %v422
        %v686 = vunpack.c.l.b16 %v423
        %v687 = vunpack.c.l.b16 %v424
        %v688 = vunpack.c.l.b16 %v425
        %v689 = vunpack.c.l.b16 %v426
        %v690 = vunpack.c.l.b16 %v427
        %v691 = vunpack.c.l.b16 %v428
        %v692 = vunpack.c.l.b16 %v429
        %v693 = vunpack.c.l.b16 %v430
        %v694 = vunpack.c.l.b16 %v431
        %v695 = vunpack.c.l.b16 %v432
        %v696 = vunpack.c.l.b16 %v433
        %v697 = vunpack.c.l.b16 %v434
        %v698 = vunpack.c.l.b16 %v435
        %v699 = vunpack.c.l.b16 %v436
        %v700 = vpack.c.b16 %v573, %v572
        %v701 = vpack.c.b16 %v575, %v574
        %v702 = vpack.c.b16 %v577, %v576
        %v703 = vpack.c.b16 %v579, %v578
        %v704 = vpack.c.b16 %v581, %v580
        %v705 = vpack.c.b16 %v583, %v582
        %v706 = vpack.c.b16 %v585, %v584
        %v707 = vpack.c.b16 %v587, %v586
        %v708 = vpack.c.b16 %v589, %v588
        %v709 = vpack.c.b16 %v591, %v590
        %v710 = vpack.c.b16 %v593, %v592
        %v711 = vpack.c.b16 %v595, %v594
        %v712 = vpack.c.b16 %v597, %v596
        %v713 = vpack.c.b16 %v599, %v598
        %v714 = vpack.c.b16 %v601, %v600
        %v715 = vpack.c.b16 %v603, %v602
        %v716 = vpack.c.b16 %v605, %v604
        %v717 = vpack.c.b16 %v607, %v606
        %v718 = vpack.c.b16 %v609, %v608
        %v719 = vpack.c.b16 %v611, %v610
        %v720 = vpack.c.b16 %v613, %v612
        %v721 = vpack.c.b16 %v615, %v614
        %v722 = vpack.c.b16 %v617, %v616
        %v723 = vpack.c.b16 %v619, %v618
        %v724 = vpack.c.b16 %v621, %v620
        %v725 = vpack.c.b16 %v623, %v622
        %v726 = vpack.c.b16 %v625, %v624
        %v727 = vpack.c.b16 %v627, %v626
        %v728 = vpack.c.b16 %v629, %v628
        %v729 = vpack.c.b16 %v631, %v630
        %v730 = vpack.c.b16 %v633, %v632
        %v731 = vpack.c.b16 %v635, %v634
        %v732 = vpack.c.b16 %v637, %v636
        %v733 = vpack.c.b16 %v639, %v638
        %v734 = vpack.c.b16 %v641, %v640
        %v735 = vpack.c.b16 %v643, %v642
        %v736 = vpack.c.b16 %v645, %v644
        %v737 = vpack.c.b16 %v647, %v646
        %v738 = vpack.c.b16 %v649, %v648
        %v739 = vpack.c.b16 %v651, %v650
        %v740 = vpack.c.b16 %v653, %v652
        %v741 = vpack.c.b16 %v655, %v654
        %v742 = vpack.c.b16 %v657, %v656
        %v743 = vpack.c.b16 %v659, %v658
        %v744 = vpack.c.b16 %v661, %v660
        %v745 = vpack.c.b16 %v663, %v662
        %v746 = vpack.c.b16 %v665, %v664
        %v747 = vpack.c.b16 %v667, %v666
        %v748 = vpack.c.b16 %v669, %v668
        %v749 = vpack.c.b16 %v671, %v670
        %v750 = vpack.c.b16 %v673, %v672
        %v751 = vpack.c.b16 %v675, %v674
        %v752 = vpack.c.b16 %v677, %v676
        %v753 = vpack.c.b16 %v679, %v678
        %v754 = vpack.c.b16 %v681, %v680
        %v755 = vpack.c.b16 %v683, %v682
        %v756 = vpack.c.b16 %v685, %v684
        %v757 = vpack.c.b16 %v687, %v686
        %v758 = vpack.c.b16 %v689, %v688
        %v759 = vpack.c.b16 %v691, %v690
        %v760 = vpack.c.b16 %v693, %v692
        %v761 = vpack.c.b16 %v695, %v694
        %v762 = vpack.c.b16 %v697, %v696
        %v763 = vpack.c.b16 %v699, %v698
        %v767 = vunpack.c.l.b16 %v437
        %v768 = vunpack.c.l.b16 %v438
        %v769 = vunpack.c.l.b16 %v439
        %v770 = vpack.c.b16 %v768, %v767
        %v771 = vpack.c.b16 %v769, %v769
        %vm773 = vcmask 154624
        %v775 = vsel %vm773, %v700, 0
        %v778 = vsel %vm773, %v701, 0
        %v781 = vsel %vm773, %v702, 0
        %v784 = vsel %vm773, %v703, 0
        %v787 = vsel %vm773, %v704, 0
        %v790 = vsel %vm773, %v705, 0
        %v793 = vsel %vm773, %v706, 0
        %v796 = vsel %vm773, %v707, 0
        %v799 = vsel %vm773, %v708, 0
        %v802 = vsel %vm773, %v709, 0
        %v805 = vsel %vm773, %v710, 0
        %v808 = vsel %vm773, %v711, 0
        %v811 = vsel %vm773, %v712, 0
        %v814 = vsel %vm773, %v713, 0
        %v817 = vsel %vm773, %v714, 0
        %v820 = vsel %vm773, %v715, 0
        %v823 = vsel %vm773, %v716, 0
        %v826 = vsel %vm773, %v717, 0
        %v829 = vsel %vm773, %v718, 0
        %v832 = vsel %vm773, %v719, 0
        %v835 = vsel %vm773, %v720, 0
        %v838 = vsel %vm773, %v721, 0
        %v841 = vsel %vm773, %v722, 0
        %v844 = vsel %vm773, %v723, 0
        %v847 = vsel %vm773, %v724, 0
        %v850 = vsel %vm773, %v725, 0
        %v853 = vsel %vm773, %v726, 0
        %v856 = vsel %vm773, %v727, 0
        %v859 = vsel %vm773, %v728, 0
        %v862 = vsel %vm773, %v729, 0
        %v865 = vsel %vm773, %v730, 0
        %v868 = vsel %vm773, %v731, 0
        %v871 = vsel %vm773, %v732, 0
        %v874 = vsel %vm773, %v733, 0
        %v877 = vsel %vm773, %v734, 0
        %v880 = vsel %vm773, %v735, 0
        %v883 = vsel %vm773, %v736, 0
        %v886 = vsel %vm773, %v737, 0
        %v889 = vsel %vm773, %v738, 0
        %v892 = vsel %vm773, %v739, 0
        %v895 = vsel %vm773, %v740, 0
        %v898 = vsel %vm773, %v741, 0
        %v901 = vsel %vm773, %v742, 0
        %v904 = vsel %vm773, %v743, 0
        %v907 = vsel %vm773, %v744, 0
        %v910 = vsel %vm773, %v745, 0
        %v913 = vsel %vm773, %v746, 0
        %v916 = vsel %vm773, %v747, 0
        %v919 = vsel %vm773, %v748, 0
        %v922 = vsel %vm773, %v749, 0
        %v925 = vsel %vm773, %v750, 0
        %v928 = vsel %vm773, %v751, 0
        %v931 = vsel %vm773, %v752, 0
        %v934 = vsel %vm773, %v753, 0
        %v937 = vsel %vm773, %v754, 0
        %v940 = vsel %vm773, %v755, 0
        %v943 = vsel %vm773, %v756, 0
        %v946 = vsel %vm773, %v757, 0
        %v949 = vsel %vm773, %v758, 0
        %v952 = vsel %vm773, %v759, 0
        %v955 = vsel %vm773, %v760, 0
        %v958 = vsel %vm773, %v761, 0
        %v961 = vsel %vm773, %v762, 0
        %v964 = vsel %vm773, %v763, 0
        %vm966 = vcmask 1040384
        %vm967 = vcmask 1041408
        %v968 = vsel %vm966, 4294967295, 65535
        %v969 = vsel %vm967, %v968, 0
        %v971 = vand.u32 %v771, %v969
        %973 = vmatpush.bf16.msra.mxu0 0
        %974 = vmatpush.bf16.msra.mxu0 0
        %975 = vmatpush.bf16.msra.mxu0 0
        %976 = vmatpush.bf16.msra.mxu0 0
        %977 = vmatpush.bf16.msra.mxu0 0
        %978 = vmatpush.bf16.msra.mxu0 0
        %979 = vmatpush.bf16.msra.mxu0 %v971
        %980 = vmatpush.bf16.msra.mxu0 %v770
        %981 = vmatmul.bf16.gmra.mxu0 %v775
        %v982 = vpop.f32.mrf.mxu0
        %v983 = vadd.f32 %v442, %v982
        %v984 = vpop.f32.mrf.mxu0
        %v985 = vadd.f32 %v442, %v984
        %986 = vmatmul.bf16.gmra.mxu0 %v778
        %v987 = vpop.f32.mrf.mxu0
        %v988 = vadd.f32 %v442, %v987
        %v989 = vpop.f32.mrf.mxu0
        %v990 = vadd.f32 %v442, %v989
        %991 = vmatmul.bf16.gmra.mxu0 %v781
        %v992 = vpop.f32.mrf.mxu0
        %v993 = vadd.f32 %v442, %v992
        %v994 = vpop.f32.mrf.mxu0
        %v995 = vadd.f32 %v442, %v994
        %996 = vmatmul.bf16.gmra.mxu0 %v784
        %v997 = vpop.f32.mrf.mxu0
        %v998 = vadd.f32 %v442, %v997
        %v999 = vpop.f32.mrf.mxu0
        %v1000 = vadd.f32 %v442, %v999
        %1001 = vmatmul.bf16.gmra.mxu0 %v787
        %v1002 = vpop.f32.mrf.mxu0
        %v1003 = vadd.f32 %v442, %v1002
        %v1004 = vpop.f32.mrf.mxu0
        %v1005 = vadd.f32 %v442, %v1004
        %1006 = vmatmul.bf16.gmra.mxu0 %v790
        %v1007 = vpop.f32.mrf.mxu0
        %v1008 = vadd.f32 %v442, %v1007
        %v1009 = vpop.f32.mrf.mxu0
        %v1010 = vadd.f32 %v442, %v1009
        %1011 = vmatmul.bf16.gmra.mxu0 %v793
        %v1012 = vpop.f32.mrf.mxu0
        %v1013 = vadd.f32 %v442, %v1012
        %v1014 = vpop.f32.mrf.mxu0
        %v1015 = vadd.f32 %v442, %v1014
        %1016 = vmatmul.bf16.gmra.mxu0 %v796
        %v1017 = vpop.f32.mrf.mxu0
        %v1018 = vadd.f32 %v442, %v1017
        %v1019 = vpop.f32.mrf.mxu0
        %v1020 = vadd.f32 %v442, %v1019
        %1021 = vmatmul.bf16.gmra.mxu0 %v799
        %v1022 = vpop.f32.mrf.mxu0
        %v1023 = vadd.f32 %v442, %v1022
        %v1024 = vpop.f32.mrf.mxu0
        %v1025 = vadd.f32 %v442, %v1024
        %1026 = vmatmul.bf16.gmra.mxu0 %v802
        %v1027 = vpop.f32.mrf.mxu0
        %v1028 = vadd.f32 %v442, %v1027
        %v1029 = vpop.f32.mrf.mxu0
        %v1030 = vadd.f32 %v442, %v1029
        %1031 = vmatmul.bf16.gmra.mxu0 %v805
        %v1032 = vpop.f32.mrf.mxu0
        %v1033 = vadd.f32 %v442, %v1032
        %v1034 = vpop.f32.mrf.mxu0
        %v1035 = vadd.f32 %v442, %v1034
        %1036 = vmatmul.bf16.gmra.mxu0 %v808
        %v1037 = vpop.f32.mrf.mxu0
        %v1038 = vadd.f32 %v442, %v1037
        %v1039 = vpop.f32.mrf.mxu0
        %v1040 = vadd.f32 %v442, %v1039
        %1041 = vmatmul.bf16.gmra.mxu0 %v811
        %v1042 = vpop.f32.mrf.mxu0
        %v1043 = vadd.f32 %v442, %v1042
        %v1044 = vpop.f32.mrf.mxu0
        %v1045 = vadd.f32 %v442, %v1044
        %1046 = vmatmul.bf16.gmra.mxu0 %v814
        %v1047 = vpop.f32.mrf.mxu0
        %v1048 = vadd.f32 %v442, %v1047
        %v1049 = vpop.f32.mrf.mxu0
        %v1050 = vadd.f32 %v442, %v1049
        %1051 = vmatmul.bf16.gmra.mxu0 %v817
        %v1052 = vpop.f32.mrf.mxu0
        %v1053 = vadd.f32 %v442, %v1052
        %v1054 = vpop.f32.mrf.mxu0
        %v1055 = vadd.f32 %v442, %v1054
        %1056 = vmatmul.bf16.gmra.mxu0 %v820
        %v1057 = vpop.f32.mrf.mxu0
        %v1058 = vadd.f32 %v442, %v1057
        %v1059 = vpop.f32.mrf.mxu0
        %v1060 = vadd.f32 %v442, %v1059
        %1061 = vmatmul.bf16.gmra.mxu0 %v823
        %v1062 = vpop.f32.mrf.mxu0
        %v1063 = vadd.f32 %v442, %v1062
        %v1064 = vpop.f32.mrf.mxu0
        %v1065 = vadd.f32 %v442, %v1064
        %1066 = vmatmul.bf16.gmra.mxu0 %v826
        %v1067 = vpop.f32.mrf.mxu0
        %v1068 = vadd.f32 %v442, %v1067
        %v1069 = vpop.f32.mrf.mxu0
        %v1070 = vadd.f32 %v442, %v1069
        %1071 = vmatmul.bf16.gmra.mxu0 %v829
        %v1072 = vpop.f32.mrf.mxu0
        %v1073 = vadd.f32 %v442, %v1072
        %v1074 = vpop.f32.mrf.mxu0
        %v1075 = vadd.f32 %v442, %v1074
        %1076 = vmatmul.bf16.gmra.mxu0 %v832
        %v1077 = vpop.f32.mrf.mxu0
        %v1078 = vadd.f32 %v442, %v1077
        %v1079 = vpop.f32.mrf.mxu0
        %v1080 = vadd.f32 %v442, %v1079
        %1081 = vmatmul.bf16.gmra.mxu0 %v835
        %v1082 = vpop.f32.mrf.mxu0
        %v1083 = vadd.f32 %v442, %v1082
        %v1084 = vpop.f32.mrf.mxu0
        %v1085 = vadd.f32 %v442, %v1084
        %1086 = vmatmul.bf16.gmra.mxu0 %v838
        %v1087 = vpop.f32.mrf.mxu0
        %v1088 = vadd.f32 %v442, %v1087
        %v1089 = vpop.f32.mrf.mxu0
        %v1090 = vadd.f32 %v442, %v1089
        %1091 = vmatmul.bf16.gmra.mxu0 %v841
        %v1092 = vpop.f32.mrf.mxu0
        %v1093 = vadd.f32 %v442, %v1092
        %v1094 = vpop.f32.mrf.mxu0
        %v1095 = vadd.f32 %v442, %v1094
        %1096 = vmatmul.bf16.gmra.mxu0 %v844
        %v1097 = vpop.f32.mrf.mxu0
        %v1098 = vadd.f32 %v442, %v1097
        %v1099 = vpop.f32.mrf.mxu0
        %v1100 = vadd.f32 %v442, %v1099
        %1101 = vmatmul.bf16.gmra.mxu0 %v847
        %v1102 = vpop.f32.mrf.mxu0
        %v1103 = vadd.f32 %v442, %v1102
        %v1104 = vpop.f32.mrf.mxu0
        %v1105 = vadd.f32 %v442, %v1104
        %1106 = vmatmul.bf16.gmra.mxu0 %v850
        %v1107 = vpop.f32.mrf.mxu0
        %v1108 = vadd.f32 %v442, %v1107
        %v1109 = vpop.f32.mrf.mxu0
        %v1110 = vadd.f32 %v442, %v1109
        %1111 = vmatmul.bf16.gmra.mxu0 %v853
        %v1112 = vpop.f32.mrf.mxu0
        %v1113 = vadd.f32 %v442, %v1112
        %v1114 = vpop.f32.mrf.mxu0
        %v1115 = vadd.f32 %v442, %v1114
        %1116 = vmatmul.bf16.gmra.mxu0 %v856
        %v1117 = vpop.f32.mrf.mxu0
        %v1118 = vadd.f32 %v442, %v1117
        %v1119 = vpop.f32.mrf.mxu0
        %v1120 = vadd.f32 %v442, %v1119
        %1121 = vmatmul.bf16.gmra.mxu0 %v859
        %v1122 = vpop.f32.mrf.mxu0
        %v1123 = vadd.f32 %v442, %v1122
        %v1124 = vpop.f32.mrf.mxu0
        %v1125 = vadd.f32 %v442, %v1124
        %1126 = vmatmul.bf16.gmra.mxu0 %v862
        %v1127 = vpop.f32.mrf.mxu0
        %v1128 = vadd.f32 %v442, %v1127
        %v1129 = vpop.f32.mrf.mxu0
        %v1130 = vadd.f32 %v442, %v1129
        %1131 = vmatmul.bf16.gmra.mxu0 %v865
        %v1132 = vpop.f32.mrf.mxu0
        %v1133 = vadd.f32 %v442, %v1132
        %v1134 = vpop.f32.mrf.mxu0
        %v1135 = vadd.f32 %v442, %v1134
        %1136 = vmatmul.bf16.gmra.mxu0 %v868
        %v1137 = vpop.f32.mrf.mxu0
        %v1138 = vadd.f32 %v442, %v1137
        %v1139 = vpop.f32.mrf.mxu0
        %v1140 = vadd.f32 %v442, %v1139
        %1141 = vmatmul.bf16.gmra.mxu0 %v871
        %v1142 = vpop.f32.mrf.mxu0
        %v1143 = vadd.f32 %v442, %v1142
        %v1144 = vpop.f32.mrf.mxu0
        %v1145 = vadd.f32 %v442, %v1144
        %1146 = vmatmul.bf16.gmra.mxu0 %v874
        %v1147 = vpop.f32.mrf.mxu0
        %v1148 = vadd.f32 %v442, %v1147
        %v1149 = vpop.f32.mrf.mxu0
        %v1150 = vadd.f32 %v442, %v1149
        %1151 = vmatmul.bf16.gmra.mxu0 %v877
        %v1152 = vpop.f32.mrf.mxu0
        %v1153 = vadd.f32 %v442, %v1152
        %v1154 = vpop.f32.mrf.mxu0
        %v1155 = vadd.f32 %v442, %v1154
        %1156 = vmatmul.bf16.gmra.mxu0 %v880
        %v1157 = vpop.f32.mrf.mxu0
        %v1158 = vadd.f32 %v442, %v1157
        %v1159 = vpop.f32.mrf.mxu0
        %v1160 = vadd.f32 %v442, %v1159
        %1161 = vmatmul.bf16.gmra.mxu0 %v883
        %v1162 = vpop.f32.mrf.mxu0
        %v1163 = vadd.f32 %v442, %v1162
        %v1164 = vpop.f32.mrf.mxu0
        %v1165 = vadd.f32 %v442, %v1164
        %1166 = vmatmul.bf16.gmra.mxu0 %v886
        %v1167 = vpop.f32.mrf.mxu0
        %v1168 = vadd.f32 %v442, %v1167
        %v1169 = vpop.f32.mrf.mxu0
        %v1170 = vadd.f32 %v442, %v1169
        %1171 = vmatmul.bf16.gmra.mxu0 %v889
        %v1172 = vpop.f32.mrf.mxu0
        %v1173 = vadd.f32 %v442, %v1172
        %v1174 = vpop.f32.mrf.mxu0
        %v1175 = vadd.f32 %v442, %v1174
        %1176 = vmatmul.bf16.gmra.mxu0 %v892
        %v1177 = vpop.f32.mrf.mxu0
        %v1178 = vadd.f32 %v442, %v1177
        %v1179 = vpop.f32.mrf.mxu0
        %v1180 = vadd.f32 %v442, %v1179
        %1181 = vmatmul.bf16.gmra.mxu0 %v895
        %v1182 = vpop.f32.mrf.mxu0
        %v1183 = vadd.f32 %v442, %v1182
        %v1184 = vpop.f32.mrf.mxu0
        %v1185 = vadd.f32 %v442, %v1184
        %1186 = vmatmul.bf16.gmra.mxu0 %v898
        %v1187 = vpop.f32.mrf.mxu0
        %v1188 = vadd.f32 %v442, %v1187
        %v1189 = vpop.f32.mrf.mxu0
        %v1190 = vadd.f32 %v442, %v1189
        %1191 = vmatmul.bf16.gmra.mxu0 %v901
        %v1192 = vpop.f32.mrf.mxu0
        %v1193 = vadd.f32 %v442, %v1192
        %v1194 = vpop.f32.mrf.mxu0
        %v1195 = vadd.f32 %v442, %v1194
        %1196 = vmatmul.bf16.gmra.mxu0 %v904
        %v1197 = vpop.f32.mrf.mxu0
        %v1198 = vadd.f32 %v442, %v1197
        %v1199 = vpop.f32.mrf.mxu0
        %v1200 = vadd.f32 %v442, %v1199
        %1201 = vmatmul.bf16.gmra.mxu0 %v907
        %v1202 = vpop.f32.mrf.mxu0
        %v1203 = vadd.f32 %v442, %v1202
        %v1204 = vpop.f32.mrf.mxu0
        %v1205 = vadd.f32 %v442, %v1204
        %1206 = vmatmul.bf16.gmra.mxu0 %v910
        %v1207 = vpop.f32.mrf.mxu0
        %v1208 = vadd.f32 %v442, %v1207
        %v1209 = vpop.f32.mrf.mxu0
        %v1210 = vadd.f32 %v442, %v1209
        %1211 = vmatmul.bf16.gmra.mxu0 %v913
        %v1212 = vpop.f32.mrf.mxu0
        %v1213 = vadd.f32 %v442, %v1212
        %v1214 = vpop.f32.mrf.mxu0
        %v1215 = vadd.f32 %v442, %v1214
        %1216 = vmatmul.bf16.gmra.mxu0 %v916
        %v1217 = vpop.f32.mrf.mxu0
        %v1218 = vadd.f32 %v442, %v1217
        %v1219 = vpop.f32.mrf.mxu0
        %v1220 = vadd.f32 %v442, %v1219
        %1221 = vmatmul.bf16.gmra.mxu0 %v919
        %v1222 = vpop.f32.mrf.mxu0
        %v1223 = vadd.f32 %v442, %v1222
        %v1224 = vpop.f32.mrf.mxu0
        %v1225 = vadd.f32 %v442, %v1224
        %1226 = vmatmul.bf16.gmra.mxu0 %v922
        %v1227 = vpop.f32.mrf.mxu0
        %v1228 = vadd.f32 %v442, %v1227
        %v1229 = vpop.f32.mrf.mxu0
        %v1230 = vadd.f32 %v442, %v1229
        %1231 = vmatmul.bf16.gmra.mxu0 %v925
        %v1232 = vpop.f32.mrf.mxu0
        %v1233 = vadd.f32 %v442, %v1232
        %v1234 = vpop.f32.mrf.mxu0
        %v1235 = vadd.f32 %v442, %v1234
        %1236 = vmatmul.bf16.gmra.mxu0 %v928
        %v1237 = vpop.f32.mrf.mxu0
        %v1238 = vadd.f32 %v442, %v1237
        %v1239 = vpop.f32.mrf.mxu0
        %v1240 = vadd.f32 %v442, %v1239
        %1241 = vmatmul.bf16.gmra.mxu0 %v931
        %v1242 = vpop.f32.mrf.mxu0
        %v1243 = vadd.f32 %v442, %v1242
        %v1244 = vpop.f32.mrf.mxu0
        %v1245 = vadd.f32 %v442, %v1244
        %1246 = vmatmul.bf16.gmra.mxu0 %v934
        %v1247 = vpop.f32.mrf.mxu0
        %v1248 = vadd.f32 %v442, %v1247
        %v1249 = vpop.f32.mrf.mxu0
        %v1250 = vadd.f32 %v442, %v1249
        %1251 = vmatmul.bf16.gmra.mxu0 %v937
        %v1252 = vpop.f32.mrf.mxu0
        %v1253 = vadd.f32 %v442, %v1252
        %v1254 = vpop.f32.mrf.mxu0
        %v1255 = vadd.f32 %v442, %v1254
        %1256 = vmatmul.bf16.gmra.mxu0 %v940
        %v1257 = vpop.f32.mrf.mxu0
        %v1258 = vadd.f32 %v442, %v1257
        %v1259 = vpop.f32.mrf.mxu0
        %v1260 = vadd.f32 %v442, %v1259
        %1261 = vmatmul.bf16.gmra.mxu0 %v943
        %v1262 = vpop.f32.mrf.mxu0
        %v1263 = vadd.f32 %v442, %v1262
        %v1264 = vpop.f32.mrf.mxu0
        %v1265 = vadd.f32 %v442, %v1264
        %1266 = vmatmul.bf16.gmra.mxu0 %v946
        %v1267 = vpop.f32.mrf.mxu0
        %v1268 = vadd.f32 %v442, %v1267
        %v1269 = vpop.f32.mrf.mxu0
        %v1270 = vadd.f32 %v442, %v1269
        %1271 = vmatmul.bf16.gmra.mxu0 %v949
        %v1272 = vpop.f32.mrf.mxu0
        %v1273 = vadd.f32 %v442, %v1272
        %v1274 = vpop.f32.mrf.mxu0
        %v1275 = vadd.f32 %v442, %v1274
        %1276 = vmatmul.bf16.gmra.mxu0 %v952
        %v1277 = vpop.f32.mrf.mxu0
        %v1278 = vadd.f32 %v442, %v1277
        %v1279 = vpop.f32.mrf.mxu0
        %v1280 = vadd.f32 %v442, %v1279
        %1281 = vmatmul.bf16.gmra.mxu0 %v955
        %v1282 = vpop.f32.mrf.mxu0
        %v1283 = vadd.f32 %v442, %v1282
        %v1284 = vpop.f32.mrf.mxu0
        %v1285 = vadd.f32 %v442, %v1284
        %1286 = vmatmul.bf16.gmra.mxu0 %v958
        %v1287 = vpop.f32.mrf.mxu0
        %v1288 = vadd.f32 %v442, %v1287
        %v1289 = vpop.f32.mrf.mxu0
        %v1290 = vadd.f32 %v442, %v1289
        %1291 = vmatmul.bf16.gmra.mxu0 %v961
        %v1292 = vpop.f32.mrf.mxu0
        %v1293 = vadd.f32 %v442, %v1292
        %v1294 = vpop.f32.mrf.mxu0
        %v1295 = vadd.f32 %v442, %v1294
        %1296 = vmatmul.bf16.gmra.mxu0 %v964
        %v1297 = vpop.f32.mrf.mxu0
        %v1298 = vadd.f32 %v442, %v1297
        %v1299 = vpop.f32.mrf.mxu0
        %v1300 = vadd.f32 %v442, %v1299
        %1301 = vdwg.mxu0
        %v1302 = vmax.f32 %v983, 0.0
        %v1303 = vmax.f32 %v985, 0.0
        %v1304 = vmax.f32 %v988, 0.0
        %v1305 = vmax.f32 %v990, 0.0
        %v1306 = vmax.f32 %v993, 0.0
        %v1307 = vmax.f32 %v995, 0.0
        %v1308 = vmax.f32 %v998, 0.0
        %v1309 = vmax.f32 %v1000, 0.0
        %v1310 = vmax.f32 %v1003, 0.0
        %v1311 = vmax.f32 %v1005, 0.0
        %v1312 = vmax.f32 %v1008, 0.0
        %v1313 = vmax.f32 %v1010, 0.0
        %v1314 = vmax.f32 %v1013, 0.0
        %v1315 = vmax.f32 %v1015, 0.0
        %v1316 = vmax.f32 %v1018, 0.0
        %v1317 = vmax.f32 %v1020, 0.0
        %v1318 = vmax.f32 %v1023, 0.0
        %v1319 = vmax.f32 %v1025, 0.0
        %v1320 = vmax.f32 %v1028, 0.0
        %v1321 = vmax.f32 %v1030, 0.0
        %v1322 = vmax.f32 %v1033, 0.0
        %v1323 = vmax.f32 %v1035, 0.0
        %v1324 = vmax.f32 %v1038, 0.0
        %v1325 = vmax.f32 %v1040, 0.0
        %v1326 = vmax.f32 %v1043, 0.0
        %v1327 = vmax.f32 %v1045, 0.0
        %v1328 = vmax.f32 %v1048, 0.0
        %v1329 = vmax.f32 %v1050, 0.0
        %v1330 = vmax.f32 %v1053, 0.0
        %v1331 = vmax.f32 %v1055, 0.0
        %v1332 = vmax.f32 %v1058, 0.0
        %v1333 = vmax.f32 %v1060, 0.0
        %v1334 = vmax.f32 %v1063, 0.0
        %v1335 = vmax.f32 %v1065, 0.0
        %v1336 = vmax.f32 %v1068, 0.0
        %v1337 = vmax.f32 %v1070, 0.0
        %v1338 = vmax.f32 %v1073, 0.0
        %v1339 = vmax.f32 %v1075, 0.0
        %v1340 = vmax.f32 %v1078, 0.0
        %v1341 = vmax.f32 %v1080, 0.0
        %v1342 = vmax.f32 %v1083, 0.0
        %v1343 = vmax.f32 %v1085, 0.0
        %v1344 = vmax.f32 %v1088, 0.0
        %v1345 = vmax.f32 %v1090, 0.0
        %v1346 = vmax.f32 %v1093, 0.0
        %v1347 = vmax.f32 %v1095, 0.0
        %v1348 = vmax.f32 %v1098, 0.0
        %v1349 = vmax.f32 %v1100, 0.0
        %v1350 = vmax.f32 %v1103, 0.0
        %v1351 = vmax.f32 %v1105, 0.0
        %v1352 = vmax.f32 %v1108, 0.0
        %v1353 = vmax.f32 %v1110, 0.0
        %v1354 = vmax.f32 %v1113, 0.0
        %v1355 = vmax.f32 %v1115, 0.0
        %v1356 = vmax.f32 %v1118, 0.0
        %v1357 = vmax.f32 %v1120, 0.0
        %v1358 = vmax.f32 %v1123, 0.0
        %v1359 = vmax.f32 %v1125, 0.0
        %v1360 = vmax.f32 %v1128, 0.0
        %v1361 = vmax.f32 %v1130, 0.0
        %v1362 = vmax.f32 %v1133, 0.0
        %v1363 = vmax.f32 %v1135, 0.0
        %v1364 = vmax.f32 %v1138, 0.0
        %v1365 = vmax.f32 %v1140, 0.0
        %v1366 = vmax.f32 %v1143, 0.0
        %v1367 = vmax.f32 %v1145, 0.0
        %v1368 = vmax.f32 %v1148, 0.0
        %v1369 = vmax.f32 %v1150, 0.0
        %v1370 = vmax.f32 %v1153, 0.0
        %v1371 = vmax.f32 %v1155, 0.0
        %v1372 = vmax.f32 %v1158, 0.0
        %v1373 = vmax.f32 %v1160, 0.0
        %v1374 = vmax.f32 %v1163, 0.0
        %v1375 = vmax.f32 %v1165, 0.0
        %v1376 = vmax.f32 %v1168, 0.0
        %v1377 = vmax.f32 %v1170, 0.0
        %v1378 = vmax.f32 %v1173, 0.0
        %v1379 = vmax.f32 %v1175, 0.0
        %v1380 = vmax.f32 %v1178, 0.0
        %v1381 = vmax.f32 %v1180, 0.0
        %v1382 = vmax.f32 %v1183, 0.0
        %v1383 = vmax.f32 %v1185, 0.0
        %v1384 = vmax.f32 %v1188, 0.0
        %v1385 = vmax.f32 %v1190, 0.0
        %v1386 = vmax.f32 %v1193, 0.0
        %v1387 = vmax.f32 %v1195, 0.0
        %v1388 = vmax.f32 %v1198, 0.0
        %v1389 = vmax.f32 %v1200, 0.0
        %v1390 = vmax.f32 %v1203, 0.0
        %v1391 = vmax.f32 %v1205, 0.0
        %v1392 = vmax.f32 %v1208, 0.0
        %v1393 = vmax.f32 %v1210, 0.0
        %v1394 = vmax.f32 %v1213, 0.0
        %v1395 = vmax.f32 %v1215, 0.0
        %v1396 = vmax.f32 %v1218, 0.0
        %v1397 = vmax.f32 %v1220, 0.0
        %v1398 = vmax.f32 %v1223, 0.0
        %v1399 = vmax.f32 %v1225, 0.0
        %v1400 = vmax.f32 %v1228, 0.0
        %v1401 = vmax.f32 %v1230, 0.0
        %v1402 = vmax.f32 %v1233, 0.0
        %v1403 = vmax.f32 %v1235, 0.0
        %v1404 = vmax.f32 %v1238, 0.0
        %v1405 = vmax.f32 %v1240, 0.0
        %v1406 = vmax.f32 %v1243, 0.0
        %v1407 = vmax.f32 %v1245, 0.0
        %v1408 = vmax.f32 %v1248, 0.0
        %v1409 = vmax.f32 %v1250, 0.0
        %v1410 = vmax.f32 %v1253, 0.0
        %v1411 = vmax.f32 %v1255, 0.0
        %v1412 = vmax.f32 %v1258, 0.0
        %v1413 = vmax.f32 %v1260, 0.0
        %v1414 = vmax.f32 %v1263, 0.0
        %v1415 = vmax.f32 %v1265, 0.0
        %v1416 = vmax.f32 %v1268, 0.0
        %v1417 = vmax.f32 %v1270, 0.0
        %v1418 = vmax.f32 %v1273, 0.0
        %v1419 = vmax.f32 %v1275, 0.0
        %v1420 = vmax.f32 %v1278, 0.0
        %v1421 = vmax.f32 %v1280, 0.0
        %v1422 = vmax.f32 %v1283, 0.0
        %v1423 = vmax.f32 %v1285, 0.0
        %v1424 = vmax.f32 %v1288, 0.0
        %v1425 = vmax.f32 %v1290, 0.0
        %v1426 = vmax.f32 %v1293, 0.0
        %v1427 = vmax.f32 %v1295, 0.0
        %v1428 = vmax.f32 %v1298, 0.0
        %v1429 = vmax.f32 %v1300, 0.0
        %v1430 = vpack.c.bf16 %v1303, %v1302
        %v1431 = vpack.c.bf16 %v1305, %v1304
        %v1432 = vpack.c.bf16 %v1307, %v1306
        %v1433 = vpack.c.bf16 %v1309, %v1308
        %v1434 = vpack.c.bf16 %v1311, %v1310
        %v1435 = vpack.c.bf16 %v1313, %v1312
        %v1436 = vpack.c.bf16 %v1315, %v1314
        %v1437 = vpack.c.bf16 %v1317, %v1316
        %v1438 = vpack.c.bf16 %v1319, %v1318
        %v1439 = vpack.c.bf16 %v1321, %v1320
        %v1440 = vpack.c.bf16 %v1323, %v1322
        %v1441 = vpack.c.bf16 %v1325, %v1324
        %v1442 = vpack.c.bf16 %v1327, %v1326
        %v1443 = vpack.c.bf16 %v1329, %v1328
        %v1444 = vpack.c.bf16 %v1331, %v1330
        %v1445 = vpack.c.bf16 %v1333, %v1332
        %v1446 = vpack.c.bf16 %v1335, %v1334
        %v1447 = vpack.c.bf16 %v1337, %v1336
        %v1448 = vpack.c.bf16 %v1339, %v1338
        %v1449 = vpack.c.bf16 %v1341, %v1340
        %v1450 = vpack.c.bf16 %v1343, %v1342
        %v1451 = vpack.c.bf16 %v1345, %v1344
        %v1452 = vpack.c.bf16 %v1347, %v1346
        %v1453 = vpack.c.bf16 %v1349, %v1348
        %v1454 = vpack.c.bf16 %v1351, %v1350
        %v1455 = vpack.c.bf16 %v1353, %v1352
        %v1456 = vpack.c.bf16 %v1355, %v1354
        %v1457 = vpack.c.bf16 %v1357, %v1356
        %v1458 = vpack.c.bf16 %v1359, %v1358
        %v1459 = vpack.c.bf16 %v1361, %v1360
        %v1460 = vpack.c.bf16 %v1363, %v1362
        %v1461 = vpack.c.bf16 %v1365, %v1364
        %v1462 = vpack.c.bf16 %v1367, %v1366
        %v1463 = vpack.c.bf16 %v1369, %v1368
        %v1464 = vpack.c.bf16 %v1371, %v1370
        %v1465 = vpack.c.bf16 %v1373, %v1372
        %v1466 = vpack.c.bf16 %v1375, %v1374
        %v1467 = vpack.c.bf16 %v1377, %v1376
        %v1468 = vpack.c.bf16 %v1379, %v1378
        %v1469 = vpack.c.bf16 %v1381, %v1380
        %v1470 = vpack.c.bf16 %v1383, %v1382
        %v1471 = vpack.c.bf16 %v1385, %v1384
        %v1472 = vpack.c.bf16 %v1387, %v1386
        %v1473 = vpack.c.bf16 %v1389, %v1388
        %v1474 = vpack.c.bf16 %v1391, %v1390
        %v1475 = vpack.c.bf16 %v1393, %v1392
        %v1476 = vpack.c.bf16 %v1395, %v1394
        %v1477 = vpack.c.bf16 %v1397, %v1396
        %v1478 = vpack.c.bf16 %v1399, %v1398
        %v1479 = vpack.c.bf16 %v1401, %v1400
        %v1480 = vpack.c.bf16 %v1403, %v1402
        %v1481 = vpack.c.bf16 %v1405, %v1404
        %v1482 = vpack.c.bf16 %v1407, %v1406
        %v1483 = vpack.c.bf16 %v1409, %v1408
        %v1484 = vpack.c.bf16 %v1411, %v1410
        %v1485 = vpack.c.bf16 %v1413, %v1412
        %v1486 = vpack.c.bf16 %v1415, %v1414
        %v1487 = vpack.c.bf16 %v1417, %v1416
        %v1488 = vpack.c.bf16 %v1419, %v1418
        %v1489 = vpack.c.bf16 %v1421, %v1420
        %v1490 = vpack.c.bf16 %v1423, %v1422
        %v1491 = vpack.c.bf16 %v1425, %v1424
        %v1492 = vpack.c.bf16 %v1427, %v1426
        %v1493 = vpack.c.bf16 %v1429, %v1428
        %v1494 = vld [vmem:[%s3] sm:$0xf]
        %v1495 = vld [vmem:[%s3 + $0x4] sm:$0xf]
        %v1496 = vld [vmem:[%s3 + $0x8] sm:$0xf]
        %v1497 = vld [vmem:[%s3 + $0xc] sm:$0xf]
        %v1498 = vld [vmem:[%s4] sm:$0x1]
        %v1500 = vperm.slane %v1498, 0
        %v1506 = vunpack.c.l.b16 %v1494
        %v1507 = vunpack.c.l.b16 %v1495
        %v1508 = vunpack.c.l.b16 %v1496
        %v1509 = vunpack.c.l.b16 %v1497
        %v1510 = vpack.c.b16 %v1507, %v1506
        %v1511 = vpack.c.b16 %v1509, %v1508
        %vm1514 = vcmask 261120
        %v1516 = vsel %vm1514, %v1430, 0
        %v1519 = vsel %vm1514, %v1431, 0
        %v1522 = vsel %vm1514, %v1432, 0
        %v1525 = vsel %vm1514, %v1433, 0
        %v1528 = vsel %vm1514, %v1434, 0
        %v1531 = vsel %vm1514, %v1435, 0
        %v1534 = vsel %vm1514, %v1436, 0
        %v1537 = vsel %vm1514, %v1437, 0
        %v1540 = vsel %vm1514, %v1438, 0
        %v1543 = vsel %vm1514, %v1439, 0
        %v1546 = vsel %vm1514, %v1440, 0
        %v1549 = vsel %vm1514, %v1441, 0
        %v1552 = vsel %vm1514, %v1442, 0
        %v1555 = vsel %vm1514, %v1443, 0
        %v1558 = vsel %vm1514, %v1444, 0
        %v1561 = vsel %vm1514, %v1445, 0
        %v1564 = vsel %vm1514, %v1446, 0
        %v1567 = vsel %vm1514, %v1447, 0
        %v1570 = vsel %vm1514, %v1448, 0
        %v1573 = vsel %vm1514, %v1449, 0
        %v1576 = vsel %vm1514, %v1450, 0
        %v1579 = vsel %vm1514, %v1451, 0
        %v1582 = vsel %vm1514, %v1452, 0
        %v1585 = vsel %vm1514, %v1453, 0
        %v1588 = vsel %vm1514, %v1454, 0
        %v1591 = vsel %vm1514, %v1455, 0
        %v1594 = vsel %vm1514, %v1456, 0
        %v1597 = vsel %vm1514, %v1457, 0
        %v1600 = vsel %vm1514, %v1458, 0
        %v1603 = vsel %vm1514, %v1459, 0
        %v1606 = vsel %vm1514, %v1460, 0
        %v1609 = vsel %vm1514, %v1461, 0
        %v1612 = vsel %vm1514, %v1462, 0
        %v1615 = vsel %vm1514, %v1463, 0
        %v1618 = vsel %vm1514, %v1464, 0
        %v1621 = vsel %vm1514, %v1465, 0
        %v1624 = vsel %vm1514, %v1466, 0
        %v1627 = vsel %vm1514, %v1467, 0
        %v1630 = vsel %vm1514, %v1468, 0
        %v1633 = vsel %vm1514, %v1469, 0
        %v1636 = vsel %vm1514, %v1470, 0
        %v1639 = vsel %vm1514, %v1471, 0
        %v1642 = vsel %vm1514, %v1472, 0
        %v1645 = vsel %vm1514, %v1473, 0
        %v1648 = vsel %vm1514, %v1474, 0
        %v1651 = vsel %vm1514, %v1475, 0
        %v1654 = vsel %vm1514, %v1476, 0
        %v1657 = vsel %vm1514, %v1477, 0
        %v1660 = vsel %vm1514, %v1478, 0
        %v1663 = vsel %vm1514, %v1479, 0
        %v1666 = vsel %vm1514, %v1480, 0
        %v1669 = vsel %vm1514, %v1481, 0
        %v1672 = vsel %vm1514, %v1482, 0
        %v1675 = vsel %vm1514, %v1483, 0
        %v1678 = vsel %vm1514, %v1484, 0
        %v1681 = vsel %vm1514, %v1485, 0
        %v1684 = vsel %vm1514, %v1486, 0
        %v1687 = vsel %vm1514, %v1487, 0
        %v1690 = vsel %vm1514, %v1488, 0
        %v1693 = vsel %vm1514, %v1489, 0
        %v1696 = vsel %vm1514, %v1490, 0
        %v1699 = vsel %vm1514, %v1491, 0
        %v1702 = vsel %vm1514, %v1492, 0
        %v1705 = vsel %vm1514, %v1493, 0
        %1707 = vmatpush.bf16.msra.mxu0 0
        %1708 = vmatpush.bf16.msra.mxu0 0
        %1709 = vmatpush.bf16.msra.mxu0 0
        %1710 = vmatpush.bf16.msra.mxu0 0
        %1711 = vmatpush.bf16.msra.mxu0 0
        %1712 = vmatpush.bf16.msra.mxu0 0
        %1713 = vmatpush.bf16.msra.mxu0 %v1511
        %1714 = vmatpush.bf16.msra.mxu0 %v1510
        %1715 = vmatmul.bf16.gmra.mxu0 %v1516
        %v1716 = vpop.f32.mrf.mxu0
        %v1717 = vadd.f32 %v1500, %v1716
        %v1718 = vpop.f32.mrf.mxu0
        %v1719 = vadd.f32 %v1500, %v1718
        %1720 = vmatmul.bf16.gmra.mxu0 %v1519
        %v1721 = vpop.f32.mrf.mxu0
        %v1722 = vadd.f32 %v1500, %v1721
        %v1723 = vpop.f32.mrf.mxu0
        %v1724 = vadd.f32 %v1500, %v1723
        %1725 = vmatmul.bf16.gmra.mxu0 %v1522
        %v1726 = vpop.f32.mrf.mxu0
        %v1727 = vadd.f32 %v1500, %v1726
        %v1728 = vpop.f32.mrf.mxu0
        %v1729 = vadd.f32 %v1500, %v1728
        %1730 = vmatmul.bf16.gmra.mxu0 %v1525
        %v1731 = vpop.f32.mrf.mxu0
        %v1732 = vadd.f32 %v1500, %v1731
        %v1733 = vpop.f32.mrf.mxu0
        %v1734 = vadd.f32 %v1500, %v1733
        %1735 = vmatmul.bf16.gmra.mxu0 %v1528
        %v1736 = vpop.f32.mrf.mxu0
        %v1737 = vadd.f32 %v1500, %v1736
        %v1738 = vpop.f32.mrf.mxu0
        %v1739 = vadd.f32 %v1500, %v1738
        %1740 = vmatmul.bf16.gmra.mxu0 %v1531
        %v1741 = vpop.f32.mrf.mxu0
        %v1742 = vadd.f32 %v1500, %v1741
        %v1743 = vpop.f32.mrf.mxu0
        %v1744 = vadd.f32 %v1500, %v1743
        %1745 = vmatmul.bf16.gmra.mxu0 %v1534
        %v1746 = vpop.f32.mrf.mxu0
        %v1747 = vadd.f32 %v1500, %v1746
        %v1748 = vpop.f32.mrf.mxu0
        %v1749 = vadd.f32 %v1500, %v1748
        %1750 = vmatmul.bf16.gmra.mxu0 %v1537
        %v1751 = vpop.f32.mrf.mxu0
        %v1752 = vadd.f32 %v1500, %v1751
        %v1753 = vpop.f32.mrf.mxu0
        %v1754 = vadd.f32 %v1500, %v1753
        %1755 = vmatmul.bf16.gmra.mxu0 %v1540
        %v1756 = vpop.f32.mrf.mxu0
        %v1757 = vadd.f32 %v1500, %v1756
        %v1758 = vpop.f32.mrf.mxu0
        %v1759 = vadd.f32 %v1500, %v1758
        %1760 = vmatmul.bf16.gmra.mxu0 %v1543
        %v1761 = vpop.f32.mrf.mxu0
        %v1762 = vadd.f32 %v1500, %v1761
        %v1763 = vpop.f32.mrf.mxu0
        %v1764 = vadd.f32 %v1500, %v1763
        %1765 = vmatmul.bf16.gmra.mxu0 %v1546
        %v1766 = vpop.f32.mrf.mxu0
        %v1767 = vadd.f32 %v1500, %v1766
        %v1768 = vpop.f32.mrf.mxu0
        %v1769 = vadd.f32 %v1500, %v1768
        %1770 = vmatmul.bf16.gmra.mxu0 %v1549
        %v1771 = vpop.f32.mrf.mxu0
        %v1772 = vadd.f32 %v1500, %v1771
        %v1773 = vpop.f32.mrf.mxu0
        %v1774 = vadd.f32 %v1500, %v1773
        %1775 = vmatmul.bf16.gmra.mxu0 %v1552
        %v1776 = vpop.f32.mrf.mxu0
        %v1777 = vadd.f32 %v1500, %v1776
        %v1778 = vpop.f32.mrf.mxu0
        %v1779 = vadd.f32 %v1500, %v1778
        %1780 = vmatmul.bf16.gmra.mxu0 %v1555
        %v1781 = vpop.f32.mrf.mxu0
        %v1782 = vadd.f32 %v1500, %v1781
        %v1783 = vpop.f32.mrf.mxu0
        %v1784 = vadd.f32 %v1500, %v1783
        %1785 = vmatmul.bf16.gmra.mxu0 %v1558
        %v1786 = vpop.f32.mrf.mxu0
        %v1787 = vadd.f32 %v1500, %v1786
        %v1788 = vpop.f32.mrf.mxu0
        %v1789 = vadd.f32 %v1500, %v1788
        %1790 = vmatmul.bf16.gmra.mxu0 %v1561
        %v1791 = vpop.f32.mrf.mxu0
        %v1792 = vadd.f32 %v1500, %v1791
        %v1793 = vpop.f32.mrf.mxu0
        %v1794 = vadd.f32 %v1500, %v1793
        %1795 = vmatmul.bf16.gmra.mxu0 %v1564
        %v1796 = vpop.f32.mrf.mxu0
        %v1797 = vadd.f32 %v1500, %v1796
        %v1798 = vpop.f32.mrf.mxu0
        %v1799 = vadd.f32 %v1500, %v1798
        %1800 = vmatmul.bf16.gmra.mxu0 %v1567
        %v1801 = vpop.f32.mrf.mxu0
        %v1802 = vadd.f32 %v1500, %v1801
        %v1803 = vpop.f32.mrf.mxu0
        %v1804 = vadd.f32 %v1500, %v1803
        %1805 = vmatmul.bf16.gmra.mxu0 %v1570
        %v1806 = vpop.f32.mrf.mxu0
        %v1807 = vadd.f32 %v1500, %v1806
        %v1808 = vpop.f32.mrf.mxu0
        %v1809 = vadd.f32 %v1500, %v1808
        %1810 = vmatmul.bf16.gmra.mxu0 %v1573
        %v1811 = vpop.f32.mrf.mxu0
        %v1812 = vadd.f32 %v1500, %v1811
        %v1813 = vpop.f32.mrf.mxu0
        %v1814 = vadd.f32 %v1500, %v1813
        %1815 = vmatmul.bf16.gmra.mxu0 %v1576
        %v1816 = vpop.f32.mrf.mxu0
        %v1817 = vadd.f32 %v1500, %v1816
        %v1818 = vpop.f32.mrf.mxu0
        %v1819 = vadd.f32 %v1500, %v1818
        %1820 = vmatmul.bf16.gmra.mxu0 %v1579
        %v1821 = vpop.f32.mrf.mxu0
        %v1822 = vadd.f32 %v1500, %v1821
        %v1823 = vpop.f32.mrf.mxu0
        %v1824 = vadd.f32 %v1500, %v1823
        %1825 = vmatmul.bf16.gmra.mxu0 %v1582
        %v1826 = vpop.f32.mrf.mxu0
        %v1827 = vadd.f32 %v1500, %v1826
        %v1828 = vpop.f32.mrf.mxu0
        %v1829 = vadd.f32 %v1500, %v1828
        %1830 = vmatmul.bf16.gmra.mxu0 %v1585
        %v1831 = vpop.f32.mrf.mxu0
        %v1832 = vadd.f32 %v1500, %v1831
        %v1833 = vpop.f32.mrf.mxu0
        %v1834 = vadd.f32 %v1500, %v1833
        %1835 = vmatmul.bf16.gmra.mxu0 %v1588
        %v1836 = vpop.f32.mrf.mxu0
        %v1837 = vadd.f32 %v1500, %v1836
        %v1838 = vpop.f32.mrf.mxu0
        %v1839 = vadd.f32 %v1500, %v1838
        %1840 = vmatmul.bf16.gmra.mxu0 %v1591
        %v1841 = vpop.f32.mrf.mxu0
        %v1842 = vadd.f32 %v1500, %v1841
        %v1843 = vpop.f32.mrf.mxu0
        %v1844 = vadd.f32 %v1500, %v1843
        %1845 = vmatmul.bf16.gmra.mxu0 %v1594
        %v1846 = vpop.f32.mrf.mxu0
        %v1847 = vadd.f32 %v1500, %v1846
        %v1848 = vpop.f32.mrf.mxu0
        %v1849 = vadd.f32 %v1500, %v1848
        %1850 = vmatmul.bf16.gmra.mxu0 %v1597
        %v1851 = vpop.f32.mrf.mxu0
        %v1852 = vadd.f32 %v1500, %v1851
        %v1853 = vpop.f32.mrf.mxu0
        %v1854 = vadd.f32 %v1500, %v1853
        %1855 = vmatmul.bf16.gmra.mxu0 %v1600
        %v1856 = vpop.f32.mrf.mxu0
        %v1857 = vadd.f32 %v1500, %v1856
        %v1858 = vpop.f32.mrf.mxu0
        %v1859 = vadd.f32 %v1500, %v1858
        %1860 = vmatmul.bf16.gmra.mxu0 %v1603
        %v1861 = vpop.f32.mrf.mxu0
        %v1862 = vadd.f32 %v1500, %v1861
        %v1863 = vpop.f32.mrf.mxu0
        %v1864 = vadd.f32 %v1500, %v1863
        %1865 = vmatmul.bf16.gmra.mxu0 %v1606
        %v1866 = vpop.f32.mrf.mxu0
        %v1867 = vadd.f32 %v1500, %v1866
        %v1868 = vpop.f32.mrf.mxu0
        %v1869 = vadd.f32 %v1500, %v1868
        %1870 = vmatmul.bf16.gmra.mxu0 %v1609
        %v1871 = vpop.f32.mrf.mxu0
        %v1872 = vadd.f32 %v1500, %v1871
        %v1873 = vpop.f32.mrf.mxu0
        %v1874 = vadd.f32 %v1500, %v1873
        %1875 = vmatmul.bf16.gmra.mxu0 %v1612
        %v1876 = vpop.f32.mrf.mxu0
        %v1877 = vadd.f32 %v1500, %v1876
        %v1878 = vpop.f32.mrf.mxu0
        %v1879 = vadd.f32 %v1500, %v1878
        %1880 = vmatmul.bf16.gmra.mxu0 %v1615
        %v1881 = vpop.f32.mrf.mxu0
        %v1882 = vadd.f32 %v1500, %v1881
        %v1883 = vpop.f32.mrf.mxu0
        %v1884 = vadd.f32 %v1500, %v1883
        %1885 = vmatmul.bf16.gmra.mxu0 %v1618
        %v1886 = vpop.f32.mrf.mxu0
        %v1887 = vadd.f32 %v1500, %v1886
        %v1888 = vpop.f32.mrf.mxu0
        %v1889 = vadd.f32 %v1500, %v1888
        %1890 = vmatmul.bf16.gmra.mxu0 %v1621
        %v1891 = vpop.f32.mrf.mxu0
        %v1892 = vadd.f32 %v1500, %v1891
        %v1893 = vpop.f32.mrf.mxu0
        %v1894 = vadd.f32 %v1500, %v1893
        %1895 = vmatmul.bf16.gmra.mxu0 %v1624
        %v1896 = vpop.f32.mrf.mxu0
        %v1897 = vadd.f32 %v1500, %v1896
        %v1898 = vpop.f32.mrf.mxu0
        %v1899 = vadd.f32 %v1500, %v1898
        %1900 = vmatmul.bf16.gmra.mxu0 %v1627
        %v1901 = vpop.f32.mrf.mxu0
        %v1902 = vadd.f32 %v1500, %v1901
        %v1903 = vpop.f32.mrf.mxu0
        %v1904 = vadd.f32 %v1500, %v1903
        %1905 = vmatmul.bf16.gmra.mxu0 %v1630
        %v1906 = vpop.f32.mrf.mxu0
        %v1907 = vadd.f32 %v1500, %v1906
        %v1908 = vpop.f32.mrf.mxu0
        %v1909 = vadd.f32 %v1500, %v1908
        %1910 = vmatmul.bf16.gmra.mxu0 %v1633
        %v1911 = vpop.f32.mrf.mxu0
        %v1912 = vadd.f32 %v1500, %v1911
        %v1913 = vpop.f32.mrf.mxu0
        %v1914 = vadd.f32 %v1500, %v1913
        %1915 = vmatmul.bf16.gmra.mxu0 %v1636
        %v1916 = vpop.f32.mrf.mxu0
        %v1917 = vadd.f32 %v1500, %v1916
        %v1918 = vpop.f32.mrf.mxu0
        %v1919 = vadd.f32 %v1500, %v1918
        %1920 = vmatmul.bf16.gmra.mxu0 %v1639
        %v1921 = vpop.f32.mrf.mxu0
        %v1922 = vadd.f32 %v1500, %v1921
        %v1923 = vpop.f32.mrf.mxu0
        %v1924 = vadd.f32 %v1500, %v1923
        %1925 = vmatmul.bf16.gmra.mxu0 %v1642
        %v1926 = vpop.f32.mrf.mxu0
        %v1927 = vadd.f32 %v1500, %v1926
        %v1928 = vpop.f32.mrf.mxu0
        %v1929 = vadd.f32 %v1500, %v1928
        %1930 = vmatmul.bf16.gmra.mxu0 %v1645
        %v1931 = vpop.f32.mrf.mxu0
        %v1932 = vadd.f32 %v1500, %v1931
        %v1933 = vpop.f32.mrf.mxu0
        %v1934 = vadd.f32 %v1500, %v1933
        %1935 = vmatmul.bf16.gmra.mxu0 %v1648
        %v1936 = vpop.f32.mrf.mxu0
        %v1937 = vadd.f32 %v1500, %v1936
        %v1938 = vpop.f32.mrf.mxu0
        %v1939 = vadd.f32 %v1500, %v1938
        %1940 = vmatmul.bf16.gmra.mxu0 %v1651
        %v1941 = vpop.f32.mrf.mxu0
        %v1942 = vadd.f32 %v1500, %v1941
        %v1943 = vpop.f32.mrf.mxu0
        %v1944 = vadd.f32 %v1500, %v1943
        %1945 = vmatmul.bf16.gmra.mxu0 %v1654
        %v1946 = vpop.f32.mrf.mxu0
        %v1947 = vadd.f32 %v1500, %v1946
        %v1948 = vpop.f32.mrf.mxu0
        %v1949 = vadd.f32 %v1500, %v1948
        %1950 = vmatmul.bf16.gmra.mxu0 %v1657
        %v1951 = vpop.f32.mrf.mxu0
        %v1952 = vadd.f32 %v1500, %v1951
        %v1953 = vpop.f32.mrf.mxu0
        %v1954 = vadd.f32 %v1500, %v1953
        %1955 = vmatmul.bf16.gmra.mxu0 %v1660
        %v1956 = vpop.f32.mrf.mxu0
        %v1957 = vadd.f32 %v1500, %v1956
        %v1958 = vpop.f32.mrf.mxu0
        %v1959 = vadd.f32 %v1500, %v1958
        %1960 = vmatmul.bf16.gmra.mxu0 %v1663
        %v1961 = vpop.f32.mrf.mxu0
        %v1962 = vadd.f32 %v1500, %v1961
        %v1963 = vpop.f32.mrf.mxu0
        %v1964 = vadd.f32 %v1500, %v1963
        %1965 = vmatmul.bf16.gmra.mxu0 %v1666
        %v1966 = vpop.f32.mrf.mxu0
        %v1967 = vadd.f32 %v1500, %v1966
        %v1968 = vpop.f32.mrf.mxu0
        %v1969 = vadd.f32 %v1500, %v1968
        %1970 = vmatmul.bf16.gmra.mxu0 %v1669
        %v1971 = vpop.f32.mrf.mxu0
        %v1972 = vadd.f32 %v1500, %v1971
        %v1973 = vpop.f32.mrf.mxu0
        %v1974 = vadd.f32 %v1500, %v1973
        %1975 = vmatmul.bf16.gmra.mxu0 %v1672
        %v1976 = vpop.f32.mrf.mxu0
        %v1977 = vadd.f32 %v1500, %v1976
        %v1978 = vpop.f32.mrf.mxu0
        %v1979 = vadd.f32 %v1500, %v1978
        %1980 = vmatmul.bf16.gmra.mxu0 %v1675
        %v1981 = vpop.f32.mrf.mxu0
        %v1982 = vadd.f32 %v1500, %v1981
        %v1983 = vpop.f32.mrf.mxu0
        %v1984 = vadd.f32 %v1500, %v1983
        %1985 = vmatmul.bf16.gmra.mxu0 %v1678
        %v1986 = vpop.f32.mrf.mxu0
        %v1987 = vadd.f32 %v1500, %v1986
        %v1988 = vpop.f32.mrf.mxu0
        %v1989 = vadd.f32 %v1500, %v1988
        %1990 = vmatmul.bf16.gmra.mxu0 %v1681
        %v1991 = vpop.f32.mrf.mxu0
        %v1992 = vadd.f32 %v1500, %v1991
        %v1993 = vpop.f32.mrf.mxu0
        %v1994 = vadd.f32 %v1500, %v1993
        %1995 = vmatmul.bf16.gmra.mxu0 %v1684
        %v1996 = vpop.f32.mrf.mxu0
        %v1997 = vadd.f32 %v1500, %v1996
        %v1998 = vpop.f32.mrf.mxu0
        %v1999 = vadd.f32 %v1500, %v1998
        %2000 = vmatmul.bf16.gmra.mxu0 %v1687
        %v2001 = vpop.f32.mrf.mxu0
        %v2002 = vadd.f32 %v1500, %v2001
        %v2003 = vpop.f32.mrf.mxu0
        %v2004 = vadd.f32 %v1500, %v2003
        %2005 = vmatmul.bf16.gmra.mxu0 %v1690
        %v2006 = vpop.f32.mrf.mxu0
        %v2007 = vadd.f32 %v1500, %v2006
        %v2008 = vpop.f32.mrf.mxu0
        %v2009 = vadd.f32 %v1500, %v2008
        %2010 = vmatmul.bf16.gmra.mxu0 %v1693
        %v2011 = vpop.f32.mrf.mxu0
        %v2012 = vadd.f32 %v1500, %v2011
        %v2013 = vpop.f32.mrf.mxu0
        %v2014 = vadd.f32 %v1500, %v2013
        %2015 = vmatmul.bf16.gmra.mxu0 %v1696
        %v2016 = vpop.f32.mrf.mxu0
        %v2017 = vadd.f32 %v1500, %v2016
        %v2018 = vpop.f32.mrf.mxu0
        %v2019 = vadd.f32 %v1500, %v2018
        %2020 = vmatmul.bf16.gmra.mxu0 %v1699
        %v2021 = vpop.f32.mrf.mxu0
        %v2022 = vadd.f32 %v1500, %v2021
        %v2023 = vpop.f32.mrf.mxu0
        %v2024 = vadd.f32 %v1500, %v2023
        %2025 = vmatmul.bf16.gmra.mxu0 %v1702
        %v2026 = vpop.f32.mrf.mxu0
        %v2027 = vadd.f32 %v1500, %v2026
        %v2028 = vpop.f32.mrf.mxu0
        %v2029 = vadd.f32 %v1500, %v2028
        %2030 = vmatmul.bf16.gmra.mxu0 %v1705
        %v2031 = vpop.f32.mrf.mxu0
        %v2032 = vadd.f32 %v1500, %v2031
        %v2033 = vpop.f32.mrf.mxu0
        %v2034 = vadd.f32 %v1500, %v2033
        %2035 = vdwg.mxu0
        %v2036 = vmax.f32 %v1717, 0.0
        %v2037 = vmax.f32 %v1719, 0.0
        %v2038 = vmax.f32 %v1722, 0.0
        %v2039 = vmax.f32 %v1724, 0.0
        %v2040 = vmax.f32 %v1727, 0.0
        %v2041 = vmax.f32 %v1729, 0.0
        %v2042 = vmax.f32 %v1732, 0.0
        %v2043 = vmax.f32 %v1734, 0.0
        %v2044 = vmax.f32 %v1737, 0.0
        %v2045 = vmax.f32 %v1739, 0.0
        %v2046 = vmax.f32 %v1742, 0.0
        %v2047 = vmax.f32 %v1744, 0.0
        %v2048 = vmax.f32 %v1747, 0.0
        %v2049 = vmax.f32 %v1749, 0.0
        %v2050 = vmax.f32 %v1752, 0.0
        %v2051 = vmax.f32 %v1754, 0.0
        %v2052 = vmax.f32 %v1757, 0.0
        %v2053 = vmax.f32 %v1759, 0.0
        %v2054 = vmax.f32 %v1762, 0.0
        %v2055 = vmax.f32 %v1764, 0.0
        %v2056 = vmax.f32 %v1767, 0.0
        %v2057 = vmax.f32 %v1769, 0.0
        %v2058 = vmax.f32 %v1772, 0.0
        %v2059 = vmax.f32 %v1774, 0.0
        %v2060 = vmax.f32 %v1777, 0.0
        %v2061 = vmax.f32 %v1779, 0.0
        %v2062 = vmax.f32 %v1782, 0.0
        %v2063 = vmax.f32 %v1784, 0.0
        %v2064 = vmax.f32 %v1787, 0.0
        %v2065 = vmax.f32 %v1789, 0.0
        %v2066 = vmax.f32 %v1792, 0.0
        %v2067 = vmax.f32 %v1794, 0.0
        %v2068 = vmax.f32 %v1797, 0.0
        %v2069 = vmax.f32 %v1799, 0.0
        %v2070 = vmax.f32 %v1802, 0.0
        %v2071 = vmax.f32 %v1804, 0.0
        %v2072 = vmax.f32 %v1807, 0.0
        %v2073 = vmax.f32 %v1809, 0.0
        %v2074 = vmax.f32 %v1812, 0.0
        %v2075 = vmax.f32 %v1814, 0.0
        %v2076 = vmax.f32 %v1817, 0.0
        %v2077 = vmax.f32 %v1819, 0.0
        %v2078 = vmax.f32 %v1822, 0.0
        %v2079 = vmax.f32 %v1824, 0.0
        %v2080 = vmax.f32 %v1827, 0.0
        %v2081 = vmax.f32 %v1829, 0.0
        %v2082 = vmax.f32 %v1832, 0.0
        %v2083 = vmax.f32 %v1834, 0.0
        %v2084 = vmax.f32 %v1837, 0.0
        %v2085 = vmax.f32 %v1839, 0.0
        %v2086 = vmax.f32 %v1842, 0.0
        %v2087 = vmax.f32 %v1844, 0.0
        %v2088 = vmax.f32 %v1847, 0.0
        %v2089 = vmax.f32 %v1849, 0.0
        %v2090 = vmax.f32 %v1852, 0.0
        %v2091 = vmax.f32 %v1854, 0.0
        %v2092 = vmax.f32 %v1857, 0.0
        %v2093 = vmax.f32 %v1859, 0.0
        %v2094 = vmax.f32 %v1862, 0.0
        %v2095 = vmax.f32 %v1864, 0.0
        %v2096 = vmax.f32 %v1867, 0.0
        %v2097 = vmax.f32 %v1869, 0.0
        %v2098 = vmax.f32 %v1872, 0.0
        %v2099 = vmax.f32 %v1874, 0.0
        %v2100 = vmax.f32 %v1877, 0.0
        %v2101 = vmax.f32 %v1879, 0.0
        %v2102 = vmax.f32 %v1882, 0.0
        %v2103 = vmax.f32 %v1884, 0.0
        %v2104 = vmax.f32 %v1887, 0.0
        %v2105 = vmax.f32 %v1889, 0.0
        %v2106 = vmax.f32 %v1892, 0.0
        %v2107 = vmax.f32 %v1894, 0.0
        %v2108 = vmax.f32 %v1897, 0.0
        %v2109 = vmax.f32 %v1899, 0.0
        %v2110 = vmax.f32 %v1902, 0.0
        %v2111 = vmax.f32 %v1904, 0.0
        %v2112 = vmax.f32 %v1907, 0.0
        %v2113 = vmax.f32 %v1909, 0.0
        %v2114 = vmax.f32 %v1912, 0.0
        %v2115 = vmax.f32 %v1914, 0.0
        %v2116 = vmax.f32 %v1917, 0.0
        %v2117 = vmax.f32 %v1919, 0.0
        %v2118 = vmax.f32 %v1922, 0.0
        %v2119 = vmax.f32 %v1924, 0.0
        %v2120 = vmax.f32 %v1927, 0.0
        %v2121 = vmax.f32 %v1929, 0.0
        %v2122 = vmax.f32 %v1932, 0.0
        %v2123 = vmax.f32 %v1934, 0.0
        %v2124 = vmax.f32 %v1937, 0.0
        %v2125 = vmax.f32 %v1939, 0.0
        %v2126 = vmax.f32 %v1942, 0.0
        %v2127 = vmax.f32 %v1944, 0.0
        %v2128 = vmax.f32 %v1947, 0.0
        %v2129 = vmax.f32 %v1949, 0.0
        %v2130 = vmax.f32 %v1952, 0.0
        %v2131 = vmax.f32 %v1954, 0.0
        %v2132 = vmax.f32 %v1957, 0.0
        %v2133 = vmax.f32 %v1959, 0.0
        %v2134 = vmax.f32 %v1962, 0.0
        %v2135 = vmax.f32 %v1964, 0.0
        %v2136 = vmax.f32 %v1967, 0.0
        %v2137 = vmax.f32 %v1969, 0.0
        %v2138 = vmax.f32 %v1972, 0.0
        %v2139 = vmax.f32 %v1974, 0.0
        %v2140 = vmax.f32 %v1977, 0.0
        %v2141 = vmax.f32 %v1979, 0.0
        %v2142 = vmax.f32 %v1982, 0.0
        %v2143 = vmax.f32 %v1984, 0.0
        %v2144 = vmax.f32 %v1987, 0.0
        %v2145 = vmax.f32 %v1989, 0.0
        %v2146 = vmax.f32 %v1992, 0.0
        %v2147 = vmax.f32 %v1994, 0.0
        %v2148 = vmax.f32 %v1997, 0.0
        %v2149 = vmax.f32 %v1999, 0.0
        %v2150 = vmax.f32 %v2002, 0.0
        %v2151 = vmax.f32 %v2004, 0.0
        %v2152 = vmax.f32 %v2007, 0.0
        %v2153 = vmax.f32 %v2009, 0.0
        %v2154 = vmax.f32 %v2012, 0.0
        %v2155 = vmax.f32 %v2014, 0.0
        %v2156 = vmax.f32 %v2017, 0.0
        %v2157 = vmax.f32 %v2019, 0.0
        %v2158 = vmax.f32 %v2022, 0.0
        %v2159 = vmax.f32 %v2024, 0.0
        %v2160 = vmax.f32 %v2027, 0.0
        %v2161 = vmax.f32 %v2029, 0.0
        %v2162 = vmax.f32 %v2032, 0.0
        %v2163 = vmax.f32 %v2034, 0.0
        %v2164 = vpack.c.bf16 %v2037, %v2036
        %v2165 = vpack.c.bf16 %v2039, %v2038
        %v2166 = vpack.c.bf16 %v2041, %v2040
        %v2167 = vpack.c.bf16 %v2043, %v2042
        %v2168 = vpack.c.bf16 %v2045, %v2044
        %v2169 = vpack.c.bf16 %v2047, %v2046
        %v2170 = vpack.c.bf16 %v2049, %v2048
        %v2171 = vpack.c.bf16 %v2051, %v2050
        %v2172 = vpack.c.bf16 %v2053, %v2052
        %v2173 = vpack.c.bf16 %v2055, %v2054
        %v2174 = vpack.c.bf16 %v2057, %v2056
        %v2175 = vpack.c.bf16 %v2059, %v2058
        %v2176 = vpack.c.bf16 %v2061, %v2060
        %v2177 = vpack.c.bf16 %v2063, %v2062
        %v2178 = vpack.c.bf16 %v2065, %v2064
        %v2179 = vpack.c.bf16 %v2067, %v2066
        %v2180 = vpack.c.bf16 %v2069, %v2068
        %v2181 = vpack.c.bf16 %v2071, %v2070
        %v2182 = vpack.c.bf16 %v2073, %v2072
        %v2183 = vpack.c.bf16 %v2075, %v2074
        %v2184 = vpack.c.bf16 %v2077, %v2076
        %v2185 = vpack.c.bf16 %v2079, %v2078
        %v2186 = vpack.c.bf16 %v2081, %v2080
        %v2187 = vpack.c.bf16 %v2083, %v2082
        %v2188 = vpack.c.bf16 %v2085, %v2084
        %v2189 = vpack.c.bf16 %v2087, %v2086
        %v2190 = vpack.c.bf16 %v2089, %v2088
        %v2191 = vpack.c.bf16 %v2091, %v2090
        %v2192 = vpack.c.bf16 %v2093, %v2092
        %v2193 = vpack.c.bf16 %v2095, %v2094
        %v2194 = vpack.c.bf16 %v2097, %v2096
        %v2195 = vpack.c.bf16 %v2099, %v2098
        %v2196 = vpack.c.bf16 %v2101, %v2100
        %v2197 = vpack.c.bf16 %v2103, %v2102
        %v2198 = vpack.c.bf16 %v2105, %v2104
        %v2199 = vpack.c.bf16 %v2107, %v2106
        %v2200 = vpack.c.bf16 %v2109, %v2108
        %v2201 = vpack.c.bf16 %v2111, %v2110
        %v2202 = vpack.c.bf16 %v2113, %v2112
        %v2203 = vpack.c.bf16 %v2115, %v2114
        %v2204 = vpack.c.bf16 %v2117, %v2116
        %v2205 = vpack.c.bf16 %v2119, %v2118
        %v2206 = vpack.c.bf16 %v2121, %v2120
        %v2207 = vpack.c.bf16 %v2123, %v2122
        %v2208 = vpack.c.bf16 %v2125, %v2124
        %v2209 = vpack.c.bf16 %v2127, %v2126
        %v2210 = vpack.c.bf16 %v2129, %v2128
        %v2211 = vpack.c.bf16 %v2131, %v2130
        %v2212 = vpack.c.bf16 %v2133, %v2132
        %v2213 = vpack.c.bf16 %v2135, %v2134
        %v2214 = vpack.c.bf16 %v2137, %v2136
        %v2215 = vpack.c.bf16 %v2139, %v2138
        %v2216 = vpack.c.bf16 %v2141, %v2140
        %v2217 = vpack.c.bf16 %v2143, %v2142
        %v2218 = vpack.c.bf16 %v2145, %v2144
        %v2219 = vpack.c.bf16 %v2147, %v2146
        %v2220 = vpack.c.bf16 %v2149, %v2148
        %v2221 = vpack.c.bf16 %v2151, %v2150
        %v2222 = vpack.c.bf16 %v2153, %v2152
        %v2223 = vpack.c.bf16 %v2155, %v2154
        %v2224 = vpack.c.bf16 %v2157, %v2156
        %v2225 = vpack.c.bf16 %v2159, %v2158
        %v2226 = vpack.c.bf16 %v2161, %v2160
        %v2227 = vpack.c.bf16 %v2163, %v2162
        %v2228 = vld [vmem:[%s5] sm:$0xf]
        %v2229 = vld [vmem:[%s5 + $0x4] sm:$0xf]
        %v2230 = vld [vmem:[%s5 + $0x8] sm:$0xf]
        %v2231 = vld [vmem:[%s5 + $0xc] sm:$0xf]
        %v2232 = vld [vmem:[%s6] sm:$0x1]
        %v2234 = vperm.slane %v2232, 0
        %v2240 = vunpack.c.l.b16 %v2228
        %v2241 = vunpack.c.l.b16 %v2229
        %v2242 = vunpack.c.l.b16 %v2230
        %v2243 = vunpack.c.l.b16 %v2231
        %v2244 = vpack.c.b16 %v2241, %v2240
        %v2245 = vpack.c.b16 %v2243, %v2242
        %v2249 = vsel %vm1514, %v2164, 0
        %v2252 = vsel %vm1514, %v2165, 0
        %v2255 = vsel %vm1514, %v2166, 0
        %v2258 = vsel %vm1514, %v2167, 0
        %v2261 = vsel %vm1514, %v2168, 0
        %v2264 = vsel %vm1514, %v2169, 0
        %v2267 = vsel %vm1514, %v2170, 0
        %v2270 = vsel %vm1514, %v2171, 0
        %v2273 = vsel %vm1514, %v2172, 0
        %v2276 = vsel %vm1514, %v2173, 0
        %v2279 = vsel %vm1514, %v2174, 0
        %v2282 = vsel %vm1514, %v2175, 0
        %v2285 = vsel %vm1514, %v2176, 0
        %v2288 = vsel %vm1514, %v2177, 0
        %v2291 = vsel %vm1514, %v2178, 0
        %v2294 = vsel %vm1514, %v2179, 0
        %v2297 = vsel %vm1514, %v2180, 0
        %v2300 = vsel %vm1514, %v2181, 0
        %v2303 = vsel %vm1514, %v2182, 0
        %v2306 = vsel %vm1514, %v2183, 0
        %v2309 = vsel %vm1514, %v2184, 0
        %v2312 = vsel %vm1514, %v2185, 0
        %v2315 = vsel %vm1514, %v2186, 0
        %v2318 = vsel %vm1514, %v2187, 0
        %v2321 = vsel %vm1514, %v2188, 0
        %v2324 = vsel %vm1514, %v2189, 0
        %v2327 = vsel %vm1514, %v2190, 0
        %v2330 = vsel %vm1514, %v2191, 0
        %v2333 = vsel %vm1514, %v2192, 0
        %v2336 = vsel %vm1514, %v2193, 0
        %v2339 = vsel %vm1514, %v2194, 0
        %v2342 = vsel %vm1514, %v2195, 0
        %v2345 = vsel %vm1514, %v2196, 0
        %v2348 = vsel %vm1514, %v2197, 0
        %v2351 = vsel %vm1514, %v2198, 0
        %v2354 = vsel %vm1514, %v2199, 0
        %v2357 = vsel %vm1514, %v2200, 0
        %v2360 = vsel %vm1514, %v2201, 0
        %v2363 = vsel %vm1514, %v2202, 0
        %v2366 = vsel %vm1514, %v2203, 0
        %v2369 = vsel %vm1514, %v2204, 0
        %v2372 = vsel %vm1514, %v2205, 0
        %v2375 = vsel %vm1514, %v2206, 0
        %v2378 = vsel %vm1514, %v2207, 0
        %v2381 = vsel %vm1514, %v2208, 0
        %v2384 = vsel %vm1514, %v2209, 0
        %v2387 = vsel %vm1514, %v2210, 0
        %v2390 = vsel %vm1514, %v2211, 0
        %v2393 = vsel %vm1514, %v2212, 0
        %v2396 = vsel %vm1514, %v2213, 0
        %v2399 = vsel %vm1514, %v2214, 0
        %v2402 = vsel %vm1514, %v2215, 0
        %v2405 = vsel %vm1514, %v2216, 0
        %v2408 = vsel %vm1514, %v2217, 0
        %v2411 = vsel %vm1514, %v2218, 0
        %v2414 = vsel %vm1514, %v2219, 0
        %v2417 = vsel %vm1514, %v2220, 0
        %v2420 = vsel %vm1514, %v2221, 0
        %v2423 = vsel %vm1514, %v2222, 0
        %v2426 = vsel %vm1514, %v2223, 0
        %v2429 = vsel %vm1514, %v2224, 0
        %v2432 = vsel %vm1514, %v2225, 0
        %v2435 = vsel %vm1514, %v2226, 0
        %v2438 = vsel %vm1514, %v2227, 0
        %2440 = vmatpush.bf16.msra.mxu0 0
        %2441 = vmatpush.bf16.msra.mxu0 0
        %2442 = vmatpush.bf16.msra.mxu0 0
        %2443 = vmatpush.bf16.msra.mxu0 0
        %2444 = vmatpush.bf16.msra.mxu0 0
        %2445 = vmatpush.bf16.msra.mxu0 0
        %2446 = vmatpush.bf16.msra.mxu0 %v2245
        %2447 = vmatpush.bf16.msra.mxu0 %v2244
        %2448 = vmatmul.bf16.gmra.mxu0 %v2249
        %v2449 = vpop.f32.mrf.mxu0
        %v2450 = vadd.f32 %v2234, %v2449
        %v2451 = vpop.f32.mrf.mxu0
        %v2452 = vadd.f32 %v2234, %v2451
        %2453 = vmatmul.bf16.gmra.mxu0 %v2252
        %v2454 = vpop.f32.mrf.mxu0
        %v2455 = vadd.f32 %v2234, %v2454
        %v2456 = vpop.f32.mrf.mxu0
        %v2457 = vadd.f32 %v2234, %v2456
        %2458 = vmatmul.bf16.gmra.mxu0 %v2255
        %v2459 = vpop.f32.mrf.mxu0
        %v2460 = vadd.f32 %v2234, %v2459
        %v2461 = vpop.f32.mrf.mxu0
        %v2462 = vadd.f32 %v2234, %v2461
        %2463 = vmatmul.bf16.gmra.mxu0 %v2258
        %v2464 = vpop.f32.mrf.mxu0
        %v2465 = vadd.f32 %v2234, %v2464
        %v2466 = vpop.f32.mrf.mxu0
        %v2467 = vadd.f32 %v2234, %v2466
        %2468 = vmatmul.bf16.gmra.mxu0 %v2261
        %v2469 = vpop.f32.mrf.mxu0
        %v2470 = vadd.f32 %v2234, %v2469
        %v2471 = vpop.f32.mrf.mxu0
        %v2472 = vadd.f32 %v2234, %v2471
        %2473 = vmatmul.bf16.gmra.mxu0 %v2264
        %v2474 = vpop.f32.mrf.mxu0
        %v2475 = vadd.f32 %v2234, %v2474
        %v2476 = vpop.f32.mrf.mxu0
        %v2477 = vadd.f32 %v2234, %v2476
        %2478 = vmatmul.bf16.gmra.mxu0 %v2267
        %v2479 = vpop.f32.mrf.mxu0
        %v2480 = vadd.f32 %v2234, %v2479
        %v2481 = vpop.f32.mrf.mxu0
        %v2482 = vadd.f32 %v2234, %v2481
        %2483 = vmatmul.bf16.gmra.mxu0 %v2270
        %v2484 = vpop.f32.mrf.mxu0
        %v2485 = vadd.f32 %v2234, %v2484
        %v2486 = vpop.f32.mrf.mxu0
        %v2487 = vadd.f32 %v2234, %v2486
        %2488 = vmatmul.bf16.gmra.mxu0 %v2273
        %v2489 = vpop.f32.mrf.mxu0
        %v2490 = vadd.f32 %v2234, %v2489
        %v2491 = vpop.f32.mrf.mxu0
        %v2492 = vadd.f32 %v2234, %v2491
        %2493 = vmatmul.bf16.gmra.mxu0 %v2276
        %v2494 = vpop.f32.mrf.mxu0
        %v2495 = vadd.f32 %v2234, %v2494
        %v2496 = vpop.f32.mrf.mxu0
        %v2497 = vadd.f32 %v2234, %v2496
        %2498 = vmatmul.bf16.gmra.mxu0 %v2279
        %v2499 = vpop.f32.mrf.mxu0
        %v2500 = vadd.f32 %v2234, %v2499
        %v2501 = vpop.f32.mrf.mxu0
        %v2502 = vadd.f32 %v2234, %v2501
        %2503 = vmatmul.bf16.gmra.mxu0 %v2282
        %v2504 = vpop.f32.mrf.mxu0
        %v2505 = vadd.f32 %v2234, %v2504
        %v2506 = vpop.f32.mrf.mxu0
        %v2507 = vadd.f32 %v2234, %v2506
        %2508 = vmatmul.bf16.gmra.mxu0 %v2285
        %v2509 = vpop.f32.mrf.mxu0
        %v2510 = vadd.f32 %v2234, %v2509
        %v2511 = vpop.f32.mrf.mxu0
        %v2512 = vadd.f32 %v2234, %v2511
        %2513 = vmatmul.bf16.gmra.mxu0 %v2288
        %v2514 = vpop.f32.mrf.mxu0
        %v2515 = vadd.f32 %v2234, %v2514
        %v2516 = vpop.f32.mrf.mxu0
        %v2517 = vadd.f32 %v2234, %v2516
        %2518 = vmatmul.bf16.gmra.mxu0 %v2291
        %v2519 = vpop.f32.mrf.mxu0
        %v2520 = vadd.f32 %v2234, %v2519
        %v2521 = vpop.f32.mrf.mxu0
        %v2522 = vadd.f32 %v2234, %v2521
        %2523 = vmatmul.bf16.gmra.mxu0 %v2294
        %v2524 = vpop.f32.mrf.mxu0
        %v2525 = vadd.f32 %v2234, %v2524
        %v2526 = vpop.f32.mrf.mxu0
        %v2527 = vadd.f32 %v2234, %v2526
        %2528 = vmatmul.bf16.gmra.mxu0 %v2297
        %v2529 = vpop.f32.mrf.mxu0
        %v2530 = vadd.f32 %v2234, %v2529
        %v2531 = vpop.f32.mrf.mxu0
        %v2532 = vadd.f32 %v2234, %v2531
        %2533 = vmatmul.bf16.gmra.mxu0 %v2300
        %v2534 = vpop.f32.mrf.mxu0
        %v2535 = vadd.f32 %v2234, %v2534
        %v2536 = vpop.f32.mrf.mxu0
        %v2537 = vadd.f32 %v2234, %v2536
        %2538 = vmatmul.bf16.gmra.mxu0 %v2303
        %v2539 = vpop.f32.mrf.mxu0
        %v2540 = vadd.f32 %v2234, %v2539
        %v2541 = vpop.f32.mrf.mxu0
        %v2542 = vadd.f32 %v2234, %v2541
        %2543 = vmatmul.bf16.gmra.mxu0 %v2306
        %v2544 = vpop.f32.mrf.mxu0
        %v2545 = vadd.f32 %v2234, %v2544
        %v2546 = vpop.f32.mrf.mxu0
        %v2547 = vadd.f32 %v2234, %v2546
        %2548 = vmatmul.bf16.gmra.mxu0 %v2309
        %v2549 = vpop.f32.mrf.mxu0
        %v2550 = vadd.f32 %v2234, %v2549
        %v2551 = vpop.f32.mrf.mxu0
        %v2552 = vadd.f32 %v2234, %v2551
        %2553 = vmatmul.bf16.gmra.mxu0 %v2312
        %v2554 = vpop.f32.mrf.mxu0
        %v2555 = vadd.f32 %v2234, %v2554
        %v2556 = vpop.f32.mrf.mxu0
        %v2557 = vadd.f32 %v2234, %v2556
        %2558 = vmatmul.bf16.gmra.mxu0 %v2315
        %v2559 = vpop.f32.mrf.mxu0
        %v2560 = vadd.f32 %v2234, %v2559
        %v2561 = vpop.f32.mrf.mxu0
        %v2562 = vadd.f32 %v2234, %v2561
        %2563 = vmatmul.bf16.gmra.mxu0 %v2318
        %v2564 = vpop.f32.mrf.mxu0
        %v2565 = vadd.f32 %v2234, %v2564
        %v2566 = vpop.f32.mrf.mxu0
        %v2567 = vadd.f32 %v2234, %v2566
        %2568 = vmatmul.bf16.gmra.mxu0 %v2321
        %v2569 = vpop.f32.mrf.mxu0
        %v2570 = vadd.f32 %v2234, %v2569
        %v2571 = vpop.f32.mrf.mxu0
        %v2572 = vadd.f32 %v2234, %v2571
        %2573 = vmatmul.bf16.gmra.mxu0 %v2324
        %v2574 = vpop.f32.mrf.mxu0
        %v2575 = vadd.f32 %v2234, %v2574
        %v2576 = vpop.f32.mrf.mxu0
        %v2577 = vadd.f32 %v2234, %v2576
        %2578 = vmatmul.bf16.gmra.mxu0 %v2327
        %v2579 = vpop.f32.mrf.mxu0
        %v2580 = vadd.f32 %v2234, %v2579
        %v2581 = vpop.f32.mrf.mxu0
        %v2582 = vadd.f32 %v2234, %v2581
        %2583 = vmatmul.bf16.gmra.mxu0 %v2330
        %v2584 = vpop.f32.mrf.mxu0
        %v2585 = vadd.f32 %v2234, %v2584
        %v2586 = vpop.f32.mrf.mxu0
        %v2587 = vadd.f32 %v2234, %v2586
        %2588 = vmatmul.bf16.gmra.mxu0 %v2333
        %v2589 = vpop.f32.mrf.mxu0
        %v2590 = vadd.f32 %v2234, %v2589
        %v2591 = vpop.f32.mrf.mxu0
        %v2592 = vadd.f32 %v2234, %v2591
        %2593 = vmatmul.bf16.gmra.mxu0 %v2336
        %v2594 = vpop.f32.mrf.mxu0
        %v2595 = vadd.f32 %v2234, %v2594
        %v2596 = vpop.f32.mrf.mxu0
        %v2597 = vadd.f32 %v2234, %v2596
        %2598 = vmatmul.bf16.gmra.mxu0 %v2339
        %v2599 = vpop.f32.mrf.mxu0
        %v2600 = vadd.f32 %v2234, %v2599
        %v2601 = vpop.f32.mrf.mxu0
        %v2602 = vadd.f32 %v2234, %v2601
        %2603 = vmatmul.bf16.gmra.mxu0 %v2342
        %v2604 = vpop.f32.mrf.mxu0
        %v2605 = vadd.f32 %v2234, %v2604
        %v2606 = vpop.f32.mrf.mxu0
        %v2607 = vadd.f32 %v2234, %v2606
        %2608 = vmatmul.bf16.gmra.mxu0 %v2345
        %v2609 = vpop.f32.mrf.mxu0
        %v2610 = vadd.f32 %v2234, %v2609
        %v2611 = vpop.f32.mrf.mxu0
        %v2612 = vadd.f32 %v2234, %v2611
        %2613 = vmatmul.bf16.gmra.mxu0 %v2348
        %v2614 = vpop.f32.mrf.mxu0
        %v2615 = vadd.f32 %v2234, %v2614
        %v2616 = vpop.f32.mrf.mxu0
        %v2617 = vadd.f32 %v2234, %v2616
        %2618 = vmatmul.bf16.gmra.mxu0 %v2351
        %v2619 = vpop.f32.mrf.mxu0
        %v2620 = vadd.f32 %v2234, %v2619
        %v2621 = vpop.f32.mrf.mxu0
        %v2622 = vadd.f32 %v2234, %v2621
        %2623 = vmatmul.bf16.gmra.mxu0 %v2354
        %v2624 = vpop.f32.mrf.mxu0
        %v2625 = vadd.f32 %v2234, %v2624
        %v2626 = vpop.f32.mrf.mxu0
        %v2627 = vadd.f32 %v2234, %v2626
        %2628 = vmatmul.bf16.gmra.mxu0 %v2357
        %v2629 = vpop.f32.mrf.mxu0
        %v2630 = vadd.f32 %v2234, %v2629
        %v2631 = vpop.f32.mrf.mxu0
        %v2632 = vadd.f32 %v2234, %v2631
        %2633 = vmatmul.bf16.gmra.mxu0 %v2360
        %v2634 = vpop.f32.mrf.mxu0
        %v2635 = vadd.f32 %v2234, %v2634
        %v2636 = vpop.f32.mrf.mxu0
        %v2637 = vadd.f32 %v2234, %v2636
        %2638 = vmatmul.bf16.gmra.mxu0 %v2363
        %v2639 = vpop.f32.mrf.mxu0
        %v2640 = vadd.f32 %v2234, %v2639
        %v2641 = vpop.f32.mrf.mxu0
        %v2642 = vadd.f32 %v2234, %v2641
        %2643 = vmatmul.bf16.gmra.mxu0 %v2366
        %v2644 = vpop.f32.mrf.mxu0
        %v2645 = vadd.f32 %v2234, %v2644
        %v2646 = vpop.f32.mrf.mxu0
        %v2647 = vadd.f32 %v2234, %v2646
        %2648 = vmatmul.bf16.gmra.mxu0 %v2369
        %v2649 = vpop.f32.mrf.mxu0
        %v2650 = vadd.f32 %v2234, %v2649
        %v2651 = vpop.f32.mrf.mxu0
        %v2652 = vadd.f32 %v2234, %v2651
        %2653 = vmatmul.bf16.gmra.mxu0 %v2372
        %v2654 = vpop.f32.mrf.mxu0
        %v2655 = vadd.f32 %v2234, %v2654
        %v2656 = vpop.f32.mrf.mxu0
        %v2657 = vadd.f32 %v2234, %v2656
        %2658 = vmatmul.bf16.gmra.mxu0 %v2375
        %v2659 = vpop.f32.mrf.mxu0
        %v2660 = vadd.f32 %v2234, %v2659
        %v2661 = vpop.f32.mrf.mxu0
        %v2662 = vadd.f32 %v2234, %v2661
        %2663 = vmatmul.bf16.gmra.mxu0 %v2378
        %v2664 = vpop.f32.mrf.mxu0
        %v2665 = vadd.f32 %v2234, %v2664
        %v2666 = vpop.f32.mrf.mxu0
        %v2667 = vadd.f32 %v2234, %v2666
        %2668 = vmatmul.bf16.gmra.mxu0 %v2381
        %v2669 = vpop.f32.mrf.mxu0
        %v2670 = vadd.f32 %v2234, %v2669
        %v2671 = vpop.f32.mrf.mxu0
        %v2672 = vadd.f32 %v2234, %v2671
        %2673 = vmatmul.bf16.gmra.mxu0 %v2384
        %v2674 = vpop.f32.mrf.mxu0
        %v2675 = vadd.f32 %v2234, %v2674
        %v2676 = vpop.f32.mrf.mxu0
        %v2677 = vadd.f32 %v2234, %v2676
        %2678 = vmatmul.bf16.gmra.mxu0 %v2387
        %v2679 = vpop.f32.mrf.mxu0
        %v2680 = vadd.f32 %v2234, %v2679
        %v2681 = vpop.f32.mrf.mxu0
        %v2682 = vadd.f32 %v2234, %v2681
        %2683 = vmatmul.bf16.gmra.mxu0 %v2390
        %v2684 = vpop.f32.mrf.mxu0
        %v2685 = vadd.f32 %v2234, %v2684
        %v2686 = vpop.f32.mrf.mxu0
        %v2687 = vadd.f32 %v2234, %v2686
        %2688 = vmatmul.bf16.gmra.mxu0 %v2393
        %v2689 = vpop.f32.mrf.mxu0
        %v2690 = vadd.f32 %v2234, %v2689
        %v2691 = vpop.f32.mrf.mxu0
        %v2692 = vadd.f32 %v2234, %v2691
        %2693 = vmatmul.bf16.gmra.mxu0 %v2396
        %v2694 = vpop.f32.mrf.mxu0
        %v2695 = vadd.f32 %v2234, %v2694
        %v2696 = vpop.f32.mrf.mxu0
        %v2697 = vadd.f32 %v2234, %v2696
        %2698 = vmatmul.bf16.gmra.mxu0 %v2399
        %v2699 = vpop.f32.mrf.mxu0
        %v2700 = vadd.f32 %v2234, %v2699
        %v2701 = vpop.f32.mrf.mxu0
        %v2702 = vadd.f32 %v2234, %v2701
        %2703 = vmatmul.bf16.gmra.mxu0 %v2402
        %v2704 = vpop.f32.mrf.mxu0
        %v2705 = vadd.f32 %v2234, %v2704
        %v2706 = vpop.f32.mrf.mxu0
        %v2707 = vadd.f32 %v2234, %v2706
        %2708 = vmatmul.bf16.gmra.mxu0 %v2405
        %v2709 = vpop.f32.mrf.mxu0
        %v2710 = vadd.f32 %v2234, %v2709
        %v2711 = vpop.f32.mrf.mxu0
        %v2712 = vadd.f32 %v2234, %v2711
        %2713 = vmatmul.bf16.gmra.mxu0 %v2408
        %v2714 = vpop.f32.mrf.mxu0
        %v2715 = vadd.f32 %v2234, %v2714
        %v2716 = vpop.f32.mrf.mxu0
        %v2717 = vadd.f32 %v2234, %v2716
        %2718 = vmatmul.bf16.gmra.mxu0 %v2411
        %v2719 = vpop.f32.mrf.mxu0
        %v2720 = vadd.f32 %v2234, %v2719
        %v2721 = vpop.f32.mrf.mxu0
        %v2722 = vadd.f32 %v2234, %v2721
        %2723 = vmatmul.bf16.gmra.mxu0 %v2414
        %v2724 = vpop.f32.mrf.mxu0
        %v2725 = vadd.f32 %v2234, %v2724
        %v2726 = vpop.f32.mrf.mxu0
        %v2727 = vadd.f32 %v2234, %v2726
        %2728 = vmatmul.bf16.gmra.mxu0 %v2417
        %v2729 = vpop.f32.mrf.mxu0
        %v2730 = vadd.f32 %v2234, %v2729
        %v2731 = vpop.f32.mrf.mxu0
        %v2732 = vadd.f32 %v2234, %v2731
        %2733 = vmatmul.bf16.gmra.mxu0 %v2420
        %v2734 = vpop.f32.mrf.mxu0
        %v2735 = vadd.f32 %v2234, %v2734
        %v2736 = vpop.f32.mrf.mxu0
        %v2737 = vadd.f32 %v2234, %v2736
        %2738 = vmatmul.bf16.gmra.mxu0 %v2423
        %v2739 = vpop.f32.mrf.mxu0
        %v2740 = vadd.f32 %v2234, %v2739
        %v2741 = vpop.f32.mrf.mxu0
        %v2742 = vadd.f32 %v2234, %v2741
        %2743 = vmatmul.bf16.gmra.mxu0 %v2426
        %v2744 = vpop.f32.mrf.mxu0
        %v2745 = vadd.f32 %v2234, %v2744
        %v2746 = vpop.f32.mrf.mxu0
        %v2747 = vadd.f32 %v2234, %v2746
        %2748 = vmatmul.bf16.gmra.mxu0 %v2429
        %v2749 = vpop.f32.mrf.mxu0
        %v2750 = vadd.f32 %v2234, %v2749
        %v2751 = vpop.f32.mrf.mxu0
        %v2752 = vadd.f32 %v2234, %v2751
        %2753 = vmatmul.bf16.gmra.mxu0 %v2432
        %v2754 = vpop.f32.mrf.mxu0
        %v2755 = vadd.f32 %v2234, %v2754
        %v2756 = vpop.f32.mrf.mxu0
        %v2757 = vadd.f32 %v2234, %v2756
        %2758 = vmatmul.bf16.gmra.mxu0 %v2435
        %v2759 = vpop.f32.mrf.mxu0
        %v2760 = vadd.f32 %v2234, %v2759
        %v2761 = vpop.f32.mrf.mxu0
        %v2762 = vadd.f32 %v2234, %v2761
        %2763 = vmatmul.bf16.gmra.mxu0 %v2438
        %v2764 = vpop.f32.mrf.mxu0
        %v2765 = vadd.f32 %v2234, %v2764
        %v2766 = vpop.f32.mrf.mxu0
        %v2767 = vadd.f32 %v2234, %v2766
        %2768 = vdwg.mxu0
        %v2769 = vmax.f32 %v2450, 0.0
        %v2770 = vmax.f32 %v2452, 0.0
        %v2771 = vmax.f32 %v2455, 0.0
        %v2772 = vmax.f32 %v2457, 0.0
        %v2773 = vmax.f32 %v2460, 0.0
        %v2774 = vmax.f32 %v2462, 0.0
        %v2775 = vmax.f32 %v2465, 0.0
        %v2776 = vmax.f32 %v2467, 0.0
        %v2777 = vmax.f32 %v2470, 0.0
        %v2778 = vmax.f32 %v2472, 0.0
        %v2779 = vmax.f32 %v2475, 0.0
        %v2780 = vmax.f32 %v2477, 0.0
        %v2781 = vmax.f32 %v2480, 0.0
        %v2782 = vmax.f32 %v2482, 0.0
        %v2783 = vmax.f32 %v2485, 0.0
        %v2784 = vmax.f32 %v2487, 0.0
        %v2785 = vmax.f32 %v2490, 0.0
        %v2786 = vmax.f32 %v2492, 0.0
        %v2787 = vmax.f32 %v2495, 0.0
        %v2788 = vmax.f32 %v2497, 0.0
        %v2789 = vmax.f32 %v2500, 0.0
        %v2790 = vmax.f32 %v2502, 0.0
        %v2791 = vmax.f32 %v2505, 0.0
        %v2792 = vmax.f32 %v2507, 0.0
        %v2793 = vmax.f32 %v2510, 0.0
        %v2794 = vmax.f32 %v2512, 0.0
        %v2795 = vmax.f32 %v2515, 0.0
        %v2796 = vmax.f32 %v2517, 0.0
        %v2797 = vmax.f32 %v2520, 0.0
        %v2798 = vmax.f32 %v2522, 0.0
        %v2799 = vmax.f32 %v2525, 0.0
        %v2800 = vmax.f32 %v2527, 0.0
        %v2801 = vmax.f32 %v2530, 0.0
        %v2802 = vmax.f32 %v2532, 0.0
        %v2803 = vmax.f32 %v2535, 0.0
        %v2804 = vmax.f32 %v2537, 0.0
        %v2805 = vmax.f32 %v2540, 0.0
        %v2806 = vmax.f32 %v2542, 0.0
        %v2807 = vmax.f32 %v2545, 0.0
        %v2808 = vmax.f32 %v2547, 0.0
        %v2809 = vmax.f32 %v2550, 0.0
        %v2810 = vmax.f32 %v2552, 0.0
        %v2811 = vmax.f32 %v2555, 0.0
        %v2812 = vmax.f32 %v2557, 0.0
        %v2813 = vmax.f32 %v2560, 0.0
        %v2814 = vmax.f32 %v2562, 0.0
        %v2815 = vmax.f32 %v2565, 0.0
        %v2816 = vmax.f32 %v2567, 0.0
        %v2817 = vmax.f32 %v2570, 0.0
        %v2818 = vmax.f32 %v2572, 0.0
        %v2819 = vmax.f32 %v2575, 0.0
        %v2820 = vmax.f32 %v2577, 0.0
        %v2821 = vmax.f32 %v2580, 0.0
        %v2822 = vmax.f32 %v2582, 0.0
        %v2823 = vmax.f32 %v2585, 0.0
        %v2824 = vmax.f32 %v2587, 0.0
        %v2825 = vmax.f32 %v2590, 0.0
        %v2826 = vmax.f32 %v2592, 0.0
        %v2827 = vmax.f32 %v2595, 0.0
        %v2828 = vmax.f32 %v2597, 0.0
        %v2829 = vmax.f32 %v2600, 0.0
        %v2830 = vmax.f32 %v2602, 0.0
        %v2831 = vmax.f32 %v2605, 0.0
        %v2832 = vmax.f32 %v2607, 0.0
        %v2833 = vmax.f32 %v2610, 0.0
        %v2834 = vmax.f32 %v2612, 0.0
        %v2835 = vmax.f32 %v2615, 0.0
        %v2836 = vmax.f32 %v2617, 0.0
        %v2837 = vmax.f32 %v2620, 0.0
        %v2838 = vmax.f32 %v2622, 0.0
        %v2839 = vmax.f32 %v2625, 0.0
        %v2840 = vmax.f32 %v2627, 0.0
        %v2841 = vmax.f32 %v2630, 0.0
        %v2842 = vmax.f32 %v2632, 0.0
        %v2843 = vmax.f32 %v2635, 0.0
        %v2844 = vmax.f32 %v2637, 0.0
        %v2845 = vmax.f32 %v2640, 0.0
        %v2846 = vmax.f32 %v2642, 0.0
        %v2847 = vmax.f32 %v2645, 0.0
        %v2848 = vmax.f32 %v2647, 0.0
        %v2849 = vmax.f32 %v2650, 0.0
        %v2850 = vmax.f32 %v2652, 0.0
        %v2851 = vmax.f32 %v2655, 0.0
        %v2852 = vmax.f32 %v2657, 0.0
        %v2853 = vmax.f32 %v2660, 0.0
        %v2854 = vmax.f32 %v2662, 0.0
        %v2855 = vmax.f32 %v2665, 0.0
        %v2856 = vmax.f32 %v2667, 0.0
        %v2857 = vmax.f32 %v2670, 0.0
        %v2858 = vmax.f32 %v2672, 0.0
        %v2859 = vmax.f32 %v2675, 0.0
        %v2860 = vmax.f32 %v2677, 0.0
        %v2861 = vmax.f32 %v2680, 0.0
        %v2862 = vmax.f32 %v2682, 0.0
        %v2863 = vmax.f32 %v2685, 0.0
        %v2864 = vmax.f32 %v2687, 0.0
        %v2865 = vmax.f32 %v2690, 0.0
        %v2866 = vmax.f32 %v2692, 0.0
        %v2867 = vmax.f32 %v2695, 0.0
        %v2868 = vmax.f32 %v2697, 0.0
        %v2869 = vmax.f32 %v2700, 0.0
        %v2870 = vmax.f32 %v2702, 0.0
        %v2871 = vmax.f32 %v2705, 0.0
        %v2872 = vmax.f32 %v2707, 0.0
        %v2873 = vmax.f32 %v2710, 0.0
        %v2874 = vmax.f32 %v2712, 0.0
        %v2875 = vmax.f32 %v2715, 0.0
        %v2876 = vmax.f32 %v2717, 0.0
        %v2877 = vmax.f32 %v2720, 0.0
        %v2878 = vmax.f32 %v2722, 0.0
        %v2879 = vmax.f32 %v2725, 0.0
        %v2880 = vmax.f32 %v2727, 0.0
        %v2881 = vmax.f32 %v2730, 0.0
        %v2882 = vmax.f32 %v2732, 0.0
        %v2883 = vmax.f32 %v2735, 0.0
        %v2884 = vmax.f32 %v2737, 0.0
        %v2885 = vmax.f32 %v2740, 0.0
        %v2886 = vmax.f32 %v2742, 0.0
        %v2887 = vmax.f32 %v2745, 0.0
        %v2888 = vmax.f32 %v2747, 0.0
        %v2889 = vmax.f32 %v2750, 0.0
        %v2890 = vmax.f32 %v2752, 0.0
        %v2891 = vmax.f32 %v2755, 0.0
        %v2892 = vmax.f32 %v2757, 0.0
        %v2893 = vmax.f32 %v2760, 0.0
        %v2894 = vmax.f32 %v2762, 0.0
        %v2895 = vmax.f32 %v2765, 0.0
        %v2896 = vmax.f32 %v2767, 0.0
        %vm2897 = vcmask 523264
        %v2898 = vsel %vm2897, %v2769, -inf
        %v2899 = vsel %vm2897, %v2770, -inf
        %v2900 = vmax.f32 %v2898, %v2899
        %v2901 = vrot.slane %v2900, 4
        %v2902 = vmax.f32 %v2900, %v2901
        %v2903 = vrot.slane %v2902, 2
        %v2904 = vmax.f32 %v2902, %v2903
        %v2905 = vrot.slane %v2904, 1
        %v2906 = vmax.f32 %v2904, %v2905
        %v2907 = vsel %vm2897, %v2771, -inf
        %v2908 = vsel %vm2897, %v2772, -inf
        %v2909 = vmax.f32 %v2907, %v2908
        %v2910 = vrot.slane %v2909, 4
        %v2911 = vmax.f32 %v2909, %v2910
        %v2912 = vrot.slane %v2911, 2
        %v2913 = vmax.f32 %v2911, %v2912
        %v2914 = vrot.slane %v2913, 1
        %v2915 = vmax.f32 %v2913, %v2914
        %v2916 = vsel %vm2897, %v2773, -inf
        %v2917 = vsel %vm2897, %v2774, -inf
        %v2918 = vmax.f32 %v2916, %v2917
        %v2919 = vrot.slane %v2918, 4
        %v2920 = vmax.f32 %v2918, %v2919
        %v2921 = vrot.slane %v2920, 2
        %v2922 = vmax.f32 %v2920, %v2921
        %v2923 = vrot.slane %v2922, 1
        %v2924 = vmax.f32 %v2922, %v2923
        %v2925 = vsel %vm2897, %v2775, -inf
        %v2926 = vsel %vm2897, %v2776, -inf
        %v2927 = vmax.f32 %v2925, %v2926
        %v2928 = vrot.slane %v2927, 4
        %v2929 = vmax.f32 %v2927, %v2928
        %v2930 = vrot.slane %v2929, 2
        %v2931 = vmax.f32 %v2929, %v2930
        %v2932 = vrot.slane %v2931, 1
        %v2933 = vmax.f32 %v2931, %v2932
        %v2934 = vsel %vm2897, %v2777, -inf
        %v2935 = vsel %vm2897, %v2778, -inf
        %v2936 = vmax.f32 %v2934, %v2935
        %v2937 = vrot.slane %v2936, 4
        %v2938 = vmax.f32 %v2936, %v2937
        %v2939 = vrot.slane %v2938, 2
        %v2940 = vmax.f32 %v2938, %v2939
        %v2941 = vrot.slane %v2940, 1
        %v2942 = vmax.f32 %v2940, %v2941
        %v2943 = vsel %vm2897, %v2779, -inf
        %v2944 = vsel %vm2897, %v2780, -inf
        %v2945 = vmax.f32 %v2943, %v2944
        %v2946 = vrot.slane %v2945, 4
        %v2947 = vmax.f32 %v2945, %v2946
        %v2948 = vrot.slane %v2947, 2
        %v2949 = vmax.f32 %v2947, %v2948
        %v2950 = vrot.slane %v2949, 1
        %v2951 = vmax.f32 %v2949, %v2950
        %v2952 = vsel %vm2897, %v2781, -inf
        %v2953 = vsel %vm2897, %v2782, -inf
        %v2954 = vmax.f32 %v2952, %v2953
        %v2955 = vrot.slane %v2954, 4
        %v2956 = vmax.f32 %v2954, %v2955
        %v2957 = vrot.slane %v2956, 2
        %v2958 = vmax.f32 %v2956, %v2957
        %v2959 = vrot.slane %v2958, 1
        %v2960 = vmax.f32 %v2958, %v2959
        %v2961 = vsel %vm2897, %v2783, -inf
        %v2962 = vsel %vm2897, %v2784, -inf
        %v2963 = vmax.f32 %v2961, %v2962
        %v2964 = vrot.slane %v2963, 4
        %v2965 = vmax.f32 %v2963, %v2964
        %v2966 = vrot.slane %v2965, 2
        %v2967 = vmax.f32 %v2965, %v2966
        %v2968 = vrot.slane %v2967, 1
        %v2969 = vmax.f32 %v2967, %v2968
        %v2970 = vsel %vm2897, %v2785, -inf
        %v2971 = vsel %vm2897, %v2786, -inf
        %v2972 = vmax.f32 %v2970, %v2971
        %v2973 = vrot.slane %v2972, 4
        %v2974 = vmax.f32 %v2972, %v2973
        %v2975 = vrot.slane %v2974, 2
        %v2976 = vmax.f32 %v2974, %v2975
        %v2977 = vrot.slane %v2976, 1
        %v2978 = vmax.f32 %v2976, %v2977
        %v2979 = vsel %vm2897, %v2787, -inf
        %v2980 = vsel %vm2897, %v2788, -inf
        %v2981 = vmax.f32 %v2979, %v2980
        %v2982 = vrot.slane %v2981, 4
        %v2983 = vmax.f32 %v2981, %v2982
        %v2984 = vrot.slane %v2983, 2
        %v2985 = vmax.f32 %v2983, %v2984
        %v2986 = vrot.slane %v2985, 1
        %v2987 = vmax.f32 %v2985, %v2986
        %v2988 = vsel %vm2897, %v2789, -inf
        %v2989 = vsel %vm2897, %v2790, -inf
        %v2990 = vmax.f32 %v2988, %v2989
        %v2991 = vrot.slane %v2990, 4
        %v2992 = vmax.f32 %v2990, %v2991
        %v2993 = vrot.slane %v2992, 2
        %v2994 = vmax.f32 %v2992, %v2993
        %v2995 = vrot.slane %v2994, 1
        %v2996 = vmax.f32 %v2994, %v2995
        %v2997 = vsel %vm2897, %v2791, -inf
        %v2998 = vsel %vm2897, %v2792, -inf
        %v2999 = vmax.f32 %v2997, %v2998
        %v3000 = vrot.slane %v2999, 4
        %v3001 = vmax.f32 %v2999, %v3000
        %v3002 = vrot.slane %v3001, 2
        %v3003 = vmax.f32 %v3001, %v3002
        %v3004 = vrot.slane %v3003, 1
        %v3005 = vmax.f32 %v3003, %v3004
        %v3006 = vsel %vm2897, %v2793, -inf
        %v3007 = vsel %vm2897, %v2794, -inf
        %v3008 = vmax.f32 %v3006, %v3007
        %v3009 = vrot.slane %v3008, 4
        %v3010 = vmax.f32 %v3008, %v3009
        %v3011 = vrot.slane %v3010, 2
        %v3012 = vmax.f32 %v3010, %v3011
        %v3013 = vrot.slane %v3012, 1
        %v3014 = vmax.f32 %v3012, %v3013
        %v3015 = vsel %vm2897, %v2795, -inf
        %v3016 = vsel %vm2897, %v2796, -inf
        %v3017 = vmax.f32 %v3015, %v3016
        %v3018 = vrot.slane %v3017, 4
        %v3019 = vmax.f32 %v3017, %v3018
        %v3020 = vrot.slane %v3019, 2
        %v3021 = vmax.f32 %v3019, %v3020
        %v3022 = vrot.slane %v3021, 1
        %v3023 = vmax.f32 %v3021, %v3022
        %v3024 = vsel %vm2897, %v2797, -inf
        %v3025 = vsel %vm2897, %v2798, -inf
        %v3026 = vmax.f32 %v3024, %v3025
        %v3027 = vrot.slane %v3026, 4
        %v3028 = vmax.f32 %v3026, %v3027
        %v3029 = vrot.slane %v3028, 2
        %v3030 = vmax.f32 %v3028, %v3029
        %v3031 = vrot.slane %v3030, 1
        %v3032 = vmax.f32 %v3030, %v3031
        %v3033 = vsel %vm2897, %v2799, -inf
        %v3034 = vsel %vm2897, %v2800, -inf
        %v3035 = vmax.f32 %v3033, %v3034
        %v3036 = vrot.slane %v3035, 4
        %v3037 = vmax.f32 %v3035, %v3036
        %v3038 = vrot.slane %v3037, 2
        %v3039 = vmax.f32 %v3037, %v3038
        %v3040 = vrot.slane %v3039, 1
        %v3041 = vmax.f32 %v3039, %v3040
        %v3042 = vsel %vm2897, %v2801, -inf
        %v3043 = vsel %vm2897, %v2802, -inf
        %v3044 = vmax.f32 %v3042, %v3043
        %v3045 = vrot.slane %v3044, 4
        %v3046 = vmax.f32 %v3044, %v3045
        %v3047 = vrot.slane %v3046, 2
        %v3048 = vmax.f32 %v3046, %v3047
        %v3049 = vrot.slane %v3048, 1
        %v3050 = vmax.f32 %v3048, %v3049
        %v3051 = vsel %vm2897, %v2803, -inf
        %v3052 = vsel %vm2897, %v2804, -inf
        %v3053 = vmax.f32 %v3051, %v3052
        %v3054 = vrot.slane %v3053, 4
        %v3055 = vmax.f32 %v3053, %v3054
        %v3056 = vrot.slane %v3055, 2
        %v3057 = vmax.f32 %v3055, %v3056
        %v3058 = vrot.slane %v3057, 1
        %v3059 = vmax.f32 %v3057, %v3058
        %v3060 = vsel %vm2897, %v2805, -inf
        %v3061 = vsel %vm2897, %v2806, -inf
        %v3062 = vmax.f32 %v3060, %v3061
        %v3063 = vrot.slane %v3062, 4
        %v3064 = vmax.f32 %v3062, %v3063
        %v3065 = vrot.slane %v3064, 2
        %v3066 = vmax.f32 %v3064, %v3065
        %v3067 = vrot.slane %v3066, 1
        %v3068 = vmax.f32 %v3066, %v3067
        %v3069 = vsel %vm2897, %v2807, -inf
        %v3070 = vsel %vm2897, %v2808, -inf
        %v3071 = vmax.f32 %v3069, %v3070
        %v3072 = vrot.slane %v3071, 4
        %v3073 = vmax.f32 %v3071, %v3072
        %v3074 = vrot.slane %v3073, 2
        %v3075 = vmax.f32 %v3073, %v3074
        %v3076 = vrot.slane %v3075, 1
        %v3077 = vmax.f32 %v3075, %v3076
        %v3078 = vsel %vm2897, %v2809, -inf
        %v3079 = vsel %vm2897, %v2810, -inf
        %v3080 = vmax.f32 %v3078, %v3079
        %v3081 = vrot.slane %v3080, 4
        %v3082 = vmax.f32 %v3080, %v3081
        %v3083 = vrot.slane %v3082, 2
        %v3084 = vmax.f32 %v3082, %v3083
        %v3085 = vrot.slane %v3084, 1
        %v3086 = vmax.f32 %v3084, %v3085
        %v3087 = vsel %vm2897, %v2811, -inf
        %v3088 = vsel %vm2897, %v2812, -inf
        %v3089 = vmax.f32 %v3087, %v3088
        %v3090 = vrot.slane %v3089, 4
        %v3091 = vmax.f32 %v3089, %v3090
        %v3092 = vrot.slane %v3091, 2
        %v3093 = vmax.f32 %v3091, %v3092
        %v3094 = vrot.slane %v3093, 1
        %v3095 = vmax.f32 %v3093, %v3094
        %v3096 = vsel %vm2897, %v2813, -inf
        %v3097 = vsel %vm2897, %v2814, -inf
        %v3098 = vmax.f32 %v3096, %v3097
        %v3099 = vrot.slane %v3098, 4
        %v3100 = vmax.f32 %v3098, %v3099
        %v3101 = vrot.slane %v3100, 2
        %v3102 = vmax.f32 %v3100, %v3101
        %v3103 = vrot.slane %v3102, 1
        %v3104 = vmax.f32 %v3102, %v3103
        %v3105 = vsel %vm2897, %v2815, -inf
        %v3106 = vsel %vm2897, %v2816, -inf
        %v3107 = vmax.f32 %v3105, %v3106
        %v3108 = vrot.slane %v3107, 4
        %v3109 = vmax.f32 %v3107, %v3108
        %v3110 = vrot.slane %v3109, 2
        %v3111 = vmax.f32 %v3109, %v3110
        %v3112 = vrot.slane %v3111, 1
        %v3113 = vmax.f32 %v3111, %v3112
        %v3114 = vsel %vm2897, %v2817, -inf
        %v3115 = vsel %vm2897, %v2818, -inf
        %v3116 = vmax.f32 %v3114, %v3115
        %v3117 = vrot.slane %v3116, 4
        %v3118 = vmax.f32 %v3116, %v3117
        %v3119 = vrot.slane %v3118, 2
        %v3120 = vmax.f32 %v3118, %v3119
        %v3121 = vrot.slane %v3120, 1
        %v3122 = vmax.f32 %v3120, %v3121
        %v3123 = vsel %vm2897, %v2819, -inf
        %v3124 = vsel %vm2897, %v2820, -inf
        %v3125 = vmax.f32 %v3123, %v3124
        %v3126 = vrot.slane %v3125, 4
        %v3127 = vmax.f32 %v3125, %v3126
        %v3128 = vrot.slane %v3127, 2
        %v3129 = vmax.f32 %v3127, %v3128
        %v3130 = vrot.slane %v3129, 1
        %v3131 = vmax.f32 %v3129, %v3130
        %v3132 = vsel %vm2897, %v2821, -inf
        %v3133 = vsel %vm2897, %v2822, -inf
        %v3134 = vmax.f32 %v3132, %v3133
        %v3135 = vrot.slane %v3134, 4
        %v3136 = vmax.f32 %v3134, %v3135
        %v3137 = vrot.slane %v3136, 2
        %v3138 = vmax.f32 %v3136, %v3137
        %v3139 = vrot.slane %v3138, 1
        %v3140 = vmax.f32 %v3138, %v3139
        %v3141 = vsel %vm2897, %v2823, -inf
        %v3142 = vsel %vm2897, %v2824, -inf
        %v3143 = vmax.f32 %v3141, %v3142
        %v3144 = vrot.slane %v3143, 4
        %v3145 = vmax.f32 %v3143, %v3144
        %v3146 = vrot.slane %v3145, 2
        %v3147 = vmax.f32 %v3145, %v3146
        %v3148 = vrot.slane %v3147, 1
        %v3149 = vmax.f32 %v3147, %v3148
        %v3150 = vsel %vm2897, %v2825, -inf
        %v3151 = vsel %vm2897, %v2826, -inf
        %v3152 = vmax.f32 %v3150, %v3151
        %v3153 = vrot.slane %v3152, 4
        %v3154 = vmax.f32 %v3152, %v3153
        %v3155 = vrot.slane %v3154, 2
        %v3156 = vmax.f32 %v3154, %v3155
        %v3157 = vrot.slane %v3156, 1
        %v3158 = vmax.f32 %v3156, %v3157
        %v3159 = vsel %vm2897, %v2827, -inf
        %v3160 = vsel %vm2897, %v2828, -inf
        %v3161 = vmax.f32 %v3159, %v3160
        %v3162 = vrot.slane %v3161, 4
        %v3163 = vmax.f32 %v3161, %v3162
        %v3164 = vrot.slane %v3163, 2
        %v3165 = vmax.f32 %v3163, %v3164
        %v3166 = vrot.slane %v3165, 1
        %v3167 = vmax.f32 %v3165, %v3166
        %v3168 = vsel %vm2897, %v2829, -inf
        %v3169 = vsel %vm2897, %v2830, -inf
        %v3170 = vmax.f32 %v3168, %v3169
        %v3171 = vrot.slane %v3170, 4
        %v3172 = vmax.f32 %v3170, %v3171
        %v3173 = vrot.slane %v3172, 2
        %v3174 = vmax.f32 %v3172, %v3173
        %v3175 = vrot.slane %v3174, 1
        %v3176 = vmax.f32 %v3174, %v3175
        %v3177 = vsel %vm2897, %v2831, -inf
        %v3178 = vsel %vm2897, %v2832, -inf
        %v3179 = vmax.f32 %v3177, %v3178
        %v3180 = vrot.slane %v3179, 4
        %v3181 = vmax.f32 %v3179, %v3180
        %v3182 = vrot.slane %v3181, 2
        %v3183 = vmax.f32 %v3181, %v3182
        %v3184 = vrot.slane %v3183, 1
        %v3185 = vmax.f32 %v3183, %v3184
        %v3186 = vsel %vm2897, %v2833, -inf
        %v3187 = vsel %vm2897, %v2834, -inf
        %v3188 = vmax.f32 %v3186, %v3187
        %v3189 = vrot.slane %v3188, 4
        %v3190 = vmax.f32 %v3188, %v3189
        %v3191 = vrot.slane %v3190, 2
        %v3192 = vmax.f32 %v3190, %v3191
        %v3193 = vrot.slane %v3192, 1
        %v3194 = vmax.f32 %v3192, %v3193
        %v3195 = vsel %vm2897, %v2835, -inf
        %v3196 = vsel %vm2897, %v2836, -inf
        %v3197 = vmax.f32 %v3195, %v3196
        %v3198 = vrot.slane %v3197, 4
        %v3199 = vmax.f32 %v3197, %v3198
        %v3200 = vrot.slane %v3199, 2
        %v3201 = vmax.f32 %v3199, %v3200
        %v3202 = vrot.slane %v3201, 1
        %v3203 = vmax.f32 %v3201, %v3202
        %v3204 = vsel %vm2897, %v2837, -inf
        %v3205 = vsel %vm2897, %v2838, -inf
        %v3206 = vmax.f32 %v3204, %v3205
        %v3207 = vrot.slane %v3206, 4
        %v3208 = vmax.f32 %v3206, %v3207
        %v3209 = vrot.slane %v3208, 2
        %v3210 = vmax.f32 %v3208, %v3209
        %v3211 = vrot.slane %v3210, 1
        %v3212 = vmax.f32 %v3210, %v3211
        %v3213 = vsel %vm2897, %v2839, -inf
        %v3214 = vsel %vm2897, %v2840, -inf
        %v3215 = vmax.f32 %v3213, %v3214
        %v3216 = vrot.slane %v3215, 4
        %v3217 = vmax.f32 %v3215, %v3216
        %v3218 = vrot.slane %v3217, 2
        %v3219 = vmax.f32 %v3217, %v3218
        %v3220 = vrot.slane %v3219, 1
        %v3221 = vmax.f32 %v3219, %v3220
        %v3222 = vsel %vm2897, %v2841, -inf
        %v3223 = vsel %vm2897, %v2842, -inf
        %v3224 = vmax.f32 %v3222, %v3223
        %v3225 = vrot.slane %v3224, 4
        %v3226 = vmax.f32 %v3224, %v3225
        %v3227 = vrot.slane %v3226, 2
        %v3228 = vmax.f32 %v3226, %v3227
        %v3229 = vrot.slane %v3228, 1
        %v3230 = vmax.f32 %v3228, %v3229
        %v3231 = vsel %vm2897, %v2843, -inf
        %v3232 = vsel %vm2897, %v2844, -inf
        %v3233 = vmax.f32 %v3231, %v3232
        %v3234 = vrot.slane %v3233, 4
        %v3235 = vmax.f32 %v3233, %v3234
        %v3236 = vrot.slane %v3235, 2
        %v3237 = vmax.f32 %v3235, %v3236
        %v3238 = vrot.slane %v3237, 1
        %v3239 = vmax.f32 %v3237, %v3238
        %v3240 = vsel %vm2897, %v2845, -inf
        %v3241 = vsel %vm2897, %v2846, -inf
        %v3242 = vmax.f32 %v3240, %v3241
        %v3243 = vrot.slane %v3242, 4
        %v3244 = vmax.f32 %v3242, %v3243
        %v3245 = vrot.slane %v3244, 2
        %v3246 = vmax.f32 %v3244, %v3245
        %v3247 = vrot.slane %v3246, 1
        %v3248 = vmax.f32 %v3246, %v3247
        %v3249 = vsel %vm2897, %v2847, -inf
        %v3250 = vsel %vm2897, %v2848, -inf
        %v3251 = vmax.f32 %v3249, %v3250
        %v3252 = vrot.slane %v3251, 4
        %v3253 = vmax.f32 %v3251, %v3252
        %v3254 = vrot.slane %v3253, 2
        %v3255 = vmax.f32 %v3253, %v3254
        %v3256 = vrot.slane %v3255, 1
        %v3257 = vmax.f32 %v3255, %v3256
        %v3258 = vsel %vm2897, %v2849, -inf
        %v3259 = vsel %vm2897, %v2850, -inf
        %v3260 = vmax.f32 %v3258, %v3259
        %v3261 = vrot.slane %v3260, 4
        %v3262 = vmax.f32 %v3260, %v3261
        %v3263 = vrot.slane %v3262, 2
        %v3264 = vmax.f32 %v3262, %v3263
        %v3265 = vrot.slane %v3264, 1
        %v3266 = vmax.f32 %v3264, %v3265
        %v3267 = vsel %vm2897, %v2851, -inf
        %v3268 = vsel %vm2897, %v2852, -inf
        %v3269 = vmax.f32 %v3267, %v3268
        %v3270 = vrot.slane %v3269, 4
        %v3271 = vmax.f32 %v3269, %v3270
        %v3272 = vrot.slane %v3271, 2
        %v3273 = vmax.f32 %v3271, %v3272
        %v3274 = vrot.slane %v3273, 1
        %v3275 = vmax.f32 %v3273, %v3274
        %v3276 = vsel %vm2897, %v2853, -inf
        %v3277 = vsel %vm2897, %v2854, -inf
        %v3278 = vmax.f32 %v3276, %v3277
        %v3279 = vrot.slane %v3278, 4
        %v3280 = vmax.f32 %v3278, %v3279
        %v3281 = vrot.slane %v3280, 2
        %v3282 = vmax.f32 %v3280, %v3281
        %v3283 = vrot.slane %v3282, 1
        %v3284 = vmax.f32 %v3282, %v3283
        %v3285 = vsel %vm2897, %v2855, -inf
        %v3286 = vsel %vm2897, %v2856, -inf
        %v3287 = vmax.f32 %v3285, %v3286
        %v3288 = vrot.slane %v3287, 4
        %v3289 = vmax.f32 %v3287, %v3288
        %v3290 = vrot.slane %v3289, 2
        %v3291 = vmax.f32 %v3289, %v3290
        %v3292 = vrot.slane %v3291, 1
        %v3293 = vmax.f32 %v3291, %v3292
        %v3294 = vsel %vm2897, %v2857, -inf
        %v3295 = vsel %vm2897, %v2858, -inf
        %v3296 = vmax.f32 %v3294, %v3295
        %v3297 = vrot.slane %v3296, 4
        %v3298 = vmax.f32 %v3296, %v3297
        %v3299 = vrot.slane %v3298, 2
        %v3300 = vmax.f32 %v3298, %v3299
        %v3301 = vrot.slane %v3300, 1
        %v3302 = vmax.f32 %v3300, %v3301
        %v3303 = vsel %vm2897, %v2859, -inf
        %v3304 = vsel %vm2897, %v2860, -inf
        %v3305 = vmax.f32 %v3303, %v3304
        %v3306 = vrot.slane %v3305, 4
        %v3307 = vmax.f32 %v3305, %v3306
        %v3308 = vrot.slane %v3307, 2
        %v3309 = vmax.f32 %v3307, %v3308
        %v3310 = vrot.slane %v3309, 1
        %v3311 = vmax.f32 %v3309, %v3310
        %v3312 = vsel %vm2897, %v2861, -inf
        %v3313 = vsel %vm2897, %v2862, -inf
        %v3314 = vmax.f32 %v3312, %v3313
        %v3315 = vrot.slane %v3314, 4
        %v3316 = vmax.f32 %v3314, %v3315
        %v3317 = vrot.slane %v3316, 2
        %v3318 = vmax.f32 %v3316, %v3317
        %v3319 = vrot.slane %v3318, 1
        %v3320 = vmax.f32 %v3318, %v3319
        %v3321 = vsel %vm2897, %v2863, -inf
        %v3322 = vsel %vm2897, %v2864, -inf
        %v3323 = vmax.f32 %v3321, %v3322
        %v3324 = vrot.slane %v3323, 4
        %v3325 = vmax.f32 %v3323, %v3324
        %v3326 = vrot.slane %v3325, 2
        %v3327 = vmax.f32 %v3325, %v3326
        %v3328 = vrot.slane %v3327, 1
        %v3329 = vmax.f32 %v3327, %v3328
        %v3330 = vsel %vm2897, %v2865, -inf
        %v3331 = vsel %vm2897, %v2866, -inf
        %v3332 = vmax.f32 %v3330, %v3331
        %v3333 = vrot.slane %v3332, 4
        %v3334 = vmax.f32 %v3332, %v3333
        %v3335 = vrot.slane %v3334, 2
        %v3336 = vmax.f32 %v3334, %v3335
        %v3337 = vrot.slane %v3336, 1
        %v3338 = vmax.f32 %v3336, %v3337
        %v3339 = vsel %vm2897, %v2867, -inf
        %v3340 = vsel %vm2897, %v2868, -inf
        %v3341 = vmax.f32 %v3339, %v3340
        %v3342 = vrot.slane %v3341, 4
        %v3343 = vmax.f32 %v3341, %v3342
        %v3344 = vrot.slane %v3343, 2
        %v3345 = vmax.f32 %v3343, %v3344
        %v3346 = vrot.slane %v3345, 1
        %v3347 = vmax.f32 %v3345, %v3346
        %v3348 = vsel %vm2897, %v2869, -inf
        %v3349 = vsel %vm2897, %v2870, -inf
        %v3350 = vmax.f32 %v3348, %v3349
        %v3351 = vrot.slane %v3350, 4
        %v3352 = vmax.f32 %v3350, %v3351
        %v3353 = vrot.slane %v3352, 2
        %v3354 = vmax.f32 %v3352, %v3353
        %v3355 = vrot.slane %v3354, 1
        %v3356 = vmax.f32 %v3354, %v3355
        %v3357 = vsel %vm2897, %v2871, -inf
        %v3358 = vsel %vm2897, %v2872, -inf
        %v3359 = vmax.f32 %v3357, %v3358
        %v3360 = vrot.slane %v3359, 4
        %v3361 = vmax.f32 %v3359, %v3360
        %v3362 = vrot.slane %v3361, 2
        %v3363 = vmax.f32 %v3361, %v3362
        %v3364 = vrot.slane %v3363, 1
        %v3365 = vmax.f32 %v3363, %v3364
        %v3366 = vsel %vm2897, %v2873, -inf
        %v3367 = vsel %vm2897, %v2874, -inf
        %v3368 = vmax.f32 %v3366, %v3367
        %v3369 = vrot.slane %v3368, 4
        %v3370 = vmax.f32 %v3368, %v3369
        %v3371 = vrot.slane %v3370, 2
        %v3372 = vmax.f32 %v3370, %v3371
        %v3373 = vrot.slane %v3372, 1
        %v3374 = vmax.f32 %v3372, %v3373
        %v3375 = vsel %vm2897, %v2875, -inf
        %v3376 = vsel %vm2897, %v2876, -inf
        %v3377 = vmax.f32 %v3375, %v3376
        %v3378 = vrot.slane %v3377, 4
        %v3379 = vmax.f32 %v3377, %v3378
        %v3380 = vrot.slane %v3379, 2
        %v3381 = vmax.f32 %v3379, %v3380
        %v3382 = vrot.slane %v3381, 1
        %v3383 = vmax.f32 %v3381, %v3382
        %v3384 = vsel %vm2897, %v2877, -inf
        %v3385 = vsel %vm2897, %v2878, -inf
        %v3386 = vmax.f32 %v3384, %v3385
        %v3387 = vrot.slane %v3386, 4
        %v3388 = vmax.f32 %v3386, %v3387
        %v3389 = vrot.slane %v3388, 2
        %v3390 = vmax.f32 %v3388, %v3389
        %v3391 = vrot.slane %v3390, 1
        %v3392 = vmax.f32 %v3390, %v3391
        %v3393 = vsel %vm2897, %v2879, -inf
        %v3394 = vsel %vm2897, %v2880, -inf
        %v3395 = vmax.f32 %v3393, %v3394
        %v3396 = vrot.slane %v3395, 4
        %v3397 = vmax.f32 %v3395, %v3396
        %v3398 = vrot.slane %v3397, 2
        %v3399 = vmax.f32 %v3397, %v3398
        %v3400 = vrot.slane %v3399, 1
        %v3401 = vmax.f32 %v3399, %v3400
        %v3402 = vsel %vm2897, %v2881, -inf
        %v3403 = vsel %vm2897, %v2882, -inf
        %v3404 = vmax.f32 %v3402, %v3403
        %v3405 = vrot.slane %v3404, 4
        %v3406 = vmax.f32 %v3404, %v3405
        %v3407 = vrot.slane %v3406, 2
        %v3408 = vmax.f32 %v3406, %v3407
        %v3409 = vrot.slane %v3408, 1
        %v3410 = vmax.f32 %v3408, %v3409
        %v3411 = vsel %vm2897, %v2883, -inf
        %v3412 = vsel %vm2897, %v2884, -inf
        %v3413 = vmax.f32 %v3411, %v3412
        %v3414 = vrot.slane %v3413, 4
        %v3415 = vmax.f32 %v3413, %v3414
        %v3416 = vrot.slane %v3415, 2
        %v3417 = vmax.f32 %v3415, %v3416
        %v3418 = vrot.slane %v3417, 1
        %v3419 = vmax.f32 %v3417, %v3418
        %v3420 = vsel %vm2897, %v2885, -inf
        %v3421 = vsel %vm2897, %v2886, -inf
        %v3422 = vmax.f32 %v3420, %v3421
        %v3423 = vrot.slane %v3422, 4
        %v3424 = vmax.f32 %v3422, %v3423
        %v3425 = vrot.slane %v3424, 2
        %v3426 = vmax.f32 %v3424, %v3425
        %v3427 = vrot.slane %v3426, 1
        %v3428 = vmax.f32 %v3426, %v3427
        %v3429 = vsel %vm2897, %v2887, -inf
        %v3430 = vsel %vm2897, %v2888, -inf
        %v3431 = vmax.f32 %v3429, %v3430
        %v3432 = vrot.slane %v3431, 4
        %v3433 = vmax.f32 %v3431, %v3432
        %v3434 = vrot.slane %v3433, 2
        %v3435 = vmax.f32 %v3433, %v3434
        %v3436 = vrot.slane %v3435, 1
        %v3437 = vmax.f32 %v3435, %v3436
        %v3438 = vsel %vm2897, %v2889, -inf
        %v3439 = vsel %vm2897, %v2890, -inf
        %v3440 = vmax.f32 %v3438, %v3439
        %v3441 = vrot.slane %v3440, 4
        %v3442 = vmax.f32 %v3440, %v3441
        %v3443 = vrot.slane %v3442, 2
        %v3444 = vmax.f32 %v3442, %v3443
        %v3445 = vrot.slane %v3444, 1
        %v3446 = vmax.f32 %v3444, %v3445
        %v3447 = vsel %vm2897, %v2891, -inf
        %v3448 = vsel %vm2897, %v2892, -inf
        %v3449 = vmax.f32 %v3447, %v3448
        %v3450 = vrot.slane %v3449, 4
        %v3451 = vmax.f32 %v3449, %v3450
        %v3452 = vrot.slane %v3451, 2
        %v3453 = vmax.f32 %v3451, %v3452
        %v3454 = vrot.slane %v3453, 1
        %v3455 = vmax.f32 %v3453, %v3454
        %v3456 = vsel %vm2897, %v2893, -inf
        %v3457 = vsel %vm2897, %v2894, -inf
        %v3458 = vmax.f32 %v3456, %v3457
        %v3459 = vrot.slane %v3458, 4
        %v3460 = vmax.f32 %v3458, %v3459
        %v3461 = vrot.slane %v3460, 2
        %v3462 = vmax.f32 %v3460, %v3461
        %v3463 = vrot.slane %v3462, 1
        %v3464 = vmax.f32 %v3462, %v3463
        %v3465 = vsel %vm2897, %v2895, -inf
        %v3466 = vsel %vm2897, %v2896, -inf
        %v3467 = vmax.f32 %v3465, %v3466
        %v3468 = vrot.slane %v3467, 4
        %v3469 = vmax.f32 %v3467, %v3468
        %v3470 = vrot.slane %v3469, 2
        %v3471 = vmax.f32 %v3469, %v3470
        %v3472 = vrot.slane %v3471, 1
        %v3473 = vmax.f32 %v3471, %v3472
        %vm3538 = vcmask 1041409
        %v3539 = vsel %vm3538, %v2915, %v2906
        %vm3540 = vcmask 1042434
        %v3541 = vsel %vm3540, %v2924, %v3539
        %vm3542 = vcmask 1043459
        %v3543 = vsel %vm3542, %v2933, %v3541
        %vm3544 = vcmask 1044484
        %v3545 = vsel %vm3544, %v2942, %v3543
        %vm3546 = vcmask 1045509
        %v3547 = vsel %vm3546, %v2951, %v3545
        %vm3548 = vcmask 1046534
        %v3549 = vsel %vm3548, %v2960, %v3547
        %vm3550 = vcmask 1047559
        %v3551 = vsel %vm3550, %v2969, %v3549
        %v3552 = vsel %vm3538, %v2987, %v2978
        %v3553 = vsel %vm3540, %v2996, %v3552
        %v3554 = vsel %vm3542, %v3005, %v3553
        %v3555 = vsel %vm3544, %v3014, %v3554
        %v3556 = vsel %vm3546, %v3023, %v3555
        %v3557 = vsel %vm3548, %v3032, %v3556
        %v3558 = vsel %vm3550, %v3041, %v3557
        %v3559 = vsel %vm3538, %v3059, %v3050
        %v3560 = vsel %vm3540, %v3068, %v3559
        %v3561 = vsel %vm3542, %v3077, %v3560
        %v3562 = vsel %vm3544, %v3086, %v3561
        %v3563 = vsel %vm3546, %v3095, %v3562
        %v3564 = vsel %vm3548, %v3104, %v3563
        %v3565 = vsel %vm3550, %v3113, %v3564
        %v3566 = vsel %vm3538, %v3131, %v3122
        %v3567 = vsel %vm3540, %v3140, %v3566
        %v3568 = vsel %vm3542, %v3149, %v3567
        %v3569 = vsel %vm3544, %v3158, %v3568
        %v3570 = vsel %vm3546, %v3167, %v3569
        %v3571 = vsel %vm3548, %v3176, %v3570
        %v3572 = vsel %vm3550, %v3185, %v3571
        %v3573 = vsel %vm3538, %v3203, %v3194
        %v3574 = vsel %vm3540, %v3212, %v3573
        %v3575 = vsel %vm3542, %v3221, %v3574
        %v3576 = vsel %vm3544, %v3230, %v3575
        %v3577 = vsel %vm3546, %v3239, %v3576
        %v3578 = vsel %vm3548, %v3248, %v3577
        %v3579 = vsel %vm3550, %v3257, %v3578
        %v3580 = vsel %vm3538, %v3275, %v3266
        %v3581 = vsel %vm3540, %v3284, %v3580
        %v3582 = vsel %vm3542, %v3293, %v3581
        %v3583 = vsel %vm3544, %v3302, %v3582
        %v3584 = vsel %vm3546, %v3311, %v3583
        %v3585 = vsel %vm3548, %v3320, %v3584
        %v3586 = vsel %vm3550, %v3329, %v3585
        %v3587 = vsel %vm3538, %v3347, %v3338
        %v3588 = vsel %vm3540, %v3356, %v3587
        %v3589 = vsel %vm3542, %v3365, %v3588
        %v3590 = vsel %vm3544, %v3374, %v3589
        %v3591 = vsel %vm3546, %v3383, %v3590
        %v3592 = vsel %vm3548, %v3392, %v3591
        %v3593 = vsel %vm3550, %v3401, %v3592
        %v3594 = vsel %vm3538, %v3419, %v3410
        %v3595 = vsel %vm3540, %v3428, %v3594
        %v3596 = vsel %vm3542, %v3437, %v3595
        %v3597 = vsel %vm3544, %v3446, %v3596
        %v3598 = vsel %vm3546, %v3455, %v3597
        %v3599 = vsel %vm3548, %v3464, %v3598
        %v3600 = vsel %vm3550, %v3473, %v3599
        %3609 = vst.msk [vmem:[%s296] sm:$0xff] %vm2897, %v3551
        %3610 = vst.msk [vmem:[%s296 + $0x8] sm:$0xff] %vm2897, %v3558
        %3611 = vst.msk [vmem:[%s296 + $0x10] sm:$0xff] %vm2897, %v3565
        %3612 = vst.msk [vmem:[%s296 + $0x18] sm:$0xff] %vm2897, %v3572
        %3613 = vst.msk [vmem:[%s296 + $0x20] sm:$0xff] %vm2897, %v3579
        %3614 = vst.msk [vmem:[%s296 + $0x28] sm:$0xff] %vm2897, %v3586
        %3615 = vst.msk [vmem:[%s296 + $0x30] sm:$0xff] %vm2897, %v3593
        %3616 = vst.msk [vmem:[%s296 + $0x38] sm:$0xff] %vm2897, %v3600
        %s3617 = sand.u32 %s197, 1
        %s3618 = scalar_lea.sflag [#allocation3], %s3617
        %s3619 = sand.u32 %s197, 1
        %s3620 = smul.addr %s3619, 64
        %s3621 = scalar_lea.vmem [#allocation2], %s3620
        // Predicated region
        $region49: #{pointnet_sa_module.3} parent=47 // pred_check
          %p3622 = pneg %p207
        $region50: #{pointnet_sa_module.3} parent=47 // pred_check_branch
          %3624 = sbr.rel (%p3622) target = $region52
        $region51: #{pointnet_sa_module.3} parent=47 // pred_region
          %s3625 = smul.u32 8, %s26
          %3627 = vsyncadd %s3618, 0
          %s3628 = smul.addr %s25, 8
          %s3629 = sadd.s32 %s3625, %s3628
          %s3630 = smul.addr %s3629, 8
          %s3631 = scalar_lea.hbm %s7, %s3630
          %s3632 = sshll.u32 %s3621, 4
          %s3633 = int_to_ptr.vmem [resolvable:$true] %s3632
          %s3634 = sshll.u32 %s3631, 4
          %s3635 = int_to_ptr.hbm [resolvable:$true] %s3634
          %3640 = dma.vmem_to_hbm [thread:$0]  %s3633, 1024, %s3635, %s3618, 128, 128, 8
        $region52: #{pointnet_sa_module.3} parent=47 // pred_fallthru
          _
      $region48: #{pointnet_sa_module.3} parent=5 // pred_fallthru
        _
      %p3641 = scmp.le.s32.totalorder 2, %s16
      // Predicated region
      $region53: #{pointnet_sa_module.3} parent=5 // pred_check
        %p3642 = pneg %p3641
      $region54: #{pointnet_sa_module.3} parent=5 // pred_check_branch
        %3644 = sbr.rel (%p3642) target = $region56
      $region55: #{pointnet_sa_module.3} parent=5 // pred_region
        %s3645 = ssub.s32 %s16, 2
        // Predicated region
        $region57: #{pointnet_sa_module.3} parent=55 // pred_check
          %p3646 = pneg %p213
        $region58: #{pointnet_sa_module.3} parent=55 // pred_check_branch
          %3648 = sbr.rel (%p3646) target = $region60
        $region59: #{pointnet_sa_module.3} parent=55 // pred_region
          %s3649 = sand.u32 %s198, 1
          %s3650 = scalar_lea.sflag [#allocation3], %s3649
          %s3651 = sand.u32 %s198, 1
          %s3652 = smul.addr %s3651, 64
          %s3653 = scalar_lea.vmem [#allocation2], %s3652
          %3655 = dma.done %s3650, 1024
        $region60: #{pointnet_sa_module.3} parent=55 // pred_fallthru
          _
      $region56: #{pointnet_sa_module.3} parent=5 // pred_fallthru
        _
    $region6: #{pointnet_sa_module.3} parent=1 // loop_footer
      %s20 = sadd.s32 1, %s16
    $region7: #{pointnet_sa_module.3} parent=1 // loop_footer_branch
      %15 = sbr.rel target = $region3
    $region8: #{pointnet_sa_module.3} parent=1 // loop_exit
      _
    %3656 = vsyncpa [#allocation3], 1
    %s3657 = scalar_lea.sflag [#allocation3], 1
    %3658 = vsyncpa %s3657, 1

</llo_original>
